<compile_context>
chip_gen: v6e
topology: v6e:2x2x1
jax: 0.10.0
libtpu: 0.0.40
codegen_flags: <defaults>
</compile_context>

<pallas_src>
import functools

import jax
import jax.numpy as jnp
from jax.experimental import pallas as pl
from jax.experimental.pallas import tpu as pltpu


# NOTE: PyTorch nn.GELU() defaults to the exact erf form.  The tanh
# approximation is used because it lowers unconditionally in Mosaic and
# PatchModify_transXNet is itself approximated, so bit-exactness vs. the
# original module is not attainable anyway.
def _gelu(x):
    return jax.nn.gelu(x, approximate=True)


# ---------------------------------------------------------------------------
# Fully fused Attention_block kernel (one batch element per grid step).
# ---------------------------------------------------------------------------
def _fused_attention_kernel(rc_ref, g_ref, x_ref, w1g_ref, w1x_ref, b1_ref,
                            *rest, H, W, scales, group_sizes):
    n_dw = len(scales)
    dw_refs = rest[:n_dw]
    w2_ref, b2_ref, wpsi_ref, bpsi_ref, o_ref = rest[n_dw:]

    Fg = g_ref.shape[1]
    Fl = x_ref.shape[1]
    Chid = w1g_ref.shape[0]
    Fint = w2_ref.shape[0]
    M = H * W

    row = rc_ref[0:1, :]                      # (1, M) int32 spatial row index
    col = rc_ref[1:2, :]                      # (1, M) int32 spatial col index

    g2 = g_ref[0]                             # (Fg, M), channels on sublanes
    x2 = x_ref[0]                             # (Fl, M)

    # --- Stage 1: fused cat + 1x1 conv (+folded BN) + GELU ------------------
    # K = Fg + Fl = 8 -> kept off the MXU: VPU outer-product FMAs at 100% lane
    # occupancy (M = 256 on the lane axis).
    w1g = w1g_ref[...]                        # (Chid, Fg)
    w1x = w1x_ref[...]                        # (Chid, Fl)
    h = jnp.zeros((Chid, M), jnp.float32)
    for ci in range(Fg):
        h = h + w1g[:, ci:ci + 1] * g2[ci:ci + 1, :]
    for ci in range(Fl):
        h = h + w1x[:, ci:ci + 1] * x2[ci:ci + 1, :]
    h = _gelu(h + b1_ref[...])                # b1 is (Chid, 1)

    # 0/1 border masks (Conv2d zero padding), cached per tap offset.
    mask_cache = {}

    def tap_mask(di, dj):
        key = (di, dj)
        if key not in mask_cache:
            ok = None
            if di != 0:
                ok = (row >= -di) & (row < H - di)
            if dj != 0:
                c_ok = (col >= -dj) & (col < W - dj)
                ok = c_ok if ok is None else ok & c_ok
            mask_cache[key] = None if ok is None else ok.astype(jnp.float32)
        return mask_cache[key]

    # --- Stages 2+3: multi-scale depthwise conv + GELU, folded group-by-group
    # into the pw2 1x1 conv (also VPU).  Each k x k tap is a static
    # pltpu.roll of the in-register (cg, M) slab along the flattened spatial
    # axis + border mask: zero VMEM traffic per tap, rolls ride the XLU. -----
    w2 = w2_ref[...]                          # (Fint, Chid)
    a = jnp.zeros((Fint, M), jnp.float32)
    c0 = 0
    for dw_ref, k, cg in zip(dw_refs, scales, group_sizes):
        wg = dw_ref[...]                      # (cg, k*k)
        slab = h[c0:c0 + cg, :]               # (cg, M) register slice
        half = k // 2
        acc = jnp.zeros((cg, M), jnp.float32)
        for i in range(k):
            di = i - half
            for j in range(k):
                dj = j - half
                s = di * W + dj               # flat shift; exact for interior
                if s == 0:
                    shifted = slab            # k=1 group: pure per-ch scale
                else:
                    shifted = pltpu.roll(slab, shift=(-s) % M, axis=1)
                m = tap_mask(di, dj)
                if m is not None:
                    shifted = shifted * m     # zero padding at the border
                acc = acc + shifted * wg[:, i * k + j:i * k + j + 1]
        yg = _gelu(acc)
        for ci in range(cg):                  # fold group into pw2 (N=Fint=8)
            a = a + w2[:, c0 + ci:c0 + ci + 1] * yg[ci:ci + 1, :]
        c0 += cg
    a = jnp.maximum(a + b2_ref[...], 0.0)     # pw2 bias (folded BN) + ReLU

    # --- Stage 4: psi = sigmoid(1x1 conv(F_int -> 1) + BN); out = x * psi ---
    # Degenerate matmul kept off the MXU: VPU multiply + sublane (XLU) reduce.
    psi = jnp.sum(a * wpsi_ref[...], axis=0, keepdims=True)     # (1, M)
    psi = jax.nn.sigmoid(psi + bpsi_ref[...])
    o_ref[0] = (x2 * psi).astype(o_ref.dtype)                   # (Fl, M)


# ---------------------------------------------------------------------------
# Parameter setup (plain JAX glue): deterministic init + BN folding (eval mode)
# ---------------------------------------------------------------------------
def _fold_bn(w, b, gamma, beta, mean, var, eps=1e-5):
    # w: (Cout, Cin) 1x1-conv weight; fold an eval-mode BN over Cout into it.
    s = gamma / jnp.sqrt(var + eps)
    return w * s[:, None], (b - mean) * s + beta


def init_params(key, F_g, F_l, F_int, scale=(1, 3, 5, 7)):
    Cin = F_g + F_l
    Chid = 2 * Cin
    assert Chid % len(scale) == 0
    cg = Chid // len(scale)
    ks = jax.random.split(key, 8)
    p = {}

    # agg.pw1: Conv1x1(Cin -> Chid) + BN(Chid); stored as (Cout, Cin)
    w1 = 0.1 * jax.random.normal(ks[0], (Chid, Cin), jnp.float32)
    b1 = 0.1 * jax.random.normal(ks[1], (Chid,), jnp.float32)
    w1f, b1f = _fold_bn(w1, b1, jnp.ones(Chid), jnp.zeros(Chid),
                        jnp.zeros(Chid), jnp.ones(Chid))
    # split so the kernel fuses torch.cat([g, x], 1) into two FMA groups
    p["w1_g"], p["w1_x"] = w1f[:, :F_g], w1f[:, F_g:]
    p["b1"] = b1f.reshape(Chid, 1)

    # agg multi-scale depthwise weights, group i: (cg, k*k) taps (row-major)
    p["dw"] = [0.1 * jax.random.normal(jax.random.fold_in(ks[2], i),
                                       (cg, k * k), jnp.float32)
               for i, k in enumerate(scale)]

    # agg.pw2: Conv1x1(Chid -> F_int) + BN(F_int)
    w2 = 0.1 * jax.random.normal(ks[3], (F_int, Chid), jnp.float32)
    b2 = 0.1 * jax.random.normal(ks[4], (F_int,), jnp.float32)
    w2f, b2f = _fold_bn(w2, b2, jnp.ones(F_int), jnp.zeros(F_int),
                        jnp.zeros(F_int), jnp.ones(F_int))
    p["w2"], p["b2"] = w2f, b2f.reshape(F_int, 1)

    # psi: Conv1x1(F_int -> 1, bias) + BN(1); stored as a column so the kernel
    # does a VPU multiply + sublane reduce instead of a degenerate MXU matmul.
    wp = 0.1 * jax.random.normal(ks[5], (1, F_int), jnp.float32)
    bp = 0.1 * jax.random.normal(ks[6], (1,), jnp.float32)
    wpf, bpf = _fold_bn(wp, bp, jnp.ones(1), jnp.zeros(1),
                        jnp.zeros(1), jnp.ones(1))
    p["wpsi"] = wpf.T                         # (F_int, 1)
    p["bpsi"] = bpf.reshape(1, 1)
    return p


# ---------------------------------------------------------------------------
# Forward pass wrapper: one pallas_call, grid over batch, everything fused.
# ---------------------------------------------------------------------------
def attention_block_forward(g_nchw, x_nchw, params, scale=(1, 3, 5, 7)):
    N, Fg, H, W = g_nchw.shape
    Fl = x_nchw.shape[1]
    M = H * W
    # Channels-major layout, spatial flattened onto the lane axis.  No
    # transposes: NCHW -> (N, C, M) is a contiguous reshape (free in XLA).
    # TODO(synk): switch HBM I/O to bf16 on v6e/v7x (f32 kept here for the
    # tight numerical check against the pure-jnp reference).
    g = g_nchw.reshape(N, Fg, M).astype(jnp.float32)
    x = x_nchw.reshape(N, Fl, M).astype(jnp.float32)

    Chid = params["w1_g"].shape[0]
    Fint = params["w2"].shape[0]
    group_sizes = tuple(int(w.shape[0]) for w in params["dw"])

    # Static per-pixel (row, col) indices for the depthwise border masks
    # (computed host-side so the kernel needs no iota/div/mod).
    idx = jnp.arange(M, dtype=jnp.int32)
    rc = jnp.stack([idx // W, idx % W], axis=0)          # (2, M)

    kernel = functools.partial(
        _fused_attention_kernel, H=H, W=W, scales=tuple(scale),
        group_sizes=group_sizes)

    in_specs = [
        pl.BlockSpec((2, M), lambda n: (0, 0)),              # rc
        pl.BlockSpec((1, Fg, M), lambda n: (n, 0, 0)),       # g
        pl.BlockSpec((1, Fl, M), lambda n: (n, 0, 0)),       # x
        pl.BlockSpec((Chid, Fg), lambda n: (0, 0)),          # w1_g
        pl.BlockSpec((Chid, Fl), lambda n: (0, 0)),          # w1_x
        pl.BlockSpec((Chid, 1), lambda n: (0, 0)),           # b1
    ]
    for w in params["dw"]:
        in_specs.append(pl.BlockSpec(tuple(int(s) for s in w.shape),
                                     lambda n: (0, 0)))      # dw group
    in_specs += [
        pl.BlockSpec((Fint, Chid), lambda n: (0, 0)),        # w2
        pl.BlockSpec((Fint, 1), lambda n: (0, 0)),           # b2
        pl.BlockSpec((Fint, 1), lambda n: (0, 0)),           # wpsi
        pl.BlockSpec((1, 1), lambda n: (0, 0)),              # bpsi
    ]

    out = pl.pallas_call(
        kernel,
        out_shape=jax.ShapeDtypeStruct((N, Fl, M), jnp.float32),
        grid=(N,),
        in_specs=in_specs,
        # Lane-dense output block: last dim M = H*W (multiple of 128).
        out_specs=pl.BlockSpec((1, Fl, M), lambda n: (n, 0, 0)),
        compiler_params=pltpu.CompilerParams(
            # batch elements are independent -> pipelined / megacore-sharded.
            # TODO(synk): add an H-row halo grid axis at production H/W so the
            # pipeline has >1 step per core and v7x VMEM stays bounded.
            dimension_semantics=("parallel",),
        ),
    )(rc, g, x, params["w1_g"], params["w1_x"], params["b1"],
      *params["dw"],
      params["w2"], params["b2"], params["wpsi"], params["bpsi"])

    return out.reshape(N, Fl, H, W)                          # still NCHW


# ---------------------------------------------------------------------------
# Pure-jnp reference of the same (approximated) forward, for validation.
# ---------------------------------------------------------------------------
def _reference_forward(g_nchw, x_nchw, params, scale=(1, 3, 5, 7)):
    g = g_nchw.astype(jnp.float32)
    x = x_nchw.astype(jnp.float32)
    N, Fg, H, W = g.shape
    Fl = x.shape[1]
    M = H * W
    Chid = params["w1_g"].shape[0]
    pmax = max(scale) // 2

    cat = jnp.concatenate([g, x], axis=1).reshape(N, Fg + Fl, M)
    w1 = jnp.concatenate([params["w1_g"], params["w1_x"]], axis=1)
    h = _gelu(jnp.einsum("oc,ncm->nom", w1, cat) + params["b1"][None])
    hp = jnp.pad(h.reshape(N, Chid, H, W),
                 ((0, 0), (0, 0), (pmax, pmax), (pmax, pmax)))
    outs, c0 = [], 0
    for wg, k in zip(params["dw"], scale):
        cg = wg.shape[0]
        off = pmax - k // 2
        acc = jnp.zeros((N, cg, H, W), jnp.float32)
        for i in range(k):
            for j in range(k):
                acc = acc + (hp[:, c0:c0 + cg, off + i:off + i + H,
                                off + j:off + j + W]
                             * wg[:, i * k + j][None, :, None, None])
        outs.append(acc)
        c0 += cg
    y = _gelu(jnp.concatenate(outs, axis=1)).reshape(N, Chid, M)
    a = jnp.maximum(jnp.einsum("oc,ncm->nom", params["w2"], y)
                    + params["b2"][None], 0.0)
    psi = jax.nn.sigmoid(jnp.sum(a * params["wpsi"][None], axis=1,
                                 keepdims=True) + params["bpsi"][0, 0])
    return (x.reshape(N, Fl, M) * psi).reshape(N, Fl, H, W)


if __name__ == "__main__":
    key = jax.random.PRNGKey(0)
    kg, kx, kp = jax.random.split(key, 3)

    F_g, F_l, F_int = 4, 4, 8
    N, H, W = 2, 16, 16
    scale = (1, 3, 5, 7)

    g = jax.random.normal(kg, (N, F_g, H, W), jnp.float32)
    x = jax.random.normal(kx, (N, F_l, H, W), jnp.float32)
    params = init_params(kp, F_g, F_l, F_int, scale)

    fwd = jax.jit(functools.partial(attention_block_forward, scale=scale))
    out = fwd(g, x, params)
    jax.block_until_ready(out)

    assert out.shape == (N, F_l, H, W)
    assert jnp.isfinite(out).all()

    ref = _reference_forward(g, x, params, scale)
    max_err = float(jnp.max(jnp.abs(out - ref)))
    # Tolerance tightened (was 2e-2) so layout/indexing bugs can't hide.
    assert jnp.allclose(out, ref, atol=3e-5, rtol=3e-5), max_err

    print("KERNEL_OK")
</pallas_src>

<mosaic_0001>
module attributes {stable_mosaic.version = 11 : i64} {
  func.func @_fused_attention_kernel(%arg0: i32, %arg1: memref<2x256xi32, #tpu.memory_space<vmem>>, %arg2: memref<1x4x256xf32, #tpu.memory_space<vmem>>, %arg3: memref<1x4x256xf32, #tpu.memory_space<vmem>>, %arg4: memref<16x4xf32, #tpu.memory_space<vmem>>, %arg5: memref<16x4xf32, #tpu.memory_space<vmem>>, %arg6: memref<16x1xf32, #tpu.memory_space<vmem>>, %arg7: memref<4x1xf32, #tpu.memory_space<vmem>>, %arg8: memref<4x9xf32, #tpu.memory_space<vmem>>, %arg9: memref<4x25xf32, #tpu.memory_space<vmem>>, %arg10: memref<4x49xf32, #tpu.memory_space<vmem>>, %arg11: memref<8x16xf32, #tpu.memory_space<vmem>>, %arg12: memref<8x1xf32, #tpu.memory_space<vmem>>, %arg13: memref<8x1xf32, #tpu.memory_space<vmem>>, %arg14: memref<1x1xf32, #tpu.memory_space<vmem>>, %arg15: memref<1x4x256xf32, #tpu.memory_space<vmem>>) attributes {dimension_semantics = [#tpu.dimension_semantics<parallel>], iteration_bounds = array<i64: 2>, scalar_prefetch = 0 : i64, scratch_operands = 0 : i64, tpu.core_type = #tpu.core_type<tc>, window_params = [{pipeline_mode = #tpu.pipeline_mode<synchronous>, transform_indices = @transform_0, window_bounds = array<i64: 2, 256>}, {transform_indices = @transform_1, window_bounds = array<i64: 1, 4, 256>}, {transform_indices = @transform_2, window_bounds = array<i64: 1, 4, 256>}, {pipeline_mode = #tpu.pipeline_mode<synchronous>, transform_indices = @transform_3, window_bounds = array<i64: 16, 4>}, {pipeline_mode = #tpu.pipeline_mode<synchronous>, transform_indices = @transform_4, window_bounds = array<i64: 16, 4>}, {pipeline_mode = #tpu.pipeline_mode<synchronous>, transform_indices = @transform_5, window_bounds = array<i64: 16, 1>}, {pipeline_mode = #tpu.pipeline_mode<synchronous>, transform_indices = @transform_6, window_bounds = array<i64: 4, 1>}, {pipeline_mode = #tpu.pipeline_mode<synchronous>, transform_indices = @transform_7, window_bounds = array<i64: 4, 9>}, {pipeline_mode = #tpu.pipeline_mode<synchronous>, transform_indices = @transform_8, window_bounds = array<i64: 4, 25>}, {pipeline_mode = #tpu.pipeline_mode<synchronous>, transform_indices = @transform_9, window_bounds = array<i64: 4, 49>}, {pipeline_mode = #tpu.pipeline_mode<synchronous>, transform_indices = @transform_10, window_bounds = array<i64: 8, 16>}, {pipeline_mode = #tpu.pipeline_mode<synchronous>, transform_indices = @transform_11, window_bounds = array<i64: 8, 1>}, {pipeline_mode = #tpu.pipeline_mode<synchronous>, transform_indices = @transform_12, window_bounds = array<i64: 8, 1>}, {pipeline_mode = #tpu.pipeline_mode<synchronous>, transform_indices = @transform_13, window_bounds = array<i64: 1, 1>}, {transform_indices = @transform_14, window_bounds = array<i64: 1, 4, 256>}]} {
    %c0 = arith.constant 0 : index
    %c0_0 = arith.constant 0 : index
    %0 = vector.load %arg1[%c0, %c0_0] : memref<2x256xi32, #tpu.memory_space<vmem>>, vector<1x256xi32>
    %c1 = arith.constant 1 : index
    %c0_1 = arith.constant 0 : index
    %1 = vector.load %arg1[%c1, %c0_1] : memref<2x256xi32, #tpu.memory_space<vmem>>, vector<1x256xi32>
    %c0_2 = arith.constant 0 : index
    %c0_3 = arith.constant 0 : index
    %c0_4 = arith.constant 0 : index
    %2 = vector.load %arg2[%c0_2, %c0_3, %c0_4] : memref<1x4x256xf32, #tpu.memory_space<vmem>>, vector<1x4x256xf32>
    %3 = vector.shape_cast %2 : vector<1x4x256xf32> to vector<4x256xf32>
    %c0_5 = arith.constant 0 : index
    %c0_6 = arith.constant 0 : index
    %c0_7 = arith.constant 0 : index
    %4 = vector.load %arg3[%c0_5, %c0_6, %c0_7] : memref<1x4x256xf32, #tpu.memory_space<vmem>>, vector<1x4x256xf32>
    %5 = vector.shape_cast %4 : vector<1x4x256xf32> to vector<4x256xf32>
    %c0_8 = arith.constant 0 : index
    %c0_9 = arith.constant 0 : index
    %6 = vector.load %arg4[%c0_8, %c0_9] : memref<16x4xf32, #tpu.memory_space<vmem>>, vector<16x4xf32>
    %c0_10 = arith.constant 0 : index
    %c0_11 = arith.constant 0 : index
    %7 = vector.load %arg5[%c0_10, %c0_11] : memref<16x4xf32, #tpu.memory_space<vmem>>, vector<16x4xf32>
    %cst = arith.constant 0.000000e+00 : f32
    %8 = vector.broadcast %cst : f32 to vector<16x256xf32>
    %9 = vector.extract_strided_slice %6 {offsets = [0, 0], sizes = [16, 1], strides = [1, 1]} : vector<16x4xf32> to vector<16x1xf32>
    %10 = vector.extract_strided_slice %3 {offsets = [0, 0], sizes = [1, 256], strides = [1, 1]} : vector<4x256xf32> to vector<1x256xf32>
    %11 = vector.broadcast %9 : vector<16x1xf32> to vector<16x256xf32>
    %12 = vector.broadcast %10 : vector<1x256xf32> to vector<16x256xf32>
    %13 = arith.mulf %11, %12 : vector<16x256xf32>
    %14 = arith.addf %8, %13 : vector<16x256xf32>
    %15 = vector.extract_strided_slice %6 {offsets = [0, 1], sizes = [16, 1], strides = [1, 1]} : vector<16x4xf32> to vector<16x1xf32>
    %16 = vector.extract_strided_slice %3 {offsets = [1, 0], sizes = [1, 256], strides = [1, 1]} : vector<4x256xf32> to vector<1x256xf32>
    %17 = vector.broadcast %15 : vector<16x1xf32> to vector<16x256xf32>
    %18 = vector.broadcast %16 : vector<1x256xf32> to vector<16x256xf32>
    %19 = arith.mulf %17, %18 : vector<16x256xf32>
    %20 = arith.addf %14, %19 : vector<16x256xf32>
    %21 = vector.extract_strided_slice %6 {offsets = [0, 2], sizes = [16, 1], strides = [1, 1]} : vector<16x4xf32> to vector<16x1xf32>
    %22 = vector.extract_strided_slice %3 {offsets = [2, 0], sizes = [1, 256], strides = [1, 1]} : vector<4x256xf32> to vector<1x256xf32>
    %23 = vector.broadcast %21 : vector<16x1xf32> to vector<16x256xf32>
    %24 = vector.broadcast %22 : vector<1x256xf32> to vector<16x256xf32>
    %25 = arith.mulf %23, %24 : vector<16x256xf32>
    %26 = arith.addf %20, %25 : vector<16x256xf32>
    %27 = vector.extract_strided_slice %6 {offsets = [0, 3], sizes = [16, 1], strides = [1, 1]} : vector<16x4xf32> to vector<16x1xf32>
    %28 = vector.extract_strided_slice %3 {offsets = [3, 0], sizes = [1, 256], strides = [1, 1]} : vector<4x256xf32> to vector<1x256xf32>
    %29 = vector.broadcast %27 : vector<16x1xf32> to vector<16x256xf32>
    %30 = vector.broadcast %28 : vector<1x256xf32> to vector<16x256xf32>
    %31 = arith.mulf %29, %30 : vector<16x256xf32>
    %32 = arith.addf %26, %31 : vector<16x256xf32>
    %33 = vector.extract_strided_slice %7 {offsets = [0, 0], sizes = [16, 1], strides = [1, 1]} : vector<16x4xf32> to vector<16x1xf32>
    %34 = vector.extract_strided_slice %5 {offsets = [0, 0], sizes = [1, 256], strides = [1, 1]} : vector<4x256xf32> to vector<1x256xf32>
    %35 = vector.broadcast %33 : vector<16x1xf32> to vector<16x256xf32>
    %36 = vector.broadcast %34 : vector<1x256xf32> to vector<16x256xf32>
    %37 = arith.mulf %35, %36 : vector<16x256xf32>
    %38 = arith.addf %32, %37 : vector<16x256xf32>
    %39 = vector.extract_strided_slice %7 {offsets = [0, 1], sizes = [16, 1], strides = [1, 1]} : vector<16x4xf32> to vector<16x1xf32>
    %40 = vector.extract_strided_slice %5 {offsets = [1, 0], sizes = [1, 256], strides = [1, 1]} : vector<4x256xf32> to vector<1x256xf32>
    %41 = vector.broadcast %39 : vector<16x1xf32> to vector<16x256xf32>
    %42 = vector.broadcast %40 : vector<1x256xf32> to vector<16x256xf32>
    %43 = arith.mulf %41, %42 : vector<16x256xf32>
    %44 = arith.addf %38, %43 : vector<16x256xf32>
    %45 = vector.extract_strided_slice %7 {offsets = [0, 2], sizes = [16, 1], strides = [1, 1]} : vector<16x4xf32> to vector<16x1xf32>
    %46 = vector.extract_strided_slice %5 {offsets = [2, 0], sizes = [1, 256], strides = [1, 1]} : vector<4x256xf32> to vector<1x256xf32>
    %47 = vector.broadcast %45 : vector<16x1xf32> to vector<16x256xf32>
    %48 = vector.broadcast %46 : vector<1x256xf32> to vector<16x256xf32>
    %49 = arith.mulf %47, %48 : vector<16x256xf32>
    %50 = arith.addf %44, %49 : vector<16x256xf32>
    %51 = vector.extract_strided_slice %7 {offsets = [0, 3], sizes = [16, 1], strides = [1, 1]} : vector<16x4xf32> to vector<16x1xf32>
    %52 = vector.extract_strided_slice %5 {offsets = [3, 0], sizes = [1, 256], strides = [1, 1]} : vector<4x256xf32> to vector<1x256xf32>
    %53 = vector.broadcast %51 : vector<16x1xf32> to vector<16x256xf32>
    %54 = vector.broadcast %52 : vector<1x256xf32> to vector<16x256xf32>
    %55 = arith.mulf %53, %54 : vector<16x256xf32>
    %56 = arith.addf %50, %55 : vector<16x256xf32>
    %c0_12 = arith.constant 0 : index
    %c0_13 = arith.constant 0 : index
    %57 = vector.load %arg6[%c0_12, %c0_13] : memref<16x1xf32, #tpu.memory_space<vmem>>, vector<16x1xf32>
    %58 = vector.broadcast %57 : vector<16x1xf32> to vector<16x256xf32>
    %59 = arith.addf %56, %58 : vector<16x256xf32>
    %60 = arith.mulf %59, %59 : vector<16x256xf32>
    %61 = arith.mulf %59, %60 : vector<16x256xf32>
    %cst_14 = arith.constant 4.471500e-02 : f32
    %62 = vector.broadcast %cst_14 : f32 to vector<16x256xf32>
    %63 = arith.mulf %62, %61 : vector<16x256xf32>
    %64 = arith.addf %59, %63 : vector<16x256xf32>
    %cst_15 = arith.constant 0.797884583 : f32
    %65 = vector.broadcast %cst_15 : f32 to vector<16x256xf32>
    %66 = arith.mulf %65, %64 : vector<16x256xf32>
    %67 = math.tanh %66 : vector<16x256xf32>
    %cst_16 = arith.constant 1.000000e+00 : f32
    %68 = vector.broadcast %cst_16 : f32 to vector<16x256xf32>
    %69 = arith.addf %68, %67 : vector<16x256xf32>
    %cst_17 = arith.constant 5.000000e-01 : f32
    %70 = vector.broadcast %cst_17 : f32 to vector<16x256xf32>
    %71 = arith.mulf %70, %69 : vector<16x256xf32>
    %72 = arith.mulf %59, %71 : vector<16x256xf32>
    %c0_18 = arith.constant 0 : index
    %c0_19 = arith.constant 0 : index
    %73 = vector.load %arg11[%c0_18, %c0_19] : memref<8x16xf32, #tpu.memory_space<vmem>>, vector<8x16xf32>
    %cst_20 = arith.constant 0.000000e+00 : f32
    %74 = vector.broadcast %cst_20 : f32 to vector<8x256xf32>
    %c0_21 = arith.constant 0 : index
    %c0_22 = arith.constant 0 : index
    %75 = vector.load %arg7[%c0_21, %c0_22] : memref<4x1xf32, #tpu.memory_space<vmem>>, vector<4x1xf32>
    %76 = vector.extract_strided_slice %72 {offsets = [0, 0], sizes = [4, 256], strides = [1, 1]} : vector<16x256xf32> to vector<4x256xf32>
    %cst_23 = arith.constant 0.000000e+00 : f32
    %77 = vector.broadcast %cst_23 : f32 to vector<4x256xf32>
    %78 = vector.broadcast %75 : vector<4x1xf32> to vector<4x256xf32>
    %79 = arith.mulf %76, %78 : vector<4x256xf32>
    %80 = arith.addf %77, %79 : vector<4x256xf32>
    %81 = arith.mulf %80, %80 : vector<4x256xf32>
    %82 = arith.mulf %80, %81 : vector<4x256xf32>
    %cst_24 = arith.constant 4.471500e-02 : f32
    %83 = vector.broadcast %cst_24 : f32 to vector<4x256xf32>
    %84 = arith.mulf %83, %82 : vector<4x256xf32>
    %85 = arith.addf %80, %84 : vector<4x256xf32>
    %cst_25 = arith.constant 0.797884583 : f32
    %86 = vector.broadcast %cst_25 : f32 to vector<4x256xf32>
    %87 = arith.mulf %86, %85 : vector<4x256xf32>
    %88 = math.tanh %87 : vector<4x256xf32>
    %cst_26 = arith.constant 1.000000e+00 : f32
    %89 = vector.broadcast %cst_26 : f32 to vector<4x256xf32>
    %90 = arith.addf %89, %88 : vector<4x256xf32>
    %cst_27 = arith.constant 5.000000e-01 : f32
    %91 = vector.broadcast %cst_27 : f32 to vector<4x256xf32>
    %92 = arith.mulf %91, %90 : vector<4x256xf32>
    %93 = arith.mulf %80, %92 : vector<4x256xf32>
    %94 = vector.extract_strided_slice %73 {offsets = [0, 0], sizes = [8, 1], strides = [1, 1]} : vector<8x16xf32> to vector<8x1xf32>
    %95 = vector.extract_strided_slice %93 {offsets = [0, 0], sizes = [1, 256], strides = [1, 1]} : vector<4x256xf32> to vector<1x256xf32>
    %96 = vector.broadcast %94 : vector<8x1xf32> to vector<8x256xf32>
    %97 = vector.broadcast %95 : vector<1x256xf32> to vector<8x256xf32>
    %98 = arith.mulf %96, %97 : vector<8x256xf32>
    %99 = arith.addf %74, %98 : vector<8x256xf32>
    %100 = vector.extract_strided_slice %73 {offsets = [0, 1], sizes = [8, 1], strides = [1, 1]} : vector<8x16xf32> to vector<8x1xf32>
    %101 = vector.extract_strided_slice %93 {offsets = [1, 0], sizes = [1, 256], strides = [1, 1]} : vector<4x256xf32> to vector<1x256xf32>
    %102 = vector.broadcast %100 : vector<8x1xf32> to vector<8x256xf32>
    %103 = vector.broadcast %101 : vector<1x256xf32> to vector<8x256xf32>
    %104 = arith.mulf %102, %103 : vector<8x256xf32>
    %105 = arith.addf %99, %104 : vector<8x256xf32>
    %106 = vector.extract_strided_slice %73 {offsets = [0, 2], sizes = [8, 1], strides = [1, 1]} : vector<8x16xf32> to vector<8x1xf32>
    %107 = vector.extract_strided_slice %93 {offsets = [2, 0], sizes = [1, 256], strides = [1, 1]} : vector<4x256xf32> to vector<1x256xf32>
    %108 = vector.broadcast %106 : vector<8x1xf32> to vector<8x256xf32>
    %109 = vector.broadcast %107 : vector<1x256xf32> to vector<8x256xf32>
    %110 = arith.mulf %108, %109 : vector<8x256xf32>
    %111 = arith.addf %105, %110 : vector<8x256xf32>
    %112 = vector.extract_strided_slice %73 {offsets = [0, 3], sizes = [8, 1], strides = [1, 1]} : vector<8x16xf32> to vector<8x1xf32>
    %113 = vector.extract_strided_slice %93 {offsets = [3, 0], sizes = [1, 256], strides = [1, 1]} : vector<4x256xf32> to vector<1x256xf32>
    %114 = vector.broadcast %112 : vector<8x1xf32> to vector<8x256xf32>
    %115 = vector.broadcast %113 : vector<1x256xf32> to vector<8x256xf32>
    %116 = arith.mulf %114, %115 : vector<8x256xf32>
    %117 = arith.addf %111, %116 : vector<8x256xf32>
    %c0_28 = arith.constant 0 : index
    %c0_29 = arith.constant 0 : index
    %118 = vector.load %arg8[%c0_28, %c0_29] : memref<4x9xf32, #tpu.memory_space<vmem>>, vector<4x9xf32>
    %119 = vector.extract_strided_slice %72 {offsets = [4, 0], sizes = [4, 256], strides = [1, 1]} : vector<16x256xf32> to vector<4x256xf32>
    %cst_30 = arith.constant 0.000000e+00 : f32
    %120 = vector.broadcast %cst_30 : f32 to vector<4x256xf32>
    %c17_i32 = arith.constant 17 : i32
    %121 = tpu.dynamic_rotate %119 by %c17_i32 dim 1 : vector<4x256xf32>, i32 -> vector<4x256xf32>
    %c1_i32 = arith.constant 1 : i32
    %122 = vector.broadcast %c1_i32 : i32 to vector<1x256xi32>
    %123 = arith.cmpi sge, %0, %122 : vector<1x256xi32>
    %c17_i32_31 = arith.constant 17 : i32
    %124 = vector.broadcast %c17_i32_31 : i32 to vector<1x256xi32>
    %125 = arith.cmpi slt, %0, %124 : vector<1x256xi32>
    %126 = arith.andi %123, %125 : vector<1x256xi1>
    %c1_i32_32 = arith.constant 1 : i32
    %127 = vector.broadcast %c1_i32_32 : i32 to vector<1x256xi32>
    %128 = arith.cmpi sge, %1, %127 : vector<1x256xi32>
    %c17_i32_33 = arith.constant 17 : i32
    %129 = vector.broadcast %c17_i32_33 : i32 to vector<1x256xi32>
    %130 = arith.cmpi slt, %1, %129 : vector<1x256xi32>
    %131 = arith.andi %128, %130 : vector<1x256xi1>
    %132 = arith.andi %126, %131 : vector<1x256xi1>
    %133 = arith.extui %132 : vector<1x256xi1> to vector<1x256xi32>
    %134 = arith.sitofp %133 : vector<1x256xi32> to vector<1x256xf32>
    %135 = vector.broadcast %134 : vector<1x256xf32> to vector<4x256xf32>
    %136 = arith.mulf %121, %135 : vector<4x256xf32>
    %137 = vector.extract_strided_slice %118 {offsets = [0, 0], sizes = [4, 1], strides = [1, 1]} : vector<4x9xf32> to vector<4x1xf32>
    %138 = vector.broadcast %137 : vector<4x1xf32> to vector<4x256xf32>
    %139 = arith.mulf %136, %138 : vector<4x256xf32>
    %140 = arith.addf %120, %139 : vector<4x256xf32>
    %c16_i32 = arith.constant 16 : i32
    %141 = tpu.dynamic_rotate %119 by %c16_i32 dim 1 : vector<4x256xf32>, i32 -> vector<4x256xf32>
    %c1_i32_34 = arith.constant 1 : i32
    %142 = vector.broadcast %c1_i32_34 : i32 to vector<1x256xi32>
    %143 = arith.cmpi sge, %0, %142 : vector<1x256xi32>
    %c17_i32_35 = arith.constant 17 : i32
    %144 = vector.broadcast %c17_i32_35 : i32 to vector<1x256xi32>
    %145 = arith.cmpi slt, %0, %144 : vector<1x256xi32>
    %146 = arith.andi %143, %145 : vector<1x256xi1>
    %147 = arith.extui %146 : vector<1x256xi1> to vector<1x256xi32>
    %148 = arith.sitofp %147 : vector<1x256xi32> to vector<1x256xf32>
    %149 = vector.broadcast %148 : vector<1x256xf32> to vector<4x256xf32>
    %150 = arith.mulf %141, %149 : vector<4x256xf32>
    %151 = vector.extract_strided_slice %118 {offsets = [0, 1], sizes = [4, 1], strides = [1, 1]} : vector<4x9xf32> to vector<4x1xf32>
    %152 = vector.broadcast %151 : vector<4x1xf32> to vector<4x256xf32>
    %153 = arith.mulf %150, %152 : vector<4x256xf32>
    %154 = arith.addf %140, %153 : vector<4x256xf32>
    %c15_i32 = arith.constant 15 : i32
    %155 = tpu.dynamic_rotate %119 by %c15_i32 dim 1 : vector<4x256xf32>, i32 -> vector<4x256xf32>
    %c1_i32_36 = arith.constant 1 : i32
    %156 = vector.broadcast %c1_i32_36 : i32 to vector<1x256xi32>
    %157 = arith.cmpi sge, %0, %156 : vector<1x256xi32>
    %c17_i32_37 = arith.constant 17 : i32
    %158 = vector.broadcast %c17_i32_37 : i32 to vector<1x256xi32>
    %159 = arith.cmpi slt, %0, %158 : vector<1x256xi32>
    %160 = arith.andi %157, %159 : vector<1x256xi1>
    %c-1_i32 = arith.constant -1 : i32
    %161 = vector.broadcast %c-1_i32 : i32 to vector<1x256xi32>
    %162 = arith.cmpi sge, %1, %161 : vector<1x256xi32>
    %c15_i32_38 = arith.constant 15 : i32
    %163 = vector.broadcast %c15_i32_38 : i32 to vector<1x256xi32>
    %164 = arith.cmpi slt, %1, %163 : vector<1x256xi32>
    %165 = arith.andi %162, %164 : vector<1x256xi1>
    %166 = arith.andi %160, %165 : vector<1x256xi1>
    %167 = arith.extui %166 : vector<1x256xi1> to vector<1x256xi32>
    %168 = arith.sitofp %167 : vector<1x256xi32> to vector<1x256xf32>
    %169 = vector.broadcast %168 : vector<1x256xf32> to vector<4x256xf32>
    %170 = arith.mulf %155, %169 : vector<4x256xf32>
    %171 = vector.extract_strided_slice %118 {offsets = [0, 2], sizes = [4, 1], strides = [1, 1]} : vector<4x9xf32> to vector<4x1xf32>
    %172 = vector.broadcast %171 : vector<4x1xf32> to vector<4x256xf32>
    %173 = arith.mulf %170, %172 : vector<4x256xf32>
    %174 = arith.addf %154, %173 : vector<4x256xf32>
    %c1_i32_39 = arith.constant 1 : i32
    %175 = tpu.dynamic_rotate %119 by %c1_i32_39 dim 1 : vector<4x256xf32>, i32 -> vector<4x256xf32>
    %c1_i32_40 = arith.constant 1 : i32
    %176 = vector.broadcast %c1_i32_40 : i32 to vector<1x256xi32>
    %177 = arith.cmpi sge, %1, %176 : vector<1x256xi32>
    %c17_i32_41 = arith.constant 17 : i32
    %178 = vector.broadcast %c17_i32_41 : i32 to vector<1x256xi32>
    %179 = arith.cmpi slt, %1, %178 : vector<1x256xi32>
    %180 = arith.andi %177, %179 : vector<1x256xi1>
    %181 = arith.extui %180 : vector<1x256xi1> to vector<1x256xi32>
    %182 = arith.sitofp %181 : vector<1x256xi32> to vector<1x256xf32>
    %183 = vector.broadcast %182 : vector<1x256xf32> to vector<4x256xf32>
    %184 = arith.mulf %175, %183 : vector<4x256xf32>
    %185 = vector.extract_strided_slice %118 {offsets = [0, 3], sizes = [4, 1], strides = [1, 1]} : vector<4x9xf32> to vector<4x1xf32>
    %186 = vector.broadcast %185 : vector<4x1xf32> to vector<4x256xf32>
    %187 = arith.mulf %184, %186 : vector<4x256xf32>
    %188 = arith.addf %174, %187 : vector<4x256xf32>
    %189 = vector.extract_strided_slice %118 {offsets = [0, 4], sizes = [4, 1], strides = [1, 1]} : vector<4x9xf32> to vector<4x1xf32>
    %190 = vector.broadcast %189 : vector<4x1xf32> to vector<4x256xf32>
    %191 = arith.mulf %119, %190 : vector<4x256xf32>
    %192 = arith.addf %188, %191 : vector<4x256xf32>
    %c255_i32 = arith.constant 255 : i32
    %193 = tpu.dynamic_rotate %119 by %c255_i32 dim 1 : vector<4x256xf32>, i32 -> vector<4x256xf32>
    %c-1_i32_42 = arith.constant -1 : i32
    %194 = vector.broadcast %c-1_i32_42 : i32 to vector<1x256xi32>
    %195 = arith.cmpi sge, %1, %194 : vector<1x256xi32>
    %c15_i32_43 = arith.constant 15 : i32
    %196 = vector.broadcast %c15_i32_43 : i32 to vector<1x256xi32>
    %197 = arith.cmpi slt, %1, %196 : vector<1x256xi32>
    %198 = arith.andi %195, %197 : vector<1x256xi1>
    %199 = arith.extui %198 : vector<1x256xi1> to vector<1x256xi32>
    %200 = arith.sitofp %199 : vector<1x256xi32> to vector<1x256xf32>
    %201 = vector.broadcast %200 : vector<1x256xf32> to vector<4x256xf32>
    %202 = arith.mulf %193, %201 : vector<4x256xf32>
    %203 = vector.extract_strided_slice %118 {offsets = [0, 5], sizes = [4, 1], strides = [1, 1]} : vector<4x9xf32> to vector<4x1xf32>
    %204 = vector.broadcast %203 : vector<4x1xf32> to vector<4x256xf32>
    %205 = arith.mulf %202, %204 : vector<4x256xf32>
    %206 = arith.addf %192, %205 : vector<4x256xf32>
    %c241_i32 = arith.constant 241 : i32
    %207 = tpu.dynamic_rotate %119 by %c241_i32 dim 1 : vector<4x256xf32>, i32 -> vector<4x256xf32>
    %c-1_i32_44 = arith.constant -1 : i32
    %208 = vector.broadcast %c-1_i32_44 : i32 to vector<1x256xi32>
    %209 = arith.cmpi sge, %0, %208 : vector<1x256xi32>
    %c15_i32_45 = arith.constant 15 : i32
    %210 = vector.broadcast %c15_i32_45 : i32 to vector<1x256xi32>
    %211 = arith.cmpi slt, %0, %210 : vector<1x256xi32>
    %212 = arith.andi %209, %211 : vector<1x256xi1>
    %c1_i32_46 = arith.constant 1 : i32
    %213 = vector.broadcast %c1_i32_46 : i32 to vector<1x256xi32>
    %214 = arith.cmpi sge, %1, %213 : vector<1x256xi32>
    %c17_i32_47 = arith.constant 17 : i32
    %215 = vector.broadcast %c17_i32_47 : i32 to vector<1x256xi32>
    %216 = arith.cmpi slt, %1, %215 : vector<1x256xi32>
    %217 = arith.andi %214, %216 : vector<1x256xi1>
    %218 = arith.andi %212, %217 : vector<1x256xi1>
    %219 = arith.extui %218 : vector<1x256xi1> to vector<1x256xi32>
    %220 = arith.sitofp %219 : vector<1x256xi32> to vector<1x256xf32>
    %221 = vector.broadcast %220 : vector<1x256xf32> to vector<4x256xf32>
    %222 = arith.mulf %207, %221 : vector<4x256xf32>
    %223 = vector.extract_strided_slice %118 {offsets = [0, 6], sizes = [4, 1], strides = [1, 1]} : vector<4x9xf32> to vector<4x1xf32>
    %224 = vector.broadcast %223 : vector<4x1xf32> to vector<4x256xf32>
    %225 = arith.mulf %222, %224 : vector<4x256xf32>
    %226 = arith.addf %206, %225 : vector<4x256xf32>
    %c240_i32 = arith.constant 240 : i32
    %227 = tpu.dynamic_rotate %119 by %c240_i32 dim 1 : vector<4x256xf32>, i32 -> vector<4x256xf32>
    %c-1_i32_48 = arith.constant -1 : i32
    %228 = vector.broadcast %c-1_i32_48 : i32 to vector<1x256xi32>
    %229 = arith.cmpi sge, %0, %228 : vector<1x256xi32>
    %c15_i32_49 = arith.constant 15 : i32
    %230 = vector.broadcast %c15_i32_49 : i32 to vector<1x256xi32>
    %231 = arith.cmpi slt, %0, %230 : vector<1x256xi32>
    %232 = arith.andi %229, %231 : vector<1x256xi1>
    %233 = arith.extui %232 : vector<1x256xi1> to vector<1x256xi32>
    %234 = arith.sitofp %233 : vector<1x256xi32> to vector<1x256xf32>
    %235 = vector.broadcast %234 : vector<1x256xf32> to vector<4x256xf32>
    %236 = arith.mulf %227, %235 : vector<4x256xf32>
    %237 = vector.extract_strided_slice %118 {offsets = [0, 7], sizes = [4, 1], strides = [1, 1]} : vector<4x9xf32> to vector<4x1xf32>
    %238 = vector.broadcast %237 : vector<4x1xf32> to vector<4x256xf32>
    %239 = arith.mulf %236, %238 : vector<4x256xf32>
    %240 = arith.addf %226, %239 : vector<4x256xf32>
    %c239_i32 = arith.constant 239 : i32
    %241 = tpu.dynamic_rotate %119 by %c239_i32 dim 1 : vector<4x256xf32>, i32 -> vector<4x256xf32>
    %c-1_i32_50 = arith.constant -1 : i32
    %242 = vector.broadcast %c-1_i32_50 : i32 to vector<1x256xi32>
    %243 = arith.cmpi sge, %0, %242 : vector<1x256xi32>
    %c15_i32_51 = arith.constant 15 : i32
    %244 = vector.broadcast %c15_i32_51 : i32 to vector<1x256xi32>
    %245 = arith.cmpi slt, %0, %244 : vector<1x256xi32>
    %246 = arith.andi %243, %245 : vector<1x256xi1>
    %c-1_i32_52 = arith.constant -1 : i32
    %247 = vector.broadcast %c-1_i32_52 : i32 to vector<1x256xi32>
    %248 = arith.cmpi sge, %1, %247 : vector<1x256xi32>
    %c15_i32_53 = arith.constant 15 : i32
    %249 = vector.broadcast %c15_i32_53 : i32 to vector<1x256xi32>
    %250 = arith.cmpi slt, %1, %249 : vector<1x256xi32>
    %251 = arith.andi %248, %250 : vector<1x256xi1>
    %252 = arith.andi %246, %251 : vector<1x256xi1>
    %253 = arith.extui %252 : vector<1x256xi1> to vector<1x256xi32>
    %254 = arith.sitofp %253 : vector<1x256xi32> to vector<1x256xf32>
    %255 = vector.broadcast %254 : vector<1x256xf32> to vector<4x256xf32>
    %256 = arith.mulf %241, %255 : vector<4x256xf32>
    %257 = vector.extract_strided_slice %118 {offsets = [0, 8], sizes = [4, 1], strides = [1, 1]} : vector<4x9xf32> to vector<4x1xf32>
    %258 = vector.broadcast %257 : vector<4x1xf32> to vector<4x256xf32>
    %259 = arith.mulf %256, %258 : vector<4x256xf32>
    %260 = arith.addf %240, %259 : vector<4x256xf32>
    %261 = arith.mulf %260, %260 : vector<4x256xf32>
    %262 = arith.mulf %260, %261 : vector<4x256xf32>
    %cst_54 = arith.constant 4.471500e-02 : f32
    %263 = vector.broadcast %cst_54 : f32 to vector<4x256xf32>
    %264 = arith.mulf %263, %262 : vector<4x256xf32>
    %265 = arith.addf %260, %264 : vector<4x256xf32>
    %cst_55 = arith.constant 0.797884583 : f32
    %266 = vector.broadcast %cst_55 : f32 to vector<4x256xf32>
    %267 = arith.mulf %266, %265 : vector<4x256xf32>
    %268 = math.tanh %267 : vector<4x256xf32>
    %cst_56 = arith.constant 1.000000e+00 : f32
    %269 = vector.broadcast %cst_56 : f32 to vector<4x256xf32>
    %270 = arith.addf %269, %268 : vector<4x256xf32>
    %cst_57 = arith.constant 5.000000e-01 : f32
    %271 = vector.broadcast %cst_57 : f32 to vector<4x256xf32>
    %272 = arith.mulf %271, %270 : vector<4x256xf32>
    %273 = arith.mulf %260, %272 : vector<4x256xf32>
    %274 = vector.extract_strided_slice %73 {offsets = [0, 4], sizes = [8, 1], strides = [1, 1]} : vector<8x16xf32> to vector<8x1xf32>
    %275 = vector.extract_strided_slice %273 {offsets = [0, 0], sizes = [1, 256], strides = [1, 1]} : vector<4x256xf32> to vector<1x256xf32>
    %276 = vector.broadcast %274 : vector<8x1xf32> to vector<8x256xf32>
    %277 = vector.broadcast %275 : vector<1x256xf32> to vector<8x256xf32>
    %278 = arith.mulf %276, %277 : vector<8x256xf32>
    %279 = arith.addf %117, %278 : vector<8x256xf32>
    %280 = vector.extract_strided_slice %73 {offsets = [0, 5], sizes = [8, 1], strides = [1, 1]} : vector<8x16xf32> to vector<8x1xf32>
    %281 = vector.extract_strided_slice %273 {offsets = [1, 0], sizes = [1, 256], strides = [1, 1]} : vector<4x256xf32> to vector<1x256xf32>
    %282 = vector.broadcast %280 : vector<8x1xf32> to vector<8x256xf32>
    %283 = vector.broadcast %281 : vector<1x256xf32> to vector<8x256xf32>
    %284 = arith.mulf %282, %283 : vector<8x256xf32>
    %285 = arith.addf %279, %284 : vector<8x256xf32>
    %286 = vector.extract_strided_slice %73 {offsets = [0, 6], sizes = [8, 1], strides = [1, 1]} : vector<8x16xf32> to vector<8x1xf32>
    %287 = vector.extract_strided_slice %273 {offsets = [2, 0], sizes = [1, 256], strides = [1, 1]} : vector<4x256xf32> to vector<1x256xf32>
    %288 = vector.broadcast %286 : vector<8x1xf32> to vector<8x256xf32>
    %289 = vector.broadcast %287 : vector<1x256xf32> to vector<8x256xf32>
    %290 = arith.mulf %288, %289 : vector<8x256xf32>
    %291 = arith.addf %285, %290 : vector<8x256xf32>
    %292 = vector.extract_strided_slice %73 {offsets = [0, 7], sizes = [8, 1], strides = [1, 1]} : vector<8x16xf32> to vector<8x1xf32>
    %293 = vector.extract_strided_slice %273 {offsets = [3, 0], sizes = [1, 256], strides = [1, 1]} : vector<4x256xf32> to vector<1x256xf32>
    %294 = vector.broadcast %292 : vector<8x1xf32> to vector<8x256xf32>
    %295 = vector.broadcast %293 : vector<1x256xf32> to vector<8x256xf32>
    %296 = arith.mulf %294, %295 : vector<8x256xf32>
    %297 = arith.addf %291, %296 : vector<8x256xf32>
    %c0_58 = arith.constant 0 : index
    %c0_59 = arith.constant 0 : index
    %298 = vector.load %arg9[%c0_58, %c0_59] : memref<4x25xf32, #tpu.memory_space<vmem>>, vector<4x25xf32>
    %299 = vector.extract_strided_slice %72 {offsets = [8, 0], sizes = [4, 256], strides = [1, 1]} : vector<16x256xf32> to vector<4x256xf32>
    %cst_60 = arith.constant 0.000000e+00 : f32
    %300 = vector.broadcast %cst_60 : f32 to vector<4x256xf32>
    %c34_i32 = arith.constant 34 : i32
    %301 = tpu.dynamic_rotate %299 by %c34_i32 dim 1 : vector<4x256xf32>, i32 -> vector<4x256xf32>
    %c2_i32 = arith.constant 2 : i32
    %302 = vector.broadcast %c2_i32 : i32 to vector<1x256xi32>
    %303 = arith.cmpi sge, %0, %302 : vector<1x256xi32>
    %c18_i32 = arith.constant 18 : i32
    %304 = vector.broadcast %c18_i32 : i32 to vector<1x256xi32>
    %305 = arith.cmpi slt, %0, %304 : vector<1x256xi32>
    %306 = arith.andi %303, %305 : vector<1x256xi1>
    %c2_i32_61 = arith.constant 2 : i32
    %307 = vector.broadcast %c2_i32_61 : i32 to vector<1x256xi32>
    %308 = arith.cmpi sge, %1, %307 : vector<1x256xi32>
    %c18_i32_62 = arith.constant 18 : i32
    %309 = vector.broadcast %c18_i32_62 : i32 to vector<1x256xi32>
    %310 = arith.cmpi slt, %1, %309 : vector<1x256xi32>
    %311 = arith.andi %308, %310 : vector<1x256xi1>
    %312 = arith.andi %306, %311 : vector<1x256xi1>
    %313 = arith.extui %312 : vector<1x256xi1> to vector<1x256xi32>
    %314 = arith.sitofp %313 : vector<1x256xi32> to vector<1x256xf32>
    %315 = vector.broadcast %314 : vector<1x256xf32> to vector<4x256xf32>
    %316 = arith.mulf %301, %315 : vector<4x256xf32>
    %317 = vector.extract_strided_slice %298 {offsets = [0, 0], sizes = [4, 1], strides = [1, 1]} : vector<4x25xf32> to vector<4x1xf32>
    %318 = vector.broadcast %317 : vector<4x1xf32> to vector<4x256xf32>
    %319 = arith.mulf %316, %318 : vector<4x256xf32>
    %320 = arith.addf %300, %319 : vector<4x256xf32>
    %c33_i32 = arith.constant 33 : i32
    %321 = tpu.dynamic_rotate %299 by %c33_i32 dim 1 : vector<4x256xf32>, i32 -> vector<4x256xf32>
    %c2_i32_63 = arith.constant 2 : i32
    %322 = vector.broadcast %c2_i32_63 : i32 to vector<1x256xi32>
    %323 = arith.cmpi sge, %0, %322 : vector<1x256xi32>
    %c18_i32_64 = arith.constant 18 : i32
    %324 = vector.broadcast %c18_i32_64 : i32 to vector<1x256xi32>
    %325 = arith.cmpi slt, %0, %324 : vector<1x256xi32>
    %326 = arith.andi %323, %325 : vector<1x256xi1>
    %c1_i32_65 = arith.constant 1 : i32
    %327 = vector.broadcast %c1_i32_65 : i32 to vector<1x256xi32>
    %328 = arith.cmpi sge, %1, %327 : vector<1x256xi32>
    %c17_i32_66 = arith.constant 17 : i32
    %329 = vector.broadcast %c17_i32_66 : i32 to vector<1x256xi32>
    %330 = arith.cmpi slt, %1, %329 : vector<1x256xi32>
    %331 = arith.andi %328, %330 : vector<1x256xi1>
    %332 = arith.andi %326, %331 : vector<1x256xi1>
    %333 = arith.extui %332 : vector<1x256xi1> to vector<1x256xi32>
    %334 = arith.sitofp %333 : vector<1x256xi32> to vector<1x256xf32>
    %335 = vector.broadcast %334 : vector<1x256xf32> to vector<4x256xf32>
    %336 = arith.mulf %321, %335 : vector<4x256xf32>
    %337 = vector.extract_strided_slice %298 {offsets = [0, 1], sizes = [4, 1], strides = [1, 1]} : vector<4x25xf32> to vector<4x1xf32>
    %338 = vector.broadcast %337 : vector<4x1xf32> to vector<4x256xf32>
    %339 = arith.mulf %336, %338 : vector<4x256xf32>
    %340 = arith.addf %320, %339 : vector<4x256xf32>
    %c32_i32 = arith.constant 32 : i32
    %341 = tpu.dynamic_rotate %299 by %c32_i32 dim 1 : vector<4x256xf32>, i32 -> vector<4x256xf32>
    %c2_i32_67 = arith.constant 2 : i32
    %342 = vector.broadcast %c2_i32_67 : i32 to vector<1x256xi32>
    %343 = arith.cmpi sge, %0, %342 : vector<1x256xi32>
    %c18_i32_68 = arith.constant 18 : i32
    %344 = vector.broadcast %c18_i32_68 : i32 to vector<1x256xi32>
    %345 = arith.cmpi slt, %0, %344 : vector<1x256xi32>
    %346 = arith.andi %343, %345 : vector<1x256xi1>
    %347 = arith.extui %346 : vector<1x256xi1> to vector<1x256xi32>
    %348 = arith.sitofp %347 : vector<1x256xi32> to vector<1x256xf32>
    %349 = vector.broadcast %348 : vector<1x256xf32> to vector<4x256xf32>
    %350 = arith.mulf %341, %349 : vector<4x256xf32>
    %351 = vector.extract_strided_slice %298 {offsets = [0, 2], sizes = [4, 1], strides = [1, 1]} : vector<4x25xf32> to vector<4x1xf32>
    %352 = vector.broadcast %351 : vector<4x1xf32> to vector<4x256xf32>
    %353 = arith.mulf %350, %352 : vector<4x256xf32>
    %354 = arith.addf %340, %353 : vector<4x256xf32>
    %c31_i32 = arith.constant 31 : i32
    %355 = tpu.dynamic_rotate %299 by %c31_i32 dim 1 : vector<4x256xf32>, i32 -> vector<4x256xf32>
    %c2_i32_69 = arith.constant 2 : i32
    %356 = vector.broadcast %c2_i32_69 : i32 to vector<1x256xi32>
    %357 = arith.cmpi sge, %0, %356 : vector<1x256xi32>
    %c18_i32_70 = arith.constant 18 : i32
    %358 = vector.broadcast %c18_i32_70 : i32 to vector<1x256xi32>
    %359 = arith.cmpi slt, %0, %358 : vector<1x256xi32>
    %360 = arith.andi %357, %359 : vector<1x256xi1>
    %c-1_i32_71 = arith.constant -1 : i32
    %361 = vector.broadcast %c-1_i32_71 : i32 to vector<1x256xi32>
    %362 = arith.cmpi sge, %1, %361 : vector<1x256xi32>
    %c15_i32_72 = arith.constant 15 : i32
    %363 = vector.broadcast %c15_i32_72 : i32 to vector<1x256xi32>
    %364 = arith.cmpi slt, %1, %363 : vector<1x256xi32>
    %365 = arith.andi %362, %364 : vector<1x256xi1>
    %366 = arith.andi %360, %365 : vector<1x256xi1>
    %367 = arith.extui %366 : vector<1x256xi1> to vector<1x256xi32>
    %368 = arith.sitofp %367 : vector<1x256xi32> to vector<1x256xf32>
    %369 = vector.broadcast %368 : vector<1x256xf32> to vector<4x256xf32>
    %370 = arith.mulf %355, %369 : vector<4x256xf32>
    %371 = vector.extract_strided_slice %298 {offsets = [0, 3], sizes = [4, 1], strides = [1, 1]} : vector<4x25xf32> to vector<4x1xf32>
    %372 = vector.broadcast %371 : vector<4x1xf32> to vector<4x256xf32>
    %373 = arith.mulf %370, %372 : vector<4x256xf32>
    %374 = arith.addf %354, %373 : vector<4x256xf32>
    %c30_i32 = arith.constant 30 : i32
    %375 = tpu.dynamic_rotate %299 by %c30_i32 dim 1 : vector<4x256xf32>, i32 -> vector<4x256xf32>
    %c2_i32_73 = arith.constant 2 : i32
    %376 = vector.broadcast %c2_i32_73 : i32 to vector<1x256xi32>
    %377 = arith.cmpi sge, %0, %376 : vector<1x256xi32>
    %c18_i32_74 = arith.constant 18 : i32
    %378 = vector.broadcast %c18_i32_74 : i32 to vector<1x256xi32>
    %379 = arith.cmpi slt, %0, %378 : vector<1x256xi32>
    %380 = arith.andi %377, %379 : vector<1x256xi1>
    %c-2_i32 = arith.constant -2 : i32
    %381 = vector.broadcast %c-2_i32 : i32 to vector<1x256xi32>
    %382 = arith.cmpi sge, %1, %381 : vector<1x256xi32>
    %c14_i32 = arith.constant 14 : i32
    %383 = vector.broadcast %c14_i32 : i32 to vector<1x256xi32>
    %384 = arith.cmpi slt, %1, %383 : vector<1x256xi32>
    %385 = arith.andi %382, %384 : vector<1x256xi1>
    %386 = arith.andi %380, %385 : vector<1x256xi1>
    %387 = arith.extui %386 : vector<1x256xi1> to vector<1x256xi32>
    %388 = arith.sitofp %387 : vector<1x256xi32> to vector<1x256xf32>
    %389 = vector.broadcast %388 : vector<1x256xf32> to vector<4x256xf32>
    %390 = arith.mulf %375, %389 : vector<4x256xf32>
    %391 = vector.extract_strided_slice %298 {offsets = [0, 4], sizes = [4, 1], strides = [1, 1]} : vector<4x25xf32> to vector<4x1xf32>
    %392 = vector.broadcast %391 : vector<4x1xf32> to vector<4x256xf32>
    %393 = arith.mulf %390, %392 : vector<4x256xf32>
    %394 = arith.addf %374, %393 : vector<4x256xf32>
    %c18_i32_75 = arith.constant 18 : i32
    %395 = tpu.dynamic_rotate %299 by %c18_i32_75 dim 1 : vector<4x256xf32>, i32 -> vector<4x256xf32>
    %c1_i32_76 = arith.constant 1 : i32
    %396 = vector.broadcast %c1_i32_76 : i32 to vector<1x256xi32>
    %397 = arith.cmpi sge, %0, %396 : vector<1x256xi32>
    %c17_i32_77 = arith.constant 17 : i32
    %398 = vector.broadcast %c17_i32_77 : i32 to vector<1x256xi32>
    %399 = arith.cmpi slt, %0, %398 : vector<1x256xi32>
    %400 = arith.andi %397, %399 : vector<1x256xi1>
    %c2_i32_78 = arith.constant 2 : i32
    %401 = vector.broadcast %c2_i32_78 : i32 to vector<1x256xi32>
    %402 = arith.cmpi sge, %1, %401 : vector<1x256xi32>
    %c18_i32_79 = arith.constant 18 : i32
    %403 = vector.broadcast %c18_i32_79 : i32 to vector<1x256xi32>
    %404 = arith.cmpi slt, %1, %403 : vector<1x256xi32>
    %405 = arith.andi %402, %404 : vector<1x256xi1>
    %406 = arith.andi %400, %405 : vector<1x256xi1>
    %407 = arith.extui %406 : vector<1x256xi1> to vector<1x256xi32>
    %408 = arith.sitofp %407 : vector<1x256xi32> to vector<1x256xf32>
    %409 = vector.broadcast %408 : vector<1x256xf32> to vector<4x256xf32>
    %410 = arith.mulf %395, %409 : vector<4x256xf32>
    %411 = vector.extract_strided_slice %298 {offsets = [0, 5], sizes = [4, 1], strides = [1, 1]} : vector<4x25xf32> to vector<4x1xf32>
    %412 = vector.broadcast %411 : vector<4x1xf32> to vector<4x256xf32>
    %413 = arith.mulf %410, %412 : vector<4x256xf32>
    %414 = arith.addf %394, %413 : vector<4x256xf32>
    %c17_i32_80 = arith.constant 17 : i32
    %415 = tpu.dynamic_rotate %299 by %c17_i32_80 dim 1 : vector<4x256xf32>, i32 -> vector<4x256xf32>
    %416 = vector.broadcast %134 : vector<1x256xf32> to vector<4x256xf32>
    %417 = arith.mulf %415, %416 : vector<4x256xf32>
    %418 = vector.extract_strided_slice %298 {offsets = [0, 6], sizes = [4, 1], strides = [1, 1]} : vector<4x25xf32> to vector<4x1xf32>
    %419 = vector.broadcast %418 : vector<4x1xf32> to vector<4x256xf32>
    %420 = arith.mulf %417, %419 : vector<4x256xf32>
    %421 = arith.addf %414, %420 : vector<4x256xf32>
    %c16_i32_81 = arith.constant 16 : i32
    %422 = tpu.dynamic_rotate %299 by %c16_i32_81 dim 1 : vector<4x256xf32>, i32 -> vector<4x256xf32>
    %423 = vector.broadcast %148 : vector<1x256xf32> to vector<4x256xf32>
    %424 = arith.mulf %422, %423 : vector<4x256xf32>
    %425 = vector.extract_strided_slice %298 {offsets = [0, 7], sizes = [4, 1], strides = [1, 1]} : vector<4x25xf32> to vector<4x1xf32>
    %426 = vector.broadcast %425 : vector<4x1xf32> to vector<4x256xf32>
    %427 = arith.mulf %424, %426 : vector<4x256xf32>
    %428 = arith.addf %421, %427 : vector<4x256xf32>
    %c15_i32_82 = arith.constant 15 : i32
    %429 = tpu.dynamic_rotate %299 by %c15_i32_82 dim 1 : vector<4x256xf32>, i32 -> vector<4x256xf32>
    %430 = vector.broadcast %168 : vector<1x256xf32> to vector<4x256xf32>
    %431 = arith.mulf %429, %430 : vector<4x256xf32>
    %432 = vector.extract_strided_slice %298 {offsets = [0, 8], sizes = [4, 1], strides = [1, 1]} : vector<4x25xf32> to vector<4x1xf32>
    %433 = vector.broadcast %432 : vector<4x1xf32> to vector<4x256xf32>
    %434 = arith.mulf %431, %433 : vector<4x256xf32>
    %435 = arith.addf %428, %434 : vector<4x256xf32>
    %c14_i32_83 = arith.constant 14 : i32
    %436 = tpu.dynamic_rotate %299 by %c14_i32_83 dim 1 : vector<4x256xf32>, i32 -> vector<4x256xf32>
    %c1_i32_84 = arith.constant 1 : i32
    %437 = vector.broadcast %c1_i32_84 : i32 to vector<1x256xi32>
    %438 = arith.cmpi sge, %0, %437 : vector<1x256xi32>
    %c17_i32_85 = arith.constant 17 : i32
    %439 = vector.broadcast %c17_i32_85 : i32 to vector<1x256xi32>
    %440 = arith.cmpi slt, %0, %439 : vector<1x256xi32>
    %441 = arith.andi %438, %440 : vector<1x256xi1>
    %c-2_i32_86 = arith.constant -2 : i32
    %442 = vector.broadcast %c-2_i32_86 : i32 to vector<1x256xi32>
    %443 = arith.cmpi sge, %1, %442 : vector<1x256xi32>
    %c14_i32_87 = arith.constant 14 : i32
    %444 = vector.broadcast %c14_i32_87 : i32 to vector<1x256xi32>
    %445 = arith.cmpi slt, %1, %444 : vector<1x256xi32>
    %446 = arith.andi %443, %445 : vector<1x256xi1>
    %447 = arith.andi %441, %446 : vector<1x256xi1>
    %448 = arith.extui %447 : vector<1x256xi1> to vector<1x256xi32>
    %449 = arith.sitofp %448 : vector<1x256xi32> to vector<1x256xf32>
    %450 = vector.broadcast %449 : vector<1x256xf32> to vector<4x256xf32>
    %451 = arith.mulf %436, %450 : vector<4x256xf32>
    %452 = vector.extract_strided_slice %298 {offsets = [0, 9], sizes = [4, 1], strides = [1, 1]} : vector<4x25xf32> to vector<4x1xf32>
    %453 = vector.broadcast %452 : vector<4x1xf32> to vector<4x256xf32>
    %454 = arith.mulf %451, %453 : vector<4x256xf32>
    %455 = arith.addf %435, %454 : vector<4x256xf32>
    %c2_i32_88 = arith.constant 2 : i32
    %456 = tpu.dynamic_rotate %299 by %c2_i32_88 dim 1 : vector<4x256xf32>, i32 -> vector<4x256xf32>
    %c2_i32_89 = arith.constant 2 : i32
    %457 = vector.broadcast %c2_i32_89 : i32 to vector<1x256xi32>
    %458 = arith.cmpi sge, %1, %457 : vector<1x256xi32>
    %c18_i32_90 = arith.constant 18 : i32
    %459 = vector.broadcast %c18_i32_90 : i32 to vector<1x256xi32>
    %460 = arith.cmpi slt, %1, %459 : vector<1x256xi32>
    %461 = arith.andi %458, %460 : vector<1x256xi1>
    %462 = arith.extui %461 : vector<1x256xi1> to vector<1x256xi32>
    %463 = arith.sitofp %462 : vector<1x256xi32> to vector<1x256xf32>
    %464 = vector.broadcast %463 : vector<1x256xf32> to vector<4x256xf32>
    %465 = arith.mulf %456, %464 : vector<4x256xf32>
    %466 = vector.extract_strided_slice %298 {offsets = [0, 10], sizes = [4, 1], strides = [1, 1]} : vector<4x25xf32> to vector<4x1xf32>
    %467 = vector.broadcast %466 : vector<4x1xf32> to vector<4x256xf32>
    %468 = arith.mulf %465, %467 : vector<4x256xf32>
    %469 = arith.addf %455, %468 : vector<4x256xf32>
    %c1_i32_91 = arith.constant 1 : i32
    %470 = tpu.dynamic_rotate %299 by %c1_i32_91 dim 1 : vector<4x256xf32>, i32 -> vector<4x256xf32>
    %471 = vector.broadcast %182 : vector<1x256xf32> to vector<4x256xf32>
    %472 = arith.mulf %470, %471 : vector<4x256xf32>
    %473 = vector.extract_strided_slice %298 {offsets = [0, 11], sizes = [4, 1], strides = [1, 1]} : vector<4x25xf32> to vector<4x1xf32>
    %474 = vector.broadcast %473 : vector<4x1xf32> to vector<4x256xf32>
    %475 = arith.mulf %472, %474 : vector<4x256xf32>
    %476 = arith.addf %469, %475 : vector<4x256xf32>
    %477 = vector.extract_strided_slice %298 {offsets = [0, 12], sizes = [4, 1], strides = [1, 1]} : vector<4x25xf32> to vector<4x1xf32>
    %478 = vector.broadcast %477 : vector<4x1xf32> to vector<4x256xf32>
    %479 = arith.mulf %299, %478 : vector<4x256xf32>
    %480 = arith.addf %476, %479 : vector<4x256xf32>
    %c255_i32_92 = arith.constant 255 : i32
    %481 = tpu.dynamic_rotate %299 by %c255_i32_92 dim 1 : vector<4x256xf32>, i32 -> vector<4x256xf32>
    %482 = vector.broadcast %200 : vector<1x256xf32> to vector<4x256xf32>
    %483 = arith.mulf %481, %482 : vector<4x256xf32>
    %484 = vector.extract_strided_slice %298 {offsets = [0, 13], sizes = [4, 1], strides = [1, 1]} : vector<4x25xf32> to vector<4x1xf32>
    %485 = vector.broadcast %484 : vector<4x1xf32> to vector<4x256xf32>
    %486 = arith.mulf %483, %485 : vector<4x256xf32>
    %487 = arith.addf %480, %486 : vector<4x256xf32>
    %c254_i32 = arith.constant 254 : i32
    %488 = tpu.dynamic_rotate %299 by %c254_i32 dim 1 : vector<4x256xf32>, i32 -> vector<4x256xf32>
    %c-2_i32_93 = arith.constant -2 : i32
    %489 = vector.broadcast %c-2_i32_93 : i32 to vector<1x256xi32>
    %490 = arith.cmpi sge, %1, %489 : vector<1x256xi32>
    %c14_i32_94 = arith.constant 14 : i32
    %491 = vector.broadcast %c14_i32_94 : i32 to vector<1x256xi32>
    %492 = arith.cmpi slt, %1, %491 : vector<1x256xi32>
    %493 = arith.andi %490, %492 : vector<1x256xi1>
    %494 = arith.extui %493 : vector<1x256xi1> to vector<1x256xi32>
    %495 = arith.sitofp %494 : vector<1x256xi32> to vector<1x256xf32>
    %496 = vector.broadcast %495 : vector<1x256xf32> to vector<4x256xf32>
    %497 = arith.mulf %488, %496 : vector<4x256xf32>
    %498 = vector.extract_strided_slice %298 {offsets = [0, 14], sizes = [4, 1], strides = [1, 1]} : vector<4x25xf32> to vector<4x1xf32>
    %499 = vector.broadcast %498 : vector<4x1xf32> to vector<4x256xf32>
    %500 = arith.mulf %497, %499 : vector<4x256xf32>
    %501 = arith.addf %487, %500 : vector<4x256xf32>
    %c242_i32 = arith.constant 242 : i32
    %502 = tpu.dynamic_rotate %299 by %c242_i32 dim 1 : vector<4x256xf32>, i32 -> vector<4x256xf32>
    %c-1_i32_95 = arith.constant -1 : i32
    %503 = vector.broadcast %c-1_i32_95 : i32 to vector<1x256xi32>
    %504 = arith.cmpi sge, %0, %503 : vector<1x256xi32>
    %c15_i32_96 = arith.constant 15 : i32
    %505 = vector.broadcast %c15_i32_96 : i32 to vector<1x256xi32>
    %506 = arith.cmpi slt, %0, %505 : vector<1x256xi32>
    %507 = arith.andi %504, %506 : vector<1x256xi1>
    %c2_i32_97 = arith.constant 2 : i32
    %508 = vector.broadcast %c2_i32_97 : i32 to vector<1x256xi32>
    %509 = arith.cmpi sge, %1, %508 : vector<1x256xi32>
    %c18_i32_98 = arith.constant 18 : i32
    %510 = vector.broadcast %c18_i32_98 : i32 to vector<1x256xi32>
    %511 = arith.cmpi slt, %1, %510 : vector<1x256xi32>
    %512 = arith.andi %509, %511 : vector<1x256xi1>
    %513 = arith.andi %507, %512 : vector<1x256xi1>
    %514 = arith.extui %513 : vector<1x256xi1> to vector<1x256xi32>
    %515 = arith.sitofp %514 : vector<1x256xi32> to vector<1x256xf32>
    %516 = vector.broadcast %515 : vector<1x256xf32> to vector<4x256xf32>
    %517 = arith.mulf %502, %516 : vector<4x256xf32>
    %518 = vector.extract_strided_slice %298 {offsets = [0, 15], sizes = [4, 1], strides = [1, 1]} : vector<4x25xf32> to vector<4x1xf32>
    %519 = vector.broadcast %518 : vector<4x1xf32> to vector<4x256xf32>
    %520 = arith.mulf %517, %519 : vector<4x256xf32>
    %521 = arith.addf %501, %520 : vector<4x256xf32>
    %c241_i32_99 = arith.constant 241 : i32
    %522 = tpu.dynamic_rotate %299 by %c241_i32_99 dim 1 : vector<4x256xf32>, i32 -> vector<4x256xf32>
    %523 = vector.broadcast %220 : vector<1x256xf32> to vector<4x256xf32>
    %524 = arith.mulf %522, %523 : vector<4x256xf32>
    %525 = vector.extract_strided_slice %298 {offsets = [0, 16], sizes = [4, 1], strides = [1, 1]} : vector<4x25xf32> to vector<4x1xf32>
    %526 = vector.broadcast %525 : vector<4x1xf32> to vector<4x256xf32>
    %527 = arith.mulf %524, %526 : vector<4x256xf32>
    %528 = arith.addf %521, %527 : vector<4x256xf32>
    %c240_i32_100 = arith.constant 240 : i32
    %529 = tpu.dynamic_rotate %299 by %c240_i32_100 dim 1 : vector<4x256xf32>, i32 -> vector<4x256xf32>
    %530 = vector.broadcast %234 : vector<1x256xf32> to vector<4x256xf32>
    %531 = arith.mulf %529, %530 : vector<4x256xf32>
    %532 = vector.extract_strided_slice %298 {offsets = [0, 17], sizes = [4, 1], strides = [1, 1]} : vector<4x25xf32> to vector<4x1xf32>
    %533 = vector.broadcast %532 : vector<4x1xf32> to vector<4x256xf32>
    %534 = arith.mulf %531, %533 : vector<4x256xf32>
    %535 = arith.addf %528, %534 : vector<4x256xf32>
    %c239_i32_101 = arith.constant 239 : i32
    %536 = tpu.dynamic_rotate %299 by %c239_i32_101 dim 1 : vector<4x256xf32>, i32 -> vector<4x256xf32>
    %537 = vector.broadcast %254 : vector<1x256xf32> to vector<4x256xf32>
    %538 = arith.mulf %536, %537 : vector<4x256xf32>
    %539 = vector.extract_strided_slice %298 {offsets = [0, 18], sizes = [4, 1], strides = [1, 1]} : vector<4x25xf32> to vector<4x1xf32>
    %540 = vector.broadcast %539 : vector<4x1xf32> to vector<4x256xf32>
    %541 = arith.mulf %538, %540 : vector<4x256xf32>
    %542 = arith.addf %535, %541 : vector<4x256xf32>
    %c238_i32 = arith.constant 238 : i32
    %543 = tpu.dynamic_rotate %299 by %c238_i32 dim 1 : vector<4x256xf32>, i32 -> vector<4x256xf32>
    %c-1_i32_102 = arith.constant -1 : i32
    %544 = vector.broadcast %c-1_i32_102 : i32 to vector<1x256xi32>
    %545 = arith.cmpi sge, %0, %544 : vector<1x256xi32>
    %c15_i32_103 = arith.constant 15 : i32
    %546 = vector.broadcast %c15_i32_103 : i32 to vector<1x256xi32>
    %547 = arith.cmpi slt, %0, %546 : vector<1x256xi32>
    %548 = arith.andi %545, %547 : vector<1x256xi1>
    %c-2_i32_104 = arith.constant -2 : i32
    %549 = vector.broadcast %c-2_i32_104 : i32 to vector<1x256xi32>
    %550 = arith.cmpi sge, %1, %549 : vector<1x256xi32>
    %c14_i32_105 = arith.constant 14 : i32
    %551 = vector.broadcast %c14_i32_105 : i32 to vector<1x256xi32>
    %552 = arith.cmpi slt, %1, %551 : vector<1x256xi32>
    %553 = arith.andi %550, %552 : vector<1x256xi1>
    %554 = arith.andi %548, %553 : vector<1x256xi1>
    %555 = arith.extui %554 : vector<1x256xi1> to vector<1x256xi32>
    %556 = arith.sitofp %555 : vector<1x256xi32> to vector<1x256xf32>
    %557 = vector.broadcast %556 : vector<1x256xf32> to vector<4x256xf32>
    %558 = arith.mulf %543, %557 : vector<4x256xf32>
    %559 = vector.extract_strided_slice %298 {offsets = [0, 19], sizes = [4, 1], strides = [1, 1]} : vector<4x25xf32> to vector<4x1xf32>
    %560 = vector.broadcast %559 : vector<4x1xf32> to vector<4x256xf32>
    %561 = arith.mulf %558, %560 : vector<4x256xf32>
    %562 = arith.addf %542, %561 : vector<4x256xf32>
    %c226_i32 = arith.constant 226 : i32
    %563 = tpu.dynamic_rotate %299 by %c226_i32 dim 1 : vector<4x256xf32>, i32 -> vector<4x256xf32>
    %c-2_i32_106 = arith.constant -2 : i32
    %564 = vector.broadcast %c-2_i32_106 : i32 to vector<1x256xi32>
    %565 = arith.cmpi sge, %0, %564 : vector<1x256xi32>
    %c14_i32_107 = arith.constant 14 : i32
    %566 = vector.broadcast %c14_i32_107 : i32 to vector<1x256xi32>
    %567 = arith.cmpi slt, %0, %566 : vector<1x256xi32>
    %568 = arith.andi %565, %567 : vector<1x256xi1>
    %c2_i32_108 = arith.constant 2 : i32
    %569 = vector.broadcast %c2_i32_108 : i32 to vector<1x256xi32>
    %570 = arith.cmpi sge, %1, %569 : vector<1x256xi32>
    %c18_i32_109 = arith.constant 18 : i32
    %571 = vector.broadcast %c18_i32_109 : i32 to vector<1x256xi32>
    %572 = arith.cmpi slt, %1, %571 : vector<1x256xi32>
    %573 = arith.andi %570, %572 : vector<1x256xi1>
    %574 = arith.andi %568, %573 : vector<1x256xi1>
    %575 = arith.extui %574 : vector<1x256xi1> to vector<1x256xi32>
    %576 = arith.sitofp %575 : vector<1x256xi32> to vector<1x256xf32>
    %577 = vector.broadcast %576 : vector<1x256xf32> to vector<4x256xf32>
    %578 = arith.mulf %563, %577 : vector<4x256xf32>
    %579 = vector.extract_strided_slice %298 {offsets = [0, 20], sizes = [4, 1], strides = [1, 1]} : vector<4x25xf32> to vector<4x1xf32>
    %580 = vector.broadcast %579 : vector<4x1xf32> to vector<4x256xf32>
    %581 = arith.mulf %578, %580 : vector<4x256xf32>
    %582 = arith.addf %562, %581 : vector<4x256xf32>
    %c225_i32 = arith.constant 225 : i32
    %583 = tpu.dynamic_rotate %299 by %c225_i32 dim 1 : vector<4x256xf32>, i32 -> vector<4x256xf32>
    %c-2_i32_110 = arith.constant -2 : i32
    %584 = vector.broadcast %c-2_i32_110 : i32 to vector<1x256xi32>
    %585 = arith.cmpi sge, %0, %584 : vector<1x256xi32>
    %c14_i32_111 = arith.constant 14 : i32
    %586 = vector.broadcast %c14_i32_111 : i32 to vector<1x256xi32>
    %587 = arith.cmpi slt, %0, %586 : vector<1x256xi32>
    %588 = arith.andi %585, %587 : vector<1x256xi1>
    %c1_i32_112 = arith.constant 1 : i32
    %589 = vector.broadcast %c1_i32_112 : i32 to vector<1x256xi32>
    %590 = arith.cmpi sge, %1, %589 : vector<1x256xi32>
    %c17_i32_113 = arith.constant 17 : i32
    %591 = vector.broadcast %c17_i32_113 : i32 to vector<1x256xi32>
    %592 = arith.cmpi slt, %1, %591 : vector<1x256xi32>
    %593 = arith.andi %590, %592 : vector<1x256xi1>
    %594 = arith.andi %588, %593 : vector<1x256xi1>
    %595 = arith.extui %594 : vector<1x256xi1> to vector<1x256xi32>
    %596 = arith.sitofp %595 : vector<1x256xi32> to vector<1x256xf32>
    %597 = vector.broadcast %596 : vector<1x256xf32> to vector<4x256xf32>
    %598 = arith.mulf %583, %597 : vector<4x256xf32>
    %599 = vector.extract_strided_slice %298 {offsets = [0, 21], sizes = [4, 1], strides = [1, 1]} : vector<4x25xf32> to vector<4x1xf32>
    %600 = vector.broadcast %599 : vector<4x1xf32> to vector<4x256xf32>
    %601 = arith.mulf %598, %600 : vector<4x256xf32>
    %602 = arith.addf %582, %601 : vector<4x256xf32>
    %c224_i32 = arith.constant 224 : i32
    %603 = tpu.dynamic_rotate %299 by %c224_i32 dim 1 : vector<4x256xf32>, i32 -> vector<4x256xf32>
    %c-2_i32_114 = arith.constant -2 : i32
    %604 = vector.broadcast %c-2_i32_114 : i32 to vector<1x256xi32>
    %605 = arith.cmpi sge, %0, %604 : vector<1x256xi32>
    %c14_i32_115 = arith.constant 14 : i32
    %606 = vector.broadcast %c14_i32_115 : i32 to vector<1x256xi32>
    %607 = arith.cmpi slt, %0, %606 : vector<1x256xi32>
    %608 = arith.andi %605, %607 : vector<1x256xi1>
    %609 = arith.extui %608 : vector<1x256xi1> to vector<1x256xi32>
    %610 = arith.sitofp %609 : vector<1x256xi32> to vector<1x256xf32>
    %611 = vector.broadcast %610 : vector<1x256xf32> to vector<4x256xf32>
    %612 = arith.mulf %603, %611 : vector<4x256xf32>
    %613 = vector.extract_strided_slice %298 {offsets = [0, 22], sizes = [4, 1], strides = [1, 1]} : vector<4x25xf32> to vector<4x1xf32>
    %614 = vector.broadcast %613 : vector<4x1xf32> to vector<4x256xf32>
    %615 = arith.mulf %612, %614 : vector<4x256xf32>
    %616 = arith.addf %602, %615 : vector<4x256xf32>
    %c223_i32 = arith.constant 223 : i32
    %617 = tpu.dynamic_rotate %299 by %c223_i32 dim 1 : vector<4x256xf32>, i32 -> vector<4x256xf32>
    %c-2_i32_116 = arith.constant -2 : i32
    %618 = vector.broadcast %c-2_i32_116 : i32 to vector<1x256xi32>
    %619 = arith.cmpi sge, %0, %618 : vector<1x256xi32>
    %c14_i32_117 = arith.constant 14 : i32
    %620 = vector.broadcast %c14_i32_117 : i32 to vector<1x256xi32>
    %621 = arith.cmpi slt, %0, %620 : vector<1x256xi32>
    %622 = arith.andi %619, %621 : vector<1x256xi1>
    %c-1_i32_118 = arith.constant -1 : i32
    %623 = vector.broadcast %c-1_i32_118 : i32 to vector<1x256xi32>
    %624 = arith.cmpi sge, %1, %623 : vector<1x256xi32>
    %c15_i32_119 = arith.constant 15 : i32
    %625 = vector.broadcast %c15_i32_119 : i32 to vector<1x256xi32>
    %626 = arith.cmpi slt, %1, %625 : vector<1x256xi32>
    %627 = arith.andi %624, %626 : vector<1x256xi1>
    %628 = arith.andi %622, %627 : vector<1x256xi1>
    %629 = arith.extui %628 : vector<1x256xi1> to vector<1x256xi32>
    %630 = arith.sitofp %629 : vector<1x256xi32> to vector<1x256xf32>
    %631 = vector.broadcast %630 : vector<1x256xf32> to vector<4x256xf32>
    %632 = arith.mulf %617, %631 : vector<4x256xf32>
    %633 = vector.extract_strided_slice %298 {offsets = [0, 23], sizes = [4, 1], strides = [1, 1]} : vector<4x25xf32> to vector<4x1xf32>
    %634 = vector.broadcast %633 : vector<4x1xf32> to vector<4x256xf32>
    %635 = arith.mulf %632, %634 : vector<4x256xf32>
    %636 = arith.addf %616, %635 : vector<4x256xf32>
    %c222_i32 = arith.constant 222 : i32
    %637 = tpu.dynamic_rotate %299 by %c222_i32 dim 1 : vector<4x256xf32>, i32 -> vector<4x256xf32>
    %c-2_i32_120 = arith.constant -2 : i32
    %638 = vector.broadcast %c-2_i32_120 : i32 to vector<1x256xi32>
    %639 = arith.cmpi sge, %0, %638 : vector<1x256xi32>
    %c14_i32_121 = arith.constant 14 : i32
    %640 = vector.broadcast %c14_i32_121 : i32 to vector<1x256xi32>
    %641 = arith.cmpi slt, %0, %640 : vector<1x256xi32>
    %642 = arith.andi %639, %641 : vector<1x256xi1>
    %c-2_i32_122 = arith.constant -2 : i32
    %643 = vector.broadcast %c-2_i32_122 : i32 to vector<1x256xi32>
    %644 = arith.cmpi sge, %1, %643 : vector<1x256xi32>
    %c14_i32_123 = arith.constant 14 : i32
    %645 = vector.broadcast %c14_i32_123 : i32 to vector<1x256xi32>
    %646 = arith.cmpi slt, %1, %645 : vector<1x256xi32>
    %647 = arith.andi %644, %646 : vector<1x256xi1>
    %648 = arith.andi %642, %647 : vector<1x256xi1>
    %649 = arith.extui %648 : vector<1x256xi1> to vector<1x256xi32>
    %650 = arith.sitofp %649 : vector<1x256xi32> to vector<1x256xf32>
    %651 = vector.broadcast %650 : vector<1x256xf32> to vector<4x256xf32>
    %652 = arith.mulf %637, %651 : vector<4x256xf32>
    %653 = vector.extract_strided_slice %298 {offsets = [0, 24], sizes = [4, 1], strides = [1, 1]} : vector<4x25xf32> to vector<4x1xf32>
    %654 = vector.broadcast %653 : vector<4x1xf32> to vector<4x256xf32>
    %655 = arith.mulf %652, %654 : vector<4x256xf32>
    %656 = arith.addf %636, %655 : vector<4x256xf32>
    %657 = arith.mulf %656, %656 : vector<4x256xf32>
    %658 = arith.mulf %656, %657 : vector<4x256xf32>
    %cst_124 = arith.constant 4.471500e-02 : f32
    %659 = vector.broadcast %cst_124 : f32 to vector<4x256xf32>
    %660 = arith.mulf %659, %658 : vector<4x256xf32>
    %661 = arith.addf %656, %660 : vector<4x256xf32>
    %cst_125 = arith.constant 0.797884583 : f32
    %662 = vector.broadcast %cst_125 : f32 to vector<4x256xf32>
    %663 = arith.mulf %662, %661 : vector<4x256xf32>
    %664 = math.tanh %663 : vector<4x256xf32>
    %cst_126 = arith.constant 1.000000e+00 : f32
    %665 = vector.broadcast %cst_126 : f32 to vector<4x256xf32>
    %666 = arith.addf %665, %664 : vector<4x256xf32>
    %cst_127 = arith.constant 5.000000e-01 : f32
    %667 = vector.broadcast %cst_127 : f32 to vector<4x256xf32>
    %668 = arith.mulf %667, %666 : vector<4x256xf32>
    %669 = arith.mulf %656, %668 : vector<4x256xf32>
    %670 = vector.extract_strided_slice %73 {offsets = [0, 8], sizes = [8, 1], strides = [1, 1]} : vector<8x16xf32> to vector<8x1xf32>
    %671 = vector.extract_strided_slice %669 {offsets = [0, 0], sizes = [1, 256], strides = [1, 1]} : vector<4x256xf32> to vector<1x256xf32>
    %672 = vector.broadcast %670 : vector<8x1xf32> to vector<8x256xf32>
    %673 = vector.broadcast %671 : vector<1x256xf32> to vector<8x256xf32>
    %674 = arith.mulf %672, %673 : vector<8x256xf32>
    %675 = arith.addf %297, %674 : vector<8x256xf32>
    %676 = vector.extract_strided_slice %73 {offsets = [0, 9], sizes = [8, 1], strides = [1, 1]} : vector<8x16xf32> to vector<8x1xf32>
    %677 = vector.extract_strided_slice %669 {offsets = [1, 0], sizes = [1, 256], strides = [1, 1]} : vector<4x256xf32> to vector<1x256xf32>
    %678 = vector.broadcast %676 : vector<8x1xf32> to vector<8x256xf32>
    %679 = vector.broadcast %677 : vector<1x256xf32> to vector<8x256xf32>
    %680 = arith.mulf %678, %679 : vector<8x256xf32>
    %681 = arith.addf %675, %680 : vector<8x256xf32>
    %682 = vector.extract_strided_slice %73 {offsets = [0, 10], sizes = [8, 1], strides = [1, 1]} : vector<8x16xf32> to vector<8x1xf32>
    %683 = vector.extract_strided_slice %669 {offsets = [2, 0], sizes = [1, 256], strides = [1, 1]} : vector<4x256xf32> to vector<1x256xf32>
    %684 = vector.broadcast %682 : vector<8x1xf32> to vector<8x256xf32>
    %685 = vector.broadcast %683 : vector<1x256xf32> to vector<8x256xf32>
    %686 = arith.mulf %684, %685 : vector<8x256xf32>
    %687 = arith.addf %681, %686 : vector<8x256xf32>
    %688 = vector.extract_strided_slice %73 {offsets = [0, 11], sizes = [8, 1], strides = [1, 1]} : vector<8x16xf32> to vector<8x1xf32>
    %689 = vector.extract_strided_slice %669 {offsets = [3, 0], sizes = [1, 256], strides = [1, 1]} : vector<4x256xf32> to vector<1x256xf32>
    %690 = vector.broadcast %688 : vector<8x1xf32> to vector<8x256xf32>
    %691 = vector.broadcast %689 : vector<1x256xf32> to vector<8x256xf32>
    %692 = arith.mulf %690, %691 : vector<8x256xf32>
    %693 = arith.addf %687, %692 : vector<8x256xf32>
    %c0_128 = arith.constant 0 : index
    %c0_129 = arith.constant 0 : index
    %694 = vector.load %arg10[%c0_128, %c0_129] : memref<4x49xf32, #tpu.memory_space<vmem>>, vector<4x49xf32>
    %695 = vector.extract_strided_slice %72 {offsets = [12, 0], sizes = [4, 256], strides = [1, 1]} : vector<16x256xf32> to vector<4x256xf32>
    %cst_130 = arith.constant 0.000000e+00 : f32
    %696 = vector.broadcast %cst_130 : f32 to vector<4x256xf32>
    %c51_i32 = arith.constant 51 : i32
    %697 = tpu.dynamic_rotate %695 by %c51_i32 dim 1 : vector<4x256xf32>, i32 -> vector<4x256xf32>
    %c3_i32 = arith.constant 3 : i32
    %698 = vector.broadcast %c3_i32 : i32 to vector<1x256xi32>
    %699 = arith.cmpi sge, %0, %698 : vector<1x256xi32>
    %c19_i32 = arith.constant 19 : i32
    %700 = vector.broadcast %c19_i32 : i32 to vector<1x256xi32>
    %701 = arith.cmpi slt, %0, %700 : vector<1x256xi32>
    %702 = arith.andi %699, %701 : vector<1x256xi1>
    %c3_i32_131 = arith.constant 3 : i32
    %703 = vector.broadcast %c3_i32_131 : i32 to vector<1x256xi32>
    %704 = arith.cmpi sge, %1, %703 : vector<1x256xi32>
    %c19_i32_132 = arith.constant 19 : i32
    %705 = vector.broadcast %c19_i32_132 : i32 to vector<1x256xi32>
    %706 = arith.cmpi slt, %1, %705 : vector<1x256xi32>
    %707 = arith.andi %704, %706 : vector<1x256xi1>
    %708 = arith.andi %702, %707 : vector<1x256xi1>
    %709 = arith.extui %708 : vector<1x256xi1> to vector<1x256xi32>
    %710 = arith.sitofp %709 : vector<1x256xi32> to vector<1x256xf32>
    %711 = vector.broadcast %710 : vector<1x256xf32> to vector<4x256xf32>
    %712 = arith.mulf %697, %711 : vector<4x256xf32>
    %713 = vector.extract_strided_slice %694 {offsets = [0, 0], sizes = [4, 1], strides = [1, 1]} : vector<4x49xf32> to vector<4x1xf32>
    %714 = vector.broadcast %713 : vector<4x1xf32> to vector<4x256xf32>
    %715 = arith.mulf %712, %714 : vector<4x256xf32>
    %716 = arith.addf %696, %715 : vector<4x256xf32>
    %c50_i32 = arith.constant 50 : i32
    %717 = tpu.dynamic_rotate %695 by %c50_i32 dim 1 : vector<4x256xf32>, i32 -> vector<4x256xf32>
    %c3_i32_133 = arith.constant 3 : i32
    %718 = vector.broadcast %c3_i32_133 : i32 to vector<1x256xi32>
    %719 = arith.cmpi sge, %0, %718 : vector<1x256xi32>
    %c19_i32_134 = arith.constant 19 : i32
    %720 = vector.broadcast %c19_i32_134 : i32 to vector<1x256xi32>
    %721 = arith.cmpi slt, %0, %720 : vector<1x256xi32>
    %722 = arith.andi %719, %721 : vector<1x256xi1>
    %c2_i32_135 = arith.constant 2 : i32
    %723 = vector.broadcast %c2_i32_135 : i32 to vector<1x256xi32>
    %724 = arith.cmpi sge, %1, %723 : vector<1x256xi32>
    %c18_i32_136 = arith.constant 18 : i32
    %725 = vector.broadcast %c18_i32_136 : i32 to vector<1x256xi32>
    %726 = arith.cmpi slt, %1, %725 : vector<1x256xi32>
    %727 = arith.andi %724, %726 : vector<1x256xi1>
    %728 = arith.andi %722, %727 : vector<1x256xi1>
    %729 = arith.extui %728 : vector<1x256xi1> to vector<1x256xi32>
    %730 = arith.sitofp %729 : vector<1x256xi32> to vector<1x256xf32>
    %731 = vector.broadcast %730 : vector<1x256xf32> to vector<4x256xf32>
    %732 = arith.mulf %717, %731 : vector<4x256xf32>
    %733 = vector.extract_strided_slice %694 {offsets = [0, 1], sizes = [4, 1], strides = [1, 1]} : vector<4x49xf32> to vector<4x1xf32>
    %734 = vector.broadcast %733 : vector<4x1xf32> to vector<4x256xf32>
    %735 = arith.mulf %732, %734 : vector<4x256xf32>
    %736 = arith.addf %716, %735 : vector<4x256xf32>
    %c49_i32 = arith.constant 49 : i32
    %737 = tpu.dynamic_rotate %695 by %c49_i32 dim 1 : vector<4x256xf32>, i32 -> vector<4x256xf32>
    %c3_i32_137 = arith.constant 3 : i32
    %738 = vector.broadcast %c3_i32_137 : i32 to vector<1x256xi32>
    %739 = arith.cmpi sge, %0, %738 : vector<1x256xi32>
    %c19_i32_138 = arith.constant 19 : i32
    %740 = vector.broadcast %c19_i32_138 : i32 to vector<1x256xi32>
    %741 = arith.cmpi slt, %0, %740 : vector<1x256xi32>
    %742 = arith.andi %739, %741 : vector<1x256xi1>
    %c1_i32_139 = arith.constant 1 : i32
    %743 = vector.broadcast %c1_i32_139 : i32 to vector<1x256xi32>
    %744 = arith.cmpi sge, %1, %743 : vector<1x256xi32>
    %c17_i32_140 = arith.constant 17 : i32
    %745 = vector.broadcast %c17_i32_140 : i32 to vector<1x256xi32>
    %746 = arith.cmpi slt, %1, %745 : vector<1x256xi32>
    %747 = arith.andi %744, %746 : vector<1x256xi1>
    %748 = arith.andi %742, %747 : vector<1x256xi1>
    %749 = arith.extui %748 : vector<1x256xi1> to vector<1x256xi32>
    %750 = arith.sitofp %749 : vector<1x256xi32> to vector<1x256xf32>
    %751 = vector.broadcast %750 : vector<1x256xf32> to vector<4x256xf32>
    %752 = arith.mulf %737, %751 : vector<4x256xf32>
    %753 = vector.extract_strided_slice %694 {offsets = [0, 2], sizes = [4, 1], strides = [1, 1]} : vector<4x49xf32> to vector<4x1xf32>
    %754 = vector.broadcast %753 : vector<4x1xf32> to vector<4x256xf32>
    %755 = arith.mulf %752, %754 : vector<4x256xf32>
    %756 = arith.addf %736, %755 : vector<4x256xf32>
    %c48_i32 = arith.constant 48 : i32
    %757 = tpu.dynamic_rotate %695 by %c48_i32 dim 1 : vector<4x256xf32>, i32 -> vector<4x256xf32>
    %c3_i32_141 = arith.constant 3 : i32
    %758 = vector.broadcast %c3_i32_141 : i32 to vector<1x256xi32>
    %759 = arith.cmpi sge, %0, %758 : vector<1x256xi32>
    %c19_i32_142 = arith.constant 19 : i32
    %760 = vector.broadcast %c19_i32_142 : i32 to vector<1x256xi32>
    %761 = arith.cmpi slt, %0, %760 : vector<1x256xi32>
    %762 = arith.andi %759, %761 : vector<1x256xi1>
    %763 = arith.extui %762 : vector<1x256xi1> to vector<1x256xi32>
    %764 = arith.sitofp %763 : vector<1x256xi32> to vector<1x256xf32>
    %765 = vector.broadcast %764 : vector<1x256xf32> to vector<4x256xf32>
    %766 = arith.mulf %757, %765 : vector<4x256xf32>
    %767 = vector.extract_strided_slice %694 {offsets = [0, 3], sizes = [4, 1], strides = [1, 1]} : vector<4x49xf32> to vector<4x1xf32>
    %768 = vector.broadcast %767 : vector<4x1xf32> to vector<4x256xf32>
    %769 = arith.mulf %766, %768 : vector<4x256xf32>
    %770 = arith.addf %756, %769 : vector<4x256xf32>
    %c47_i32 = arith.constant 47 : i32
    %771 = tpu.dynamic_rotate %695 by %c47_i32 dim 1 : vector<4x256xf32>, i32 -> vector<4x256xf32>
    %c3_i32_143 = arith.constant 3 : i32
    %772 = vector.broadcast %c3_i32_143 : i32 to vector<1x256xi32>
    %773 = arith.cmpi sge, %0, %772 : vector<1x256xi32>
    %c19_i32_144 = arith.constant 19 : i32
    %774 = vector.broadcast %c19_i32_144 : i32 to vector<1x256xi32>
    %775 = arith.cmpi slt, %0, %774 : vector<1x256xi32>
    %776 = arith.andi %773, %775 : vector<1x256xi1>
    %c-1_i32_145 = arith.constant -1 : i32
    %777 = vector.broadcast %c-1_i32_145 : i32 to vector<1x256xi32>
    %778 = arith.cmpi sge, %1, %777 : vector<1x256xi32>
    %c15_i32_146 = arith.constant 15 : i32
    %779 = vector.broadcast %c15_i32_146 : i32 to vector<1x256xi32>
    %780 = arith.cmpi slt, %1, %779 : vector<1x256xi32>
    %781 = arith.andi %778, %780 : vector<1x256xi1>
    %782 = arith.andi %776, %781 : vector<1x256xi1>
    %783 = arith.extui %782 : vector<1x256xi1> to vector<1x256xi32>
    %784 = arith.sitofp %783 : vector<1x256xi32> to vector<1x256xf32>
    %785 = vector.broadcast %784 : vector<1x256xf32> to vector<4x256xf32>
    %786 = arith.mulf %771, %785 : vector<4x256xf32>
    %787 = vector.extract_strided_slice %694 {offsets = [0, 4], sizes = [4, 1], strides = [1, 1]} : vector<4x49xf32> to vector<4x1xf32>
    %788 = vector.broadcast %787 : vector<4x1xf32> to vector<4x256xf32>
    %789 = arith.mulf %786, %788 : vector<4x256xf32>
    %790 = arith.addf %770, %789 : vector<4x256xf32>
    %c46_i32 = arith.constant 46 : i32
    %791 = tpu.dynamic_rotate %695 by %c46_i32 dim 1 : vector<4x256xf32>, i32 -> vector<4x256xf32>
    %c3_i32_147 = arith.constant 3 : i32
    %792 = vector.broadcast %c3_i32_147 : i32 to vector<1x256xi32>
    %793 = arith.cmpi sge, %0, %792 : vector<1x256xi32>
    %c19_i32_148 = arith.constant 19 : i32
    %794 = vector.broadcast %c19_i32_148 : i32 to vector<1x256xi32>
    %795 = arith.cmpi slt, %0, %794 : vector<1x256xi32>
    %796 = arith.andi %793, %795 : vector<1x256xi1>
    %c-2_i32_149 = arith.constant -2 : i32
    %797 = vector.broadcast %c-2_i32_149 : i32 to vector<1x256xi32>
    %798 = arith.cmpi sge, %1, %797 : vector<1x256xi32>
    %c14_i32_150 = arith.constant 14 : i32
    %799 = vector.broadcast %c14_i32_150 : i32 to vector<1x256xi32>
    %800 = arith.cmpi slt, %1, %799 : vector<1x256xi32>
    %801 = arith.andi %798, %800 : vector<1x256xi1>
    %802 = arith.andi %796, %801 : vector<1x256xi1>
    %803 = arith.extui %802 : vector<1x256xi1> to vector<1x256xi32>
    %804 = arith.sitofp %803 : vector<1x256xi32> to vector<1x256xf32>
    %805 = vector.broadcast %804 : vector<1x256xf32> to vector<4x256xf32>
    %806 = arith.mulf %791, %805 : vector<4x256xf32>
    %807 = vector.extract_strided_slice %694 {offsets = [0, 5], sizes = [4, 1], strides = [1, 1]} : vector<4x49xf32> to vector<4x1xf32>
    %808 = vector.broadcast %807 : vector<4x1xf32> to vector<4x256xf32>
    %809 = arith.mulf %806, %808 : vector<4x256xf32>
    %810 = arith.addf %790, %809 : vector<4x256xf32>
    %c45_i32 = arith.constant 45 : i32
    %811 = tpu.dynamic_rotate %695 by %c45_i32 dim 1 : vector<4x256xf32>, i32 -> vector<4x256xf32>
    %c3_i32_151 = arith.constant 3 : i32
    %812 = vector.broadcast %c3_i32_151 : i32 to vector<1x256xi32>
    %813 = arith.cmpi sge, %0, %812 : vector<1x256xi32>
    %c19_i32_152 = arith.constant 19 : i32
    %814 = vector.broadcast %c19_i32_152 : i32 to vector<1x256xi32>
    %815 = arith.cmpi slt, %0, %814 : vector<1x256xi32>
    %816 = arith.andi %813, %815 : vector<1x256xi1>
    %c-3_i32 = arith.constant -3 : i32
    %817 = vector.broadcast %c-3_i32 : i32 to vector<1x256xi32>
    %818 = arith.cmpi sge, %1, %817 : vector<1x256xi32>
    %c13_i32 = arith.constant 13 : i32
    %819 = vector.broadcast %c13_i32 : i32 to vector<1x256xi32>
    %820 = arith.cmpi slt, %1, %819 : vector<1x256xi32>
    %821 = arith.andi %818, %820 : vector<1x256xi1>
    %822 = arith.andi %816, %821 : vector<1x256xi1>
    %823 = arith.extui %822 : vector<1x256xi1> to vector<1x256xi32>
    %824 = arith.sitofp %823 : vector<1x256xi32> to vector<1x256xf32>
    %825 = vector.broadcast %824 : vector<1x256xf32> to vector<4x256xf32>
    %826 = arith.mulf %811, %825 : vector<4x256xf32>
    %827 = vector.extract_strided_slice %694 {offsets = [0, 6], sizes = [4, 1], strides = [1, 1]} : vector<4x49xf32> to vector<4x1xf32>
    %828 = vector.broadcast %827 : vector<4x1xf32> to vector<4x256xf32>
    %829 = arith.mulf %826, %828 : vector<4x256xf32>
    %830 = arith.addf %810, %829 : vector<4x256xf32>
    %c35_i32 = arith.constant 35 : i32
    %831 = tpu.dynamic_rotate %695 by %c35_i32 dim 1 : vector<4x256xf32>, i32 -> vector<4x256xf32>
    %c2_i32_153 = arith.constant 2 : i32
    %832 = vector.broadcast %c2_i32_153 : i32 to vector<1x256xi32>
    %833 = arith.cmpi sge, %0, %832 : vector<1x256xi32>
    %c18_i32_154 = arith.constant 18 : i32
    %834 = vector.broadcast %c18_i32_154 : i32 to vector<1x256xi32>
    %835 = arith.cmpi slt, %0, %834 : vector<1x256xi32>
    %836 = arith.andi %833, %835 : vector<1x256xi1>
    %c3_i32_155 = arith.constant 3 : i32
    %837 = vector.broadcast %c3_i32_155 : i32 to vector<1x256xi32>
    %838 = arith.cmpi sge, %1, %837 : vector<1x256xi32>
    %c19_i32_156 = arith.constant 19 : i32
    %839 = vector.broadcast %c19_i32_156 : i32 to vector<1x256xi32>
    %840 = arith.cmpi slt, %1, %839 : vector<1x256xi32>
    %841 = arith.andi %838, %840 : vector<1x256xi1>
    %842 = arith.andi %836, %841 : vector<1x256xi1>
    %843 = arith.extui %842 : vector<1x256xi1> to vector<1x256xi32>
    %844 = arith.sitofp %843 : vector<1x256xi32> to vector<1x256xf32>
    %845 = vector.broadcast %844 : vector<1x256xf32> to vector<4x256xf32>
    %846 = arith.mulf %831, %845 : vector<4x256xf32>
    %847 = vector.extract_strided_slice %694 {offsets = [0, 7], sizes = [4, 1], strides = [1, 1]} : vector<4x49xf32> to vector<4x1xf32>
    %848 = vector.broadcast %847 : vector<4x1xf32> to vector<4x256xf32>
    %849 = arith.mulf %846, %848 : vector<4x256xf32>
    %850 = arith.addf %830, %849 : vector<4x256xf32>
    %c34_i32_157 = arith.constant 34 : i32
    %851 = tpu.dynamic_rotate %695 by %c34_i32_157 dim 1 : vector<4x256xf32>, i32 -> vector<4x256xf32>
    %852 = vector.broadcast %314 : vector<1x256xf32> to vector<4x256xf32>
    %853 = arith.mulf %851, %852 : vector<4x256xf32>
    %854 = vector.extract_strided_slice %694 {offsets = [0, 8], sizes = [4, 1], strides = [1, 1]} : vector<4x49xf32> to vector<4x1xf32>
    %855 = vector.broadcast %854 : vector<4x1xf32> to vector<4x256xf32>
    %856 = arith.mulf %853, %855 : vector<4x256xf32>
    %857 = arith.addf %850, %856 : vector<4x256xf32>
    %c33_i32_158 = arith.constant 33 : i32
    %858 = tpu.dynamic_rotate %695 by %c33_i32_158 dim 1 : vector<4x256xf32>, i32 -> vector<4x256xf32>
    %859 = vector.broadcast %334 : vector<1x256xf32> to vector<4x256xf32>
    %860 = arith.mulf %858, %859 : vector<4x256xf32>
    %861 = vector.extract_strided_slice %694 {offsets = [0, 9], sizes = [4, 1], strides = [1, 1]} : vector<4x49xf32> to vector<4x1xf32>
    %862 = vector.broadcast %861 : vector<4x1xf32> to vector<4x256xf32>
    %863 = arith.mulf %860, %862 : vector<4x256xf32>
    %864 = arith.addf %857, %863 : vector<4x256xf32>
    %c32_i32_159 = arith.constant 32 : i32
    %865 = tpu.dynamic_rotate %695 by %c32_i32_159 dim 1 : vector<4x256xf32>, i32 -> vector<4x256xf32>
    %866 = vector.broadcast %348 : vector<1x256xf32> to vector<4x256xf32>
    %867 = arith.mulf %865, %866 : vector<4x256xf32>
    %868 = vector.extract_strided_slice %694 {offsets = [0, 10], sizes = [4, 1], strides = [1, 1]} : vector<4x49xf32> to vector<4x1xf32>
    %869 = vector.broadcast %868 : vector<4x1xf32> to vector<4x256xf32>
    %870 = arith.mulf %867, %869 : vector<4x256xf32>
    %871 = arith.addf %864, %870 : vector<4x256xf32>
    %c31_i32_160 = arith.constant 31 : i32
    %872 = tpu.dynamic_rotate %695 by %c31_i32_160 dim 1 : vector<4x256xf32>, i32 -> vector<4x256xf32>
    %873 = vector.broadcast %368 : vector<1x256xf32> to vector<4x256xf32>
    %874 = arith.mulf %872, %873 : vector<4x256xf32>
    %875 = vector.extract_strided_slice %694 {offsets = [0, 11], sizes = [4, 1], strides = [1, 1]} : vector<4x49xf32> to vector<4x1xf32>
    %876 = vector.broadcast %875 : vector<4x1xf32> to vector<4x256xf32>
    %877 = arith.mulf %874, %876 : vector<4x256xf32>
    %878 = arith.addf %871, %877 : vector<4x256xf32>
    %c30_i32_161 = arith.constant 30 : i32
    %879 = tpu.dynamic_rotate %695 by %c30_i32_161 dim 1 : vector<4x256xf32>, i32 -> vector<4x256xf32>
    %880 = vector.broadcast %388 : vector<1x256xf32> to vector<4x256xf32>
    %881 = arith.mulf %879, %880 : vector<4x256xf32>
    %882 = vector.extract_strided_slice %694 {offsets = [0, 12], sizes = [4, 1], strides = [1, 1]} : vector<4x49xf32> to vector<4x1xf32>
    %883 = vector.broadcast %882 : vector<4x1xf32> to vector<4x256xf32>
    %884 = arith.mulf %881, %883 : vector<4x256xf32>
    %885 = arith.addf %878, %884 : vector<4x256xf32>
    %c29_i32 = arith.constant 29 : i32
    %886 = tpu.dynamic_rotate %695 by %c29_i32 dim 1 : vector<4x256xf32>, i32 -> vector<4x256xf32>
    %c2_i32_162 = arith.constant 2 : i32
    %887 = vector.broadcast %c2_i32_162 : i32 to vector<1x256xi32>
    %888 = arith.cmpi sge, %0, %887 : vector<1x256xi32>
    %c18_i32_163 = arith.constant 18 : i32
    %889 = vector.broadcast %c18_i32_163 : i32 to vector<1x256xi32>
    %890 = arith.cmpi slt, %0, %889 : vector<1x256xi32>
    %891 = arith.andi %888, %890 : vector<1x256xi1>
    %c-3_i32_164 = arith.constant -3 : i32
    %892 = vector.broadcast %c-3_i32_164 : i32 to vector<1x256xi32>
    %893 = arith.cmpi sge, %1, %892 : vector<1x256xi32>
    %c13_i32_165 = arith.constant 13 : i32
    %894 = vector.broadcast %c13_i32_165 : i32 to vector<1x256xi32>
    %895 = arith.cmpi slt, %1, %894 : vector<1x256xi32>
    %896 = arith.andi %893, %895 : vector<1x256xi1>
    %897 = arith.andi %891, %896 : vector<1x256xi1>
    %898 = arith.extui %897 : vector<1x256xi1> to vector<1x256xi32>
    %899 = arith.sitofp %898 : vector<1x256xi32> to vector<1x256xf32>
    %900 = vector.broadcast %899 : vector<1x256xf32> to vector<4x256xf32>
    %901 = arith.mulf %886, %900 : vector<4x256xf32>
    %902 = vector.extract_strided_slice %694 {offsets = [0, 13], sizes = [4, 1], strides = [1, 1]} : vector<4x49xf32> to vector<4x1xf32>
    %903 = vector.broadcast %902 : vector<4x1xf32> to vector<4x256xf32>
    %904 = arith.mulf %901, %903 : vector<4x256xf32>
    %905 = arith.addf %885, %904 : vector<4x256xf32>
    %c19_i32_166 = arith.constant 19 : i32
    %906 = tpu.dynamic_rotate %695 by %c19_i32_166 dim 1 : vector<4x256xf32>, i32 -> vector<4x256xf32>
    %c1_i32_167 = arith.constant 1 : i32
    %907 = vector.broadcast %c1_i32_167 : i32 to vector<1x256xi32>
    %908 = arith.cmpi sge, %0, %907 : vector<1x256xi32>
    %c17_i32_168 = arith.constant 17 : i32
    %909 = vector.broadcast %c17_i32_168 : i32 to vector<1x256xi32>
    %910 = arith.cmpi slt, %0, %909 : vector<1x256xi32>
    %911 = arith.andi %908, %910 : vector<1x256xi1>
    %c3_i32_169 = arith.constant 3 : i32
    %912 = vector.broadcast %c3_i32_169 : i32 to vector<1x256xi32>
    %913 = arith.cmpi sge, %1, %912 : vector<1x256xi32>
    %c19_i32_170 = arith.constant 19 : i32
    %914 = vector.broadcast %c19_i32_170 : i32 to vector<1x256xi32>
    %915 = arith.cmpi slt, %1, %914 : vector<1x256xi32>
    %916 = arith.andi %913, %915 : vector<1x256xi1>
    %917 = arith.andi %911, %916 : vector<1x256xi1>
    %918 = arith.extui %917 : vector<1x256xi1> to vector<1x256xi32>
    %919 = arith.sitofp %918 : vector<1x256xi32> to vector<1x256xf32>
    %920 = vector.broadcast %919 : vector<1x256xf32> to vector<4x256xf32>
    %921 = arith.mulf %906, %920 : vector<4x256xf32>
    %922 = vector.extract_strided_slice %694 {offsets = [0, 14], sizes = [4, 1], strides = [1, 1]} : vector<4x49xf32> to vector<4x1xf32>
    %923 = vector.broadcast %922 : vector<4x1xf32> to vector<4x256xf32>
    %924 = arith.mulf %921, %923 : vector<4x256xf32>
    %925 = arith.addf %905, %924 : vector<4x256xf32>
    %c18_i32_171 = arith.constant 18 : i32
    %926 = tpu.dynamic_rotate %695 by %c18_i32_171 dim 1 : vector<4x256xf32>, i32 -> vector<4x256xf32>
    %927 = vector.broadcast %408 : vector<1x256xf32> to vector<4x256xf32>
    %928 = arith.mulf %926, %927 : vector<4x256xf32>
    %929 = vector.extract_strided_slice %694 {offsets = [0, 15], sizes = [4, 1], strides = [1, 1]} : vector<4x49xf32> to vector<4x1xf32>
    %930 = vector.broadcast %929 : vector<4x1xf32> to vector<4x256xf32>
    %931 = arith.mulf %928, %930 : vector<4x256xf32>
    %932 = arith.addf %925, %931 : vector<4x256xf32>
    %c17_i32_172 = arith.constant 17 : i32
    %933 = tpu.dynamic_rotate %695 by %c17_i32_172 dim 1 : vector<4x256xf32>, i32 -> vector<4x256xf32>
    %934 = vector.broadcast %134 : vector<1x256xf32> to vector<4x256xf32>
    %935 = arith.mulf %933, %934 : vector<4x256xf32>
    %936 = vector.extract_strided_slice %694 {offsets = [0, 16], sizes = [4, 1], strides = [1, 1]} : vector<4x49xf32> to vector<4x1xf32>
    %937 = vector.broadcast %936 : vector<4x1xf32> to vector<4x256xf32>
    %938 = arith.mulf %935, %937 : vector<4x256xf32>
    %939 = arith.addf %932, %938 : vector<4x256xf32>
    %c16_i32_173 = arith.constant 16 : i32
    %940 = tpu.dynamic_rotate %695 by %c16_i32_173 dim 1 : vector<4x256xf32>, i32 -> vector<4x256xf32>
    %941 = vector.broadcast %148 : vector<1x256xf32> to vector<4x256xf32>
    %942 = arith.mulf %940, %941 : vector<4x256xf32>
    %943 = vector.extract_strided_slice %694 {offsets = [0, 17], sizes = [4, 1], strides = [1, 1]} : vector<4x49xf32> to vector<4x1xf32>
    %944 = vector.broadcast %943 : vector<4x1xf32> to vector<4x256xf32>
    %945 = arith.mulf %942, %944 : vector<4x256xf32>
    %946 = arith.addf %939, %945 : vector<4x256xf32>
    %c15_i32_174 = arith.constant 15 : i32
    %947 = tpu.dynamic_rotate %695 by %c15_i32_174 dim 1 : vector<4x256xf32>, i32 -> vector<4x256xf32>
    %948 = vector.broadcast %168 : vector<1x256xf32> to vector<4x256xf32>
    %949 = arith.mulf %947, %948 : vector<4x256xf32>
    %950 = vector.extract_strided_slice %694 {offsets = [0, 18], sizes = [4, 1], strides = [1, 1]} : vector<4x49xf32> to vector<4x1xf32>
    %951 = vector.broadcast %950 : vector<4x1xf32> to vector<4x256xf32>
    %952 = arith.mulf %949, %951 : vector<4x256xf32>
    %953 = arith.addf %946, %952 : vector<4x256xf32>
    %c14_i32_175 = arith.constant 14 : i32
    %954 = tpu.dynamic_rotate %695 by %c14_i32_175 dim 1 : vector<4x256xf32>, i32 -> vector<4x256xf32>
    %955 = vector.broadcast %449 : vector<1x256xf32> to vector<4x256xf32>
    %956 = arith.mulf %954, %955 : vector<4x256xf32>
    %957 = vector.extract_strided_slice %694 {offsets = [0, 19], sizes = [4, 1], strides = [1, 1]} : vector<4x49xf32> to vector<4x1xf32>
    %958 = vector.broadcast %957 : vector<4x1xf32> to vector<4x256xf32>
    %959 = arith.mulf %956, %958 : vector<4x256xf32>
    %960 = arith.addf %953, %959 : vector<4x256xf32>
    %c13_i32_176 = arith.constant 13 : i32
    %961 = tpu.dynamic_rotate %695 by %c13_i32_176 dim 1 : vector<4x256xf32>, i32 -> vector<4x256xf32>
    %c1_i32_177 = arith.constant 1 : i32
    %962 = vector.broadcast %c1_i32_177 : i32 to vector<1x256xi32>
    %963 = arith.cmpi sge, %0, %962 : vector<1x256xi32>
    %c17_i32_178 = arith.constant 17 : i32
    %964 = vector.broadcast %c17_i32_178 : i32 to vector<1x256xi32>
    %965 = arith.cmpi slt, %0, %964 : vector<1x256xi32>
    %966 = arith.andi %963, %965 : vector<1x256xi1>
    %c-3_i32_179 = arith.constant -3 : i32
    %967 = vector.broadcast %c-3_i32_179 : i32 to vector<1x256xi32>
    %968 = arith.cmpi sge, %1, %967 : vector<1x256xi32>
    %c13_i32_180 = arith.constant 13 : i32
    %969 = vector.broadcast %c13_i32_180 : i32 to vector<1x256xi32>
    %970 = arith.cmpi slt, %1, %969 : vector<1x256xi32>
    %971 = arith.andi %968, %970 : vector<1x256xi1>
    %972 = arith.andi %966, %971 : vector<1x256xi1>
    %973 = arith.extui %972 : vector<1x256xi1> to vector<1x256xi32>
    %974 = arith.sitofp %973 : vector<1x256xi32> to vector<1x256xf32>
    %975 = vector.broadcast %974 : vector<1x256xf32> to vector<4x256xf32>
    %976 = arith.mulf %961, %975 : vector<4x256xf32>
    %977 = vector.extract_strided_slice %694 {offsets = [0, 20], sizes = [4, 1], strides = [1, 1]} : vector<4x49xf32> to vector<4x1xf32>
    %978 = vector.broadcast %977 : vector<4x1xf32> to vector<4x256xf32>
    %979 = arith.mulf %976, %978 : vector<4x256xf32>
    %980 = arith.addf %960, %979 : vector<4x256xf32>
    %c3_i32_181 = arith.constant 3 : i32
    %981 = tpu.dynamic_rotate %695 by %c3_i32_181 dim 1 : vector<4x256xf32>, i32 -> vector<4x256xf32>
    %c3_i32_182 = arith.constant 3 : i32
    %982 = vector.broadcast %c3_i32_182 : i32 to vector<1x256xi32>
    %983 = arith.cmpi sge, %1, %982 : vector<1x256xi32>
    %c19_i32_183 = arith.constant 19 : i32
    %984 = vector.broadcast %c19_i32_183 : i32 to vector<1x256xi32>
    %985 = arith.cmpi slt, %1, %984 : vector<1x256xi32>
    %986 = arith.andi %983, %985 : vector<1x256xi1>
    %987 = arith.extui %986 : vector<1x256xi1> to vector<1x256xi32>
    %988 = arith.sitofp %987 : vector<1x256xi32> to vector<1x256xf32>
    %989 = vector.broadcast %988 : vector<1x256xf32> to vector<4x256xf32>
    %990 = arith.mulf %981, %989 : vector<4x256xf32>
    %991 = vector.extract_strided_slice %694 {offsets = [0, 21], sizes = [4, 1], strides = [1, 1]} : vector<4x49xf32> to vector<4x1xf32>
    %992 = vector.broadcast %991 : vector<4x1xf32> to vector<4x256xf32>
    %993 = arith.mulf %990, %992 : vector<4x256xf32>
    %994 = arith.addf %980, %993 : vector<4x256xf32>
    %c2_i32_184 = arith.constant 2 : i32
    %995 = tpu.dynamic_rotate %695 by %c2_i32_184 dim 1 : vector<4x256xf32>, i32 -> vector<4x256xf32>
    %996 = vector.broadcast %463 : vector<1x256xf32> to vector<4x256xf32>
    %997 = arith.mulf %995, %996 : vector<4x256xf32>
    %998 = vector.extract_strided_slice %694 {offsets = [0, 22], sizes = [4, 1], strides = [1, 1]} : vector<4x49xf32> to vector<4x1xf32>
    %999 = vector.broadcast %998 : vector<4x1xf32> to vector<4x256xf32>
    %1000 = arith.mulf %997, %999 : vector<4x256xf32>
    %1001 = arith.addf %994, %1000 : vector<4x256xf32>
    %c1_i32_185 = arith.constant 1 : i32
    %1002 = tpu.dynamic_rotate %695 by %c1_i32_185 dim 1 : vector<4x256xf32>, i32 -> vector<4x256xf32>
    %1003 = vector.broadcast %182 : vector<1x256xf32> to vector<4x256xf32>
    %1004 = arith.mulf %1002, %1003 : vector<4x256xf32>
    %1005 = vector.extract_strided_slice %694 {offsets = [0, 23], sizes = [4, 1], strides = [1, 1]} : vector<4x49xf32> to vector<4x1xf32>
    %1006 = vector.broadcast %1005 : vector<4x1xf32> to vector<4x256xf32>
    %1007 = arith.mulf %1004, %1006 : vector<4x256xf32>
    %1008 = arith.addf %1001, %1007 : vector<4x256xf32>
    %1009 = vector.extract_strided_slice %694 {offsets = [0, 24], sizes = [4, 1], strides = [1, 1]} : vector<4x49xf32> to vector<4x1xf32>
    %1010 = vector.broadcast %1009 : vector<4x1xf32> to vector<4x256xf32>
    %1011 = arith.mulf %695, %1010 : vector<4x256xf32>
    %1012 = arith.addf %1008, %1011 : vector<4x256xf32>
    %c255_i32_186 = arith.constant 255 : i32
    %1013 = tpu.dynamic_rotate %695 by %c255_i32_186 dim 1 : vector<4x256xf32>, i32 -> vector<4x256xf32>
    %1014 = vector.broadcast %200 : vector<1x256xf32> to vector<4x256xf32>
    %1015 = arith.mulf %1013, %1014 : vector<4x256xf32>
    %1016 = vector.extract_strided_slice %694 {offsets = [0, 25], sizes = [4, 1], strides = [1, 1]} : vector<4x49xf32> to vector<4x1xf32>
    %1017 = vector.broadcast %1016 : vector<4x1xf32> to vector<4x256xf32>
    %1018 = arith.mulf %1015, %1017 : vector<4x256xf32>
    %1019 = arith.addf %1012, %1018 : vector<4x256xf32>
    %c254_i32_187 = arith.constant 254 : i32
    %1020 = tpu.dynamic_rotate %695 by %c254_i32_187 dim 1 : vector<4x256xf32>, i32 -> vector<4x256xf32>
    %1021 = vector.broadcast %495 : vector<1x256xf32> to vector<4x256xf32>
    %1022 = arith.mulf %1020, %1021 : vector<4x256xf32>
    %1023 = vector.extract_strided_slice %694 {offsets = [0, 26], sizes = [4, 1], strides = [1, 1]} : vector<4x49xf32> to vector<4x1xf32>
    %1024 = vector.broadcast %1023 : vector<4x1xf32> to vector<4x256xf32>
    %1025 = arith.mulf %1022, %1024 : vector<4x256xf32>
    %1026 = arith.addf %1019, %1025 : vector<4x256xf32>
    %c253_i32 = arith.constant 253 : i32
    %1027 = tpu.dynamic_rotate %695 by %c253_i32 dim 1 : vector<4x256xf32>, i32 -> vector<4x256xf32>
    %c-3_i32_188 = arith.constant -3 : i32
    %1028 = vector.broadcast %c-3_i32_188 : i32 to vector<1x256xi32>
    %1029 = arith.cmpi sge, %1, %1028 : vector<1x256xi32>
    %c13_i32_189 = arith.constant 13 : i32
    %1030 = vector.broadcast %c13_i32_189 : i32 to vector<1x256xi32>
    %1031 = arith.cmpi slt, %1, %1030 : vector<1x256xi32>
    %1032 = arith.andi %1029, %1031 : vector<1x256xi1>
    %1033 = arith.extui %1032 : vector<1x256xi1> to vector<1x256xi32>
    %1034 = arith.sitofp %1033 : vector<1x256xi32> to vector<1x256xf32>
    %1035 = vector.broadcast %1034 : vector<1x256xf32> to vector<4x256xf32>
    %1036 = arith.mulf %1027, %1035 : vector<4x256xf32>
    %1037 = vector.extract_strided_slice %694 {offsets = [0, 27], sizes = [4, 1], strides = [1, 1]} : vector<4x49xf32> to vector<4x1xf32>
    %1038 = vector.broadcast %1037 : vector<4x1xf32> to vector<4x256xf32>
    %1039 = arith.mulf %1036, %1038 : vector<4x256xf32>
    %1040 = arith.addf %1026, %1039 : vector<4x256xf32>
    %c243_i32 = arith.constant 243 : i32
    %1041 = tpu.dynamic_rotate %695 by %c243_i32 dim 1 : vector<4x256xf32>, i32 -> vector<4x256xf32>
    %c-1_i32_190 = arith.constant -1 : i32
    %1042 = vector.broadcast %c-1_i32_190 : i32 to vector<1x256xi32>
    %1043 = arith.cmpi sge, %0, %1042 : vector<1x256xi32>
    %c15_i32_191 = arith.constant 15 : i32
    %1044 = vector.broadcast %c15_i32_191 : i32 to vector<1x256xi32>
    %1045 = arith.cmpi slt, %0, %1044 : vector<1x256xi32>
    %1046 = arith.andi %1043, %1045 : vector<1x256xi1>
    %c3_i32_192 = arith.constant 3 : i32
    %1047 = vector.broadcast %c3_i32_192 : i32 to vector<1x256xi32>
    %1048 = arith.cmpi sge, %1, %1047 : vector<1x256xi32>
    %c19_i32_193 = arith.constant 19 : i32
    %1049 = vector.broadcast %c19_i32_193 : i32 to vector<1x256xi32>
    %1050 = arith.cmpi slt, %1, %1049 : vector<1x256xi32>
    %1051 = arith.andi %1048, %1050 : vector<1x256xi1>
    %1052 = arith.andi %1046, %1051 : vector<1x256xi1>
    %1053 = arith.extui %1052 : vector<1x256xi1> to vector<1x256xi32>
    %1054 = arith.sitofp %1053 : vector<1x256xi32> to vector<1x256xf32>
    %1055 = vector.broadcast %1054 : vector<1x256xf32> to vector<4x256xf32>
    %1056 = arith.mulf %1041, %1055 : vector<4x256xf32>
    %1057 = vector.extract_strided_slice %694 {offsets = [0, 28], sizes = [4, 1], strides = [1, 1]} : vector<4x49xf32> to vector<4x1xf32>
    %1058 = vector.broadcast %1057 : vector<4x1xf32> to vector<4x256xf32>
    %1059 = arith.mulf %1056, %1058 : vector<4x256xf32>
    %1060 = arith.addf %1040, %1059 : vector<4x256xf32>
    %c242_i32_194 = arith.constant 242 : i32
    %1061 = tpu.dynamic_rotate %695 by %c242_i32_194 dim 1 : vector<4x256xf32>, i32 -> vector<4x256xf32>
    %1062 = vector.broadcast %515 : vector<1x256xf32> to vector<4x256xf32>
    %1063 = arith.mulf %1061, %1062 : vector<4x256xf32>
    %1064 = vector.extract_strided_slice %694 {offsets = [0, 29], sizes = [4, 1], strides = [1, 1]} : vector<4x49xf32> to vector<4x1xf32>
    %1065 = vector.broadcast %1064 : vector<4x1xf32> to vector<4x256xf32>
    %1066 = arith.mulf %1063, %1065 : vector<4x256xf32>
    %1067 = arith.addf %1060, %1066 : vector<4x256xf32>
    %c241_i32_195 = arith.constant 241 : i32
    %1068 = tpu.dynamic_rotate %695 by %c241_i32_195 dim 1 : vector<4x256xf32>, i32 -> vector<4x256xf32>
    %1069 = vector.broadcast %220 : vector<1x256xf32> to vector<4x256xf32>
    %1070 = arith.mulf %1068, %1069 : vector<4x256xf32>
    %1071 = vector.extract_strided_slice %694 {offsets = [0, 30], sizes = [4, 1], strides = [1, 1]} : vector<4x49xf32> to vector<4x1xf32>
    %1072 = vector.broadcast %1071 : vector<4x1xf32> to vector<4x256xf32>
    %1073 = arith.mulf %1070, %1072 : vector<4x256xf32>
    %1074 = arith.addf %1067, %1073 : vector<4x256xf32>
    %c240_i32_196 = arith.constant 240 : i32
    %1075 = tpu.dynamic_rotate %695 by %c240_i32_196 dim 1 : vector<4x256xf32>, i32 -> vector<4x256xf32>
    %1076 = vector.broadcast %234 : vector<1x256xf32> to vector<4x256xf32>
    %1077 = arith.mulf %1075, %1076 : vector<4x256xf32>
    %1078 = vector.extract_strided_slice %694 {offsets = [0, 31], sizes = [4, 1], strides = [1, 1]} : vector<4x49xf32> to vector<4x1xf32>
    %1079 = vector.broadcast %1078 : vector<4x1xf32> to vector<4x256xf32>
    %1080 = arith.mulf %1077, %1079 : vector<4x256xf32>
    %1081 = arith.addf %1074, %1080 : vector<4x256xf32>
    %c239_i32_197 = arith.constant 239 : i32
    %1082 = tpu.dynamic_rotate %695 by %c239_i32_197 dim 1 : vector<4x256xf32>, i32 -> vector<4x256xf32>
    %1083 = vector.broadcast %254 : vector<1x256xf32> to vector<4x256xf32>
    %1084 = arith.mulf %1082, %1083 : vector<4x256xf32>
    %1085 = vector.extract_strided_slice %694 {offsets = [0, 32], sizes = [4, 1], strides = [1, 1]} : vector<4x49xf32> to vector<4x1xf32>
    %1086 = vector.broadcast %1085 : vector<4x1xf32> to vector<4x256xf32>
    %1087 = arith.mulf %1084, %1086 : vector<4x256xf32>
    %1088 = arith.addf %1081, %1087 : vector<4x256xf32>
    %c238_i32_198 = arith.constant 238 : i32
    %1089 = tpu.dynamic_rotate %695 by %c238_i32_198 dim 1 : vector<4x256xf32>, i32 -> vector<4x256xf32>
    %1090 = vector.broadcast %556 : vector<1x256xf32> to vector<4x256xf32>
    %1091 = arith.mulf %1089, %1090 : vector<4x256xf32>
    %1092 = vector.extract_strided_slice %694 {offsets = [0, 33], sizes = [4, 1], strides = [1, 1]} : vector<4x49xf32> to vector<4x1xf32>
    %1093 = vector.broadcast %1092 : vector<4x1xf32> to vector<4x256xf32>
    %1094 = arith.mulf %1091, %1093 : vector<4x256xf32>
    %1095 = arith.addf %1088, %1094 : vector<4x256xf32>
    %c237_i32 = arith.constant 237 : i32
    %1096 = tpu.dynamic_rotate %695 by %c237_i32 dim 1 : vector<4x256xf32>, i32 -> vector<4x256xf32>
    %c-1_i32_199 = arith.constant -1 : i32
    %1097 = vector.broadcast %c-1_i32_199 : i32 to vector<1x256xi32>
    %1098 = arith.cmpi sge, %0, %1097 : vector<1x256xi32>
    %c15_i32_200 = arith.constant 15 : i32
    %1099 = vector.broadcast %c15_i32_200 : i32 to vector<1x256xi32>
    %1100 = arith.cmpi slt, %0, %1099 : vector<1x256xi32>
    %1101 = arith.andi %1098, %1100 : vector<1x256xi1>
    %c-3_i32_201 = arith.constant -3 : i32
    %1102 = vector.broadcast %c-3_i32_201 : i32 to vector<1x256xi32>
    %1103 = arith.cmpi sge, %1, %1102 : vector<1x256xi32>
    %c13_i32_202 = arith.constant 13 : i32
    %1104 = vector.broadcast %c13_i32_202 : i32 to vector<1x256xi32>
    %1105 = arith.cmpi slt, %1, %1104 : vector<1x256xi32>
    %1106 = arith.andi %1103, %1105 : vector<1x256xi1>
    %1107 = arith.andi %1101, %1106 : vector<1x256xi1>
    %1108 = arith.extui %1107 : vector<1x256xi1> to vector<1x256xi32>
    %1109 = arith.sitofp %1108 : vector<1x256xi32> to vector<1x256xf32>
    %1110 = vector.broadcast %1109 : vector<1x256xf32> to vector<4x256xf32>
    %1111 = arith.mulf %1096, %1110 : vector<4x256xf32>
    %1112 = vector.extract_strided_slice %694 {offsets = [0, 34], sizes = [4, 1], strides = [1, 1]} : vector<4x49xf32> to vector<4x1xf32>
    %1113 = vector.broadcast %1112 : vector<4x1xf32> to vector<4x256xf32>
    %1114 = arith.mulf %1111, %1113 : vector<4x256xf32>
    %1115 = arith.addf %1095, %1114 : vector<4x256xf32>
    %c227_i32 = arith.constant 227 : i32
    %1116 = tpu.dynamic_rotate %695 by %c227_i32 dim 1 : vector<4x256xf32>, i32 -> vector<4x256xf32>
    %c-2_i32_203 = arith.constant -2 : i32
    %1117 = vector.broadcast %c-2_i32_203 : i32 to vector<1x256xi32>
    %1118 = arith.cmpi sge, %0, %1117 : vector<1x256xi32>
    %c14_i32_204 = arith.constant 14 : i32
    %1119 = vector.broadcast %c14_i32_204 : i32 to vector<1x256xi32>
    %1120 = arith.cmpi slt, %0, %1119 : vector<1x256xi32>
    %1121 = arith.andi %1118, %1120 : vector<1x256xi1>
    %c3_i32_205 = arith.constant 3 : i32
    %1122 = vector.broadcast %c3_i32_205 : i32 to vector<1x256xi32>
    %1123 = arith.cmpi sge, %1, %1122 : vector<1x256xi32>
    %c19_i32_206 = arith.constant 19 : i32
    %1124 = vector.broadcast %c19_i32_206 : i32 to vector<1x256xi32>
    %1125 = arith.cmpi slt, %1, %1124 : vector<1x256xi32>
    %1126 = arith.andi %1123, %1125 : vector<1x256xi1>
    %1127 = arith.andi %1121, %1126 : vector<1x256xi1>
    %1128 = arith.extui %1127 : vector<1x256xi1> to vector<1x256xi32>
    %1129 = arith.sitofp %1128 : vector<1x256xi32> to vector<1x256xf32>
    %1130 = vector.broadcast %1129 : vector<1x256xf32> to vector<4x256xf32>
    %1131 = arith.mulf %1116, %1130 : vector<4x256xf32>
    %1132 = vector.extract_strided_slice %694 {offsets = [0, 35], sizes = [4, 1], strides = [1, 1]} : vector<4x49xf32> to vector<4x1xf32>
    %1133 = vector.broadcast %1132 : vector<4x1xf32> to vector<4x256xf32>
    %1134 = arith.mulf %1131, %1133 : vector<4x256xf32>
    %1135 = arith.addf %1115, %1134 : vector<4x256xf32>
    %c226_i32_207 = arith.constant 226 : i32
    %1136 = tpu.dynamic_rotate %695 by %c226_i32_207 dim 1 : vector<4x256xf32>, i32 -> vector<4x256xf32>
    %1137 = vector.broadcast %576 : vector<1x256xf32> to vector<4x256xf32>
    %1138 = arith.mulf %1136, %1137 : vector<4x256xf32>
    %1139 = vector.extract_strided_slice %694 {offsets = [0, 36], sizes = [4, 1], strides = [1, 1]} : vector<4x49xf32> to vector<4x1xf32>
    %1140 = vector.broadcast %1139 : vector<4x1xf32> to vector<4x256xf32>
    %1141 = arith.mulf %1138, %1140 : vector<4x256xf32>
    %1142 = arith.addf %1135, %1141 : vector<4x256xf32>
    %c225_i32_208 = arith.constant 225 : i32
    %1143 = tpu.dynamic_rotate %695 by %c225_i32_208 dim 1 : vector<4x256xf32>, i32 -> vector<4x256xf32>
    %1144 = vector.broadcast %596 : vector<1x256xf32> to vector<4x256xf32>
    %1145 = arith.mulf %1143, %1144 : vector<4x256xf32>
    %1146 = vector.extract_strided_slice %694 {offsets = [0, 37], sizes = [4, 1], strides = [1, 1]} : vector<4x49xf32> to vector<4x1xf32>
    %1147 = vector.broadcast %1146 : vector<4x1xf32> to vector<4x256xf32>
    %1148 = arith.mulf %1145, %1147 : vector<4x256xf32>
    %1149 = arith.addf %1142, %1148 : vector<4x256xf32>
    %c224_i32_209 = arith.constant 224 : i32
    %1150 = tpu.dynamic_rotate %695 by %c224_i32_209 dim 1 : vector<4x256xf32>, i32 -> vector<4x256xf32>
    %1151 = vector.broadcast %610 : vector<1x256xf32> to vector<4x256xf32>
    %1152 = arith.mulf %1150, %1151 : vector<4x256xf32>
    %1153 = vector.extract_strided_slice %694 {offsets = [0, 38], sizes = [4, 1], strides = [1, 1]} : vector<4x49xf32> to vector<4x1xf32>
    %1154 = vector.broadcast %1153 : vector<4x1xf32> to vector<4x256xf32>
    %1155 = arith.mulf %1152, %1154 : vector<4x256xf32>
    %1156 = arith.addf %1149, %1155 : vector<4x256xf32>
    %c223_i32_210 = arith.constant 223 : i32
    %1157 = tpu.dynamic_rotate %695 by %c223_i32_210 dim 1 : vector<4x256xf32>, i32 -> vector<4x256xf32>
    %1158 = vector.broadcast %630 : vector<1x256xf32> to vector<4x256xf32>
    %1159 = arith.mulf %1157, %1158 : vector<4x256xf32>
    %1160 = vector.extract_strided_slice %694 {offsets = [0, 39], sizes = [4, 1], strides = [1, 1]} : vector<4x49xf32> to vector<4x1xf32>
    %1161 = vector.broadcast %1160 : vector<4x1xf32> to vector<4x256xf32>
    %1162 = arith.mulf %1159, %1161 : vector<4x256xf32>
    %1163 = arith.addf %1156, %1162 : vector<4x256xf32>
    %c222_i32_211 = arith.constant 222 : i32
    %1164 = tpu.dynamic_rotate %695 by %c222_i32_211 dim 1 : vector<4x256xf32>, i32 -> vector<4x256xf32>
    %1165 = vector.broadcast %650 : vector<1x256xf32> to vector<4x256xf32>
    %1166 = arith.mulf %1164, %1165 : vector<4x256xf32>
    %1167 = vector.extract_strided_slice %694 {offsets = [0, 40], sizes = [4, 1], strides = [1, 1]} : vector<4x49xf32> to vector<4x1xf32>
    %1168 = vector.broadcast %1167 : vector<4x1xf32> to vector<4x256xf32>
    %1169 = arith.mulf %1166, %1168 : vector<4x256xf32>
    %1170 = arith.addf %1163, %1169 : vector<4x256xf32>
    %c221_i32 = arith.constant 221 : i32
    %1171 = tpu.dynamic_rotate %695 by %c221_i32 dim 1 : vector<4x256xf32>, i32 -> vector<4x256xf32>
    %c-2_i32_212 = arith.constant -2 : i32
    %1172 = vector.broadcast %c-2_i32_212 : i32 to vector<1x256xi32>
    %1173 = arith.cmpi sge, %0, %1172 : vector<1x256xi32>
    %c14_i32_213 = arith.constant 14 : i32
    %1174 = vector.broadcast %c14_i32_213 : i32 to vector<1x256xi32>
    %1175 = arith.cmpi slt, %0, %1174 : vector<1x256xi32>
    %1176 = arith.andi %1173, %1175 : vector<1x256xi1>
    %c-3_i32_214 = arith.constant -3 : i32
    %1177 = vector.broadcast %c-3_i32_214 : i32 to vector<1x256xi32>
    %1178 = arith.cmpi sge, %1, %1177 : vector<1x256xi32>
    %c13_i32_215 = arith.constant 13 : i32
    %1179 = vector.broadcast %c13_i32_215 : i32 to vector<1x256xi32>
    %1180 = arith.cmpi slt, %1, %1179 : vector<1x256xi32>
    %1181 = arith.andi %1178, %1180 : vector<1x256xi1>
    %1182 = arith.andi %1176, %1181 : vector<1x256xi1>
    %1183 = arith.extui %1182 : vector<1x256xi1> to vector<1x256xi32>
    %1184 = arith.sitofp %1183 : vector<1x256xi32> to vector<1x256xf32>
    %1185 = vector.broadcast %1184 : vector<1x256xf32> to vector<4x256xf32>
    %1186 = arith.mulf %1171, %1185 : vector<4x256xf32>
    %1187 = vector.extract_strided_slice %694 {offsets = [0, 41], sizes = [4, 1], strides = [1, 1]} : vector<4x49xf32> to vector<4x1xf32>
    %1188 = vector.broadcast %1187 : vector<4x1xf32> to vector<4x256xf32>
    %1189 = arith.mulf %1186, %1188 : vector<4x256xf32>
    %1190 = arith.addf %1170, %1189 : vector<4x256xf32>
    %c211_i32 = arith.constant 211 : i32
    %1191 = tpu.dynamic_rotate %695 by %c211_i32 dim 1 : vector<4x256xf32>, i32 -> vector<4x256xf32>
    %c-3_i32_216 = arith.constant -3 : i32
    %1192 = vector.broadcast %c-3_i32_216 : i32 to vector<1x256xi32>
    %1193 = arith.cmpi sge, %0, %1192 : vector<1x256xi32>
    %c13_i32_217 = arith.constant 13 : i32
    %1194 = vector.broadcast %c13_i32_217 : i32 to vector<1x256xi32>
    %1195 = arith.cmpi slt, %0, %1194 : vector<1x256xi32>
    %1196 = arith.andi %1193, %1195 : vector<1x256xi1>
    %c3_i32_218 = arith.constant 3 : i32
    %1197 = vector.broadcast %c3_i32_218 : i32 to vector<1x256xi32>
    %1198 = arith.cmpi sge, %1, %1197 : vector<1x256xi32>
    %c19_i32_219 = arith.constant 19 : i32
    %1199 = vector.broadcast %c19_i32_219 : i32 to vector<1x256xi32>
    %1200 = arith.cmpi slt, %1, %1199 : vector<1x256xi32>
    %1201 = arith.andi %1198, %1200 : vector<1x256xi1>
    %1202 = arith.andi %1196, %1201 : vector<1x256xi1>
    %1203 = arith.extui %1202 : vector<1x256xi1> to vector<1x256xi32>
    %1204 = arith.sitofp %1203 : vector<1x256xi32> to vector<1x256xf32>
    %1205 = vector.broadcast %1204 : vector<1x256xf32> to vector<4x256xf32>
    %1206 = arith.mulf %1191, %1205 : vector<4x256xf32>
    %1207 = vector.extract_strided_slice %694 {offsets = [0, 42], sizes = [4, 1], strides = [1, 1]} : vector<4x49xf32> to vector<4x1xf32>
    %1208 = vector.broadcast %1207 : vector<4x1xf32> to vector<4x256xf32>
    %1209 = arith.mulf %1206, %1208 : vector<4x256xf32>
    %1210 = arith.addf %1190, %1209 : vector<4x256xf32>
    %c210_i32 = arith.constant 210 : i32
    %1211 = tpu.dynamic_rotate %695 by %c210_i32 dim 1 : vector<4x256xf32>, i32 -> vector<4x256xf32>
    %c-3_i32_220 = arith.constant -3 : i32
    %1212 = vector.broadcast %c-3_i32_220 : i32 to vector<1x256xi32>
    %1213 = arith.cmpi sge, %0, %1212 : vector<1x256xi32>
    %c13_i32_221 = arith.constant 13 : i32
    %1214 = vector.broadcast %c13_i32_221 : i32 to vector<1x256xi32>
    %1215 = arith.cmpi slt, %0, %1214 : vector<1x256xi32>
    %1216 = arith.andi %1213, %1215 : vector<1x256xi1>
    %c2_i32_222 = arith.constant 2 : i32
    %1217 = vector.broadcast %c2_i32_222 : i32 to vector<1x256xi32>
    %1218 = arith.cmpi sge, %1, %1217 : vector<1x256xi32>
    %c18_i32_223 = arith.constant 18 : i32
    %1219 = vector.broadcast %c18_i32_223 : i32 to vector<1x256xi32>
    %1220 = arith.cmpi slt, %1, %1219 : vector<1x256xi32>
    %1221 = arith.andi %1218, %1220 : vector<1x256xi1>
    %1222 = arith.andi %1216, %1221 : vector<1x256xi1>
    %1223 = arith.extui %1222 : vector<1x256xi1> to vector<1x256xi32>
    %1224 = arith.sitofp %1223 : vector<1x256xi32> to vector<1x256xf32>
    %1225 = vector.broadcast %1224 : vector<1x256xf32> to vector<4x256xf32>
    %1226 = arith.mulf %1211, %1225 : vector<4x256xf32>
    %1227 = vector.extract_strided_slice %694 {offsets = [0, 43], sizes = [4, 1], strides = [1, 1]} : vector<4x49xf32> to vector<4x1xf32>
    %1228 = vector.broadcast %1227 : vector<4x1xf32> to vector<4x256xf32>
    %1229 = arith.mulf %1226, %1228 : vector<4x256xf32>
    %1230 = arith.addf %1210, %1229 : vector<4x256xf32>
    %c209_i32 = arith.constant 209 : i32
    %1231 = tpu.dynamic_rotate %695 by %c209_i32 dim 1 : vector<4x256xf32>, i32 -> vector<4x256xf32>
    %c-3_i32_224 = arith.constant -3 : i32
    %1232 = vector.broadcast %c-3_i32_224 : i32 to vector<1x256xi32>
    %1233 = arith.cmpi sge, %0, %1232 : vector<1x256xi32>
    %c13_i32_225 = arith.constant 13 : i32
    %1234 = vector.broadcast %c13_i32_225 : i32 to vector<1x256xi32>
    %1235 = arith.cmpi slt, %0, %1234 : vector<1x256xi32>
    %1236 = arith.andi %1233, %1235 : vector<1x256xi1>
    %c1_i32_226 = arith.constant 1 : i32
    %1237 = vector.broadcast %c1_i32_226 : i32 to vector<1x256xi32>
    %1238 = arith.cmpi sge, %1, %1237 : vector<1x256xi32>
    %c17_i32_227 = arith.constant 17 : i32
    %1239 = vector.broadcast %c17_i32_227 : i32 to vector<1x256xi32>
    %1240 = arith.cmpi slt, %1, %1239 : vector<1x256xi32>
    %1241 = arith.andi %1238, %1240 : vector<1x256xi1>
    %1242 = arith.andi %1236, %1241 : vector<1x256xi1>
    %1243 = arith.extui %1242 : vector<1x256xi1> to vector<1x256xi32>
    %1244 = arith.sitofp %1243 : vector<1x256xi32> to vector<1x256xf32>
    %1245 = vector.broadcast %1244 : vector<1x256xf32> to vector<4x256xf32>
    %1246 = arith.mulf %1231, %1245 : vector<4x256xf32>
    %1247 = vector.extract_strided_slice %694 {offsets = [0, 44], sizes = [4, 1], strides = [1, 1]} : vector<4x49xf32> to vector<4x1xf32>
    %1248 = vector.broadcast %1247 : vector<4x1xf32> to vector<4x256xf32>
    %1249 = arith.mulf %1246, %1248 : vector<4x256xf32>
    %1250 = arith.addf %1230, %1249 : vector<4x256xf32>
    %c208_i32 = arith.constant 208 : i32
    %1251 = tpu.dynamic_rotate %695 by %c208_i32 dim 1 : vector<4x256xf32>, i32 -> vector<4x256xf32>
    %c-3_i32_228 = arith.constant -3 : i32
    %1252 = vector.broadcast %c-3_i32_228 : i32 to vector<1x256xi32>
    %1253 = arith.cmpi sge, %0, %1252 : vector<1x256xi32>
    %c13_i32_229 = arith.constant 13 : i32
    %1254 = vector.broadcast %c13_i32_229 : i32 to vector<1x256xi32>
    %1255 = arith.cmpi slt, %0, %1254 : vector<1x256xi32>
    %1256 = arith.andi %1253, %1255 : vector<1x256xi1>
    %1257 = arith.extui %1256 : vector<1x256xi1> to vector<1x256xi32>
    %1258 = arith.sitofp %1257 : vector<1x256xi32> to vector<1x256xf32>
    %1259 = vector.broadcast %1258 : vector<1x256xf32> to vector<4x256xf32>
    %1260 = arith.mulf %1251, %1259 : vector<4x256xf32>
    %1261 = vector.extract_strided_slice %694 {offsets = [0, 45], sizes = [4, 1], strides = [1, 1]} : vector<4x49xf32> to vector<4x1xf32>
    %1262 = vector.broadcast %1261 : vector<4x1xf32> to vector<4x256xf32>
    %1263 = arith.mulf %1260, %1262 : vector<4x256xf32>
    %1264 = arith.addf %1250, %1263 : vector<4x256xf32>
    %c207_i32 = arith.constant 207 : i32
    %1265 = tpu.dynamic_rotate %695 by %c207_i32 dim 1 : vector<4x256xf32>, i32 -> vector<4x256xf32>
    %c-3_i32_230 = arith.constant -3 : i32
    %1266 = vector.broadcast %c-3_i32_230 : i32 to vector<1x256xi32>
    %1267 = arith.cmpi sge, %0, %1266 : vector<1x256xi32>
    %c13_i32_231 = arith.constant 13 : i32
    %1268 = vector.broadcast %c13_i32_231 : i32 to vector<1x256xi32>
    %1269 = arith.cmpi slt, %0, %1268 : vector<1x256xi32>
    %1270 = arith.andi %1267, %1269 : vector<1x256xi1>
    %c-1_i32_232 = arith.constant -1 : i32
    %1271 = vector.broadcast %c-1_i32_232 : i32 to vector<1x256xi32>
    %1272 = arith.cmpi sge, %1, %1271 : vector<1x256xi32>
    %c15_i32_233 = arith.constant 15 : i32
    %1273 = vector.broadcast %c15_i32_233 : i32 to vector<1x256xi32>
    %1274 = arith.cmpi slt, %1, %1273 : vector<1x256xi32>
    %1275 = arith.andi %1272, %1274 : vector<1x256xi1>
    %1276 = arith.andi %1270, %1275 : vector<1x256xi1>
    %1277 = arith.extui %1276 : vector<1x256xi1> to vector<1x256xi32>
    %1278 = arith.sitofp %1277 : vector<1x256xi32> to vector<1x256xf32>
    %1279 = vector.broadcast %1278 : vector<1x256xf32> to vector<4x256xf32>
    %1280 = arith.mulf %1265, %1279 : vector<4x256xf32>
    %1281 = vector.extract_strided_slice %694 {offsets = [0, 46], sizes = [4, 1], strides = [1, 1]} : vector<4x49xf32> to vector<4x1xf32>
    %1282 = vector.broadcast %1281 : vector<4x1xf32> to vector<4x256xf32>
    %1283 = arith.mulf %1280, %1282 : vector<4x256xf32>
    %1284 = arith.addf %1264, %1283 : vector<4x256xf32>
    %c206_i32 = arith.constant 206 : i32
    %1285 = tpu.dynamic_rotate %695 by %c206_i32 dim 1 : vector<4x256xf32>, i32 -> vector<4x256xf32>
    %c-3_i32_234 = arith.constant -3 : i32
    %1286 = vector.broadcast %c-3_i32_234 : i32 to vector<1x256xi32>
    %1287 = arith.cmpi sge, %0, %1286 : vector<1x256xi32>
    %c13_i32_235 = arith.constant 13 : i32
    %1288 = vector.broadcast %c13_i32_235 : i32 to vector<1x256xi32>
    %1289 = arith.cmpi slt, %0, %1288 : vector<1x256xi32>
    %1290 = arith.andi %1287, %1289 : vector<1x256xi1>
    %c-2_i32_236 = arith.constant -2 : i32
    %1291 = vector.broadcast %c-2_i32_236 : i32 to vector<1x256xi32>
    %1292 = arith.cmpi sge, %1, %1291 : vector<1x256xi32>
    %c14_i32_237 = arith.constant 14 : i32
    %1293 = vector.broadcast %c14_i32_237 : i32 to vector<1x256xi32>
    %1294 = arith.cmpi slt, %1, %1293 : vector<1x256xi32>
    %1295 = arith.andi %1292, %1294 : vector<1x256xi1>
    %1296 = arith.andi %1290, %1295 : vector<1x256xi1>
    %1297 = arith.extui %1296 : vector<1x256xi1> to vector<1x256xi32>
    %1298 = arith.sitofp %1297 : vector<1x256xi32> to vector<1x256xf32>
    %1299 = vector.broadcast %1298 : vector<1x256xf32> to vector<4x256xf32>
    %1300 = arith.mulf %1285, %1299 : vector<4x256xf32>
    %1301 = vector.extract_strided_slice %694 {offsets = [0, 47], sizes = [4, 1], strides = [1, 1]} : vector<4x49xf32> to vector<4x1xf32>
    %1302 = vector.broadcast %1301 : vector<4x1xf32> to vector<4x256xf32>
    %1303 = arith.mulf %1300, %1302 : vector<4x256xf32>
    %1304 = arith.addf %1284, %1303 : vector<4x256xf32>
    %c205_i32 = arith.constant 205 : i32
    %1305 = tpu.dynamic_rotate %695 by %c205_i32 dim 1 : vector<4x256xf32>, i32 -> vector<4x256xf32>
    %c-3_i32_238 = arith.constant -3 : i32
    %1306 = vector.broadcast %c-3_i32_238 : i32 to vector<1x256xi32>
    %1307 = arith.cmpi sge, %0, %1306 : vector<1x256xi32>
    %c13_i32_239 = arith.constant 13 : i32
    %1308 = vector.broadcast %c13_i32_239 : i32 to vector<1x256xi32>
    %1309 = arith.cmpi slt, %0, %1308 : vector<1x256xi32>
    %1310 = arith.andi %1307, %1309 : vector<1x256xi1>
    %c-3_i32_240 = arith.constant -3 : i32
    %1311 = vector.broadcast %c-3_i32_240 : i32 to vector<1x256xi32>
    %1312 = arith.cmpi sge, %1, %1311 : vector<1x256xi32>
    %c13_i32_241 = arith.constant 13 : i32
    %1313 = vector.broadcast %c13_i32_241 : i32 to vector<1x256xi32>
    %1314 = arith.cmpi slt, %1, %1313 : vector<1x256xi32>
    %1315 = arith.andi %1312, %1314 : vector<1x256xi1>
    %1316 = arith.andi %1310, %1315 : vector<1x256xi1>
    %1317 = arith.extui %1316 : vector<1x256xi1> to vector<1x256xi32>
    %1318 = arith.sitofp %1317 : vector<1x256xi32> to vector<1x256xf32>
    %1319 = vector.broadcast %1318 : vector<1x256xf32> to vector<4x256xf32>
    %1320 = arith.mulf %1305, %1319 : vector<4x256xf32>
    %1321 = vector.extract_strided_slice %694 {offsets = [0, 48], sizes = [4, 1], strides = [1, 1]} : vector<4x49xf32> to vector<4x1xf32>
    %1322 = vector.broadcast %1321 : vector<4x1xf32> to vector<4x256xf32>
    %1323 = arith.mulf %1320, %1322 : vector<4x256xf32>
    %1324 = arith.addf %1304, %1323 : vector<4x256xf32>
    %1325 = arith.mulf %1324, %1324 : vector<4x256xf32>
    %1326 = arith.mulf %1324, %1325 : vector<4x256xf32>
    %cst_242 = arith.constant 4.471500e-02 : f32
    %1327 = vector.broadcast %cst_242 : f32 to vector<4x256xf32>
    %1328 = arith.mulf %1327, %1326 : vector<4x256xf32>
    %1329 = arith.addf %1324, %1328 : vector<4x256xf32>
    %cst_243 = arith.constant 0.797884583 : f32
    %1330 = vector.broadcast %cst_243 : f32 to vector<4x256xf32>
    %1331 = arith.mulf %1330, %1329 : vector<4x256xf32>
    %1332 = math.tanh %1331 : vector<4x256xf32>
    %cst_244 = arith.constant 1.000000e+00 : f32
    %1333 = vector.broadcast %cst_244 : f32 to vector<4x256xf32>
    %1334 = arith.addf %1333, %1332 : vector<4x256xf32>
    %cst_245 = arith.constant 5.000000e-01 : f32
    %1335 = vector.broadcast %cst_245 : f32 to vector<4x256xf32>
    %1336 = arith.mulf %1335, %1334 : vector<4x256xf32>
    %1337 = arith.mulf %1324, %1336 : vector<4x256xf32>
    %1338 = vector.extract_strided_slice %73 {offsets = [0, 12], sizes = [8, 1], strides = [1, 1]} : vector<8x16xf32> to vector<8x1xf32>
    %1339 = vector.extract_strided_slice %1337 {offsets = [0, 0], sizes = [1, 256], strides = [1, 1]} : vector<4x256xf32> to vector<1x256xf32>
    %1340 = vector.broadcast %1338 : vector<8x1xf32> to vector<8x256xf32>
    %1341 = vector.broadcast %1339 : vector<1x256xf32> to vector<8x256xf32>
    %1342 = arith.mulf %1340, %1341 : vector<8x256xf32>
    %1343 = arith.addf %693, %1342 : vector<8x256xf32>
    %1344 = vector.extract_strided_slice %73 {offsets = [0, 13], sizes = [8, 1], strides = [1, 1]} : vector<8x16xf32> to vector<8x1xf32>
    %1345 = vector.extract_strided_slice %1337 {offsets = [1, 0], sizes = [1, 256], strides = [1, 1]} : vector<4x256xf32> to vector<1x256xf32>
    %1346 = vector.broadcast %1344 : vector<8x1xf32> to vector<8x256xf32>
    %1347 = vector.broadcast %1345 : vector<1x256xf32> to vector<8x256xf32>
    %1348 = arith.mulf %1346, %1347 : vector<8x256xf32>
    %1349 = arith.addf %1343, %1348 : vector<8x256xf32>
    %1350 = vector.extract_strided_slice %73 {offsets = [0, 14], sizes = [8, 1], strides = [1, 1]} : vector<8x16xf32> to vector<8x1xf32>
    %1351 = vector.extract_strided_slice %1337 {offsets = [2, 0], sizes = [1, 256], strides = [1, 1]} : vector<4x256xf32> to vector<1x256xf32>
    %1352 = vector.broadcast %1350 : vector<8x1xf32> to vector<8x256xf32>
    %1353 = vector.broadcast %1351 : vector<1x256xf32> to vector<8x256xf32>
    %1354 = arith.mulf %1352, %1353 : vector<8x256xf32>
    %1355 = arith.addf %1349, %1354 : vector<8x256xf32>
    %1356 = vector.extract_strided_slice %73 {offsets = [0, 15], sizes = [8, 1], strides = [1, 1]} : vector<8x16xf32> to vector<8x1xf32>
    %1357 = vector.extract_strided_slice %1337 {offsets = [3, 0], sizes = [1, 256], strides = [1, 1]} : vector<4x256xf32> to vector<1x256xf32>
    %1358 = vector.broadcast %1356 : vector<8x1xf32> to vector<8x256xf32>
    %1359 = vector.broadcast %1357 : vector<1x256xf32> to vector<8x256xf32>
    %1360 = arith.mulf %1358, %1359 : vector<8x256xf32>
    %1361 = arith.addf %1355, %1360 : vector<8x256xf32>
    %c0_246 = arith.constant 0 : index
    %c0_247 = arith.constant 0 : index
    %1362 = vector.load %arg12[%c0_246, %c0_247] : memref<8x1xf32, #tpu.memory_space<vmem>>, vector<8x1xf32>
    %1363 = vector.broadcast %1362 : vector<8x1xf32> to vector<8x256xf32>
    %1364 = arith.addf %1361, %1363 : vector<8x256xf32>
    %cst_248 = arith.constant 0.000000e+00 : f32
    %1365 = vector.broadcast %cst_248 : f32 to vector<8x256xf32>
    %1366 = arith.maximumf %1364, %1365 : vector<8x256xf32>
    %c0_249 = arith.constant 0 : index
    %c0_250 = arith.constant 0 : index
    %1367 = vector.load %arg13[%c0_249, %c0_250] : memref<8x1xf32, #tpu.memory_space<vmem>>, vector<8x1xf32>
    %1368 = vector.broadcast %1367 : vector<8x1xf32> to vector<8x256xf32>
    %1369 = arith.mulf %1366, %1368 : vector<8x256xf32>
    %cst_251 = arith.constant dense<0.000000e+00> : vector<256xf32>
    %1370 = vector.multi_reduction <add>, %1369, %cst_251 [0] : vector<8x256xf32> to vector<256xf32>
    %1371 = vector.shape_cast %1370 : vector<256xf32> to vector<1x256xf32>
    %c0_252 = arith.constant 0 : index
    %c0_253 = arith.constant 0 : index
    %1372 = vector.load %arg14[%c0_252, %c0_253] : memref<1x1xf32, #tpu.memory_space<vmem>>, vector<1x1xf32>
    %1373 = vector.broadcast %1372 : vector<1x1xf32> to vector<1x256xf32>
    %1374 = arith.addf %1371, %1373 : vector<1x256xf32>
    %1375 = arith.negf %1374 : vector<1x256xf32>
    %1376 = math.exp %1375 : vector<1x256xf32>
    %cst_254 = arith.constant 1.000000e+00 : f32
    %1377 = vector.broadcast %cst_254 : f32 to vector<1x256xf32>
    %1378 = arith.addf %1377, %1376 : vector<1x256xf32>
    %1379 = arith.divf %1377, %1378 : vector<1x256xf32>
    %1380 = vector.broadcast %1379 : vector<1x256xf32> to vector<4x256xf32>
    %1381 = arith.mulf %5, %1380 : vector<4x256xf32>
    %c0_255 = arith.constant 0 : index
    %c0_256 = arith.constant 0 : index
    %c0_257 = arith.constant 0 : index
    %1382 = vector.load %arg15[%c0_255, %c0_256, %c0_257] : memref<1x4x256xf32, #tpu.memory_space<vmem>>, vector<1x4x256xf32>
    %1383 = vector.shape_cast %1382 : vector<1x4x256xf32> to vector<4x256xf32>
    %1384 = vector.shape_cast %1381 : vector<4x256xf32> to vector<1x4x256xf32>
    tpu.vector_store %arg15[%c0_255, %c0_256, %c0_257], %1384 {strides = array<i32>} : memref<1x4x256xf32, #tpu.memory_space<vmem>>, vector<1x4x256xf32>,
    return
  }
  func.func @transform_0(%arg0: i32) -> (i32, i32) {
    %c0_i32 = arith.constant 0 : i32
    %c0_i32_0 = arith.constant 0 : i32
    %c0_i32_1 = arith.constant 0 : i32
    return %c0_i32, %c0_i32_0 : i32, i32
  }
  func.func @transform_1(%arg0: i32) -> (i32, i32, i32) {
    %c0_i32 = arith.constant 0 : i32
    %c0_i32_0 = arith.constant 0 : i32
    %c0_i32_1 = arith.constant 0 : i32
    return %arg0, %c0_i32, %c0_i32_0 : i32, i32, i32
  }
  func.func @transform_2(%arg0: i32) -> (i32, i32, i32) {
    %c0_i32 = arith.constant 0 : i32
    %c0_i32_0 = arith.constant 0 : i32
    %c0_i32_1 = arith.constant 0 : i32
    return %arg0, %c0_i32, %c0_i32_0 : i32, i32, i32
  }
  func.func @transform_3(%arg0: i32) -> (i32, i32) {
    %c0_i32 = arith.constant 0 : i32
    %c0_i32_0 = arith.constant 0 : i32
    %c0_i32_1 = arith.constant 0 : i32
    return %c0_i32, %c0_i32_0 : i32, i32
  }
  func.func @transform_4(%arg0: i32) -> (i32, i32) {
    %c0_i32 = arith.constant 0 : i32
    %c0_i32_0 = arith.constant 0 : i32
    %c0_i32_1 = arith.constant 0 : i32
    return %c0_i32, %c0_i32_0 : i32, i32
  }
  func.func @transform_5(%arg0: i32) -> (i32, i32) {
    %c0_i32 = arith.constant 0 : i32
    %c0_i32_0 = arith.constant 0 : i32
    %c0_i32_1 = arith.constant 0 : i32
    return %c0_i32, %c0_i32_0 : i32, i32
  }
  func.func @transform_6(%arg0: i32) -> (i32, i32) {
    %c0_i32 = arith.constant 0 : i32
    %c0_i32_0 = arith.constant 0 : i32
    %c0_i32_1 = arith.constant 0 : i32
    return %c0_i32, %c0_i32_0 : i32, i32
  }
  func.func @transform_7(%arg0: i32) -> (i32, i32) {
    %c0_i32 = arith.constant 0 : i32
    %c0_i32_0 = arith.constant 0 : i32
    %c0_i32_1 = arith.constant 0 : i32
    return %c0_i32, %c0_i32_0 : i32, i32
  }
  func.func @transform_8(%arg0: i32) -> (i32, i32) {
    %c0_i32 = arith.constant 0 : i32
    %c0_i32_0 = arith.constant 0 : i32
    %c0_i32_1 = arith.constant 0 : i32
    return %c0_i32, %c0_i32_0 : i32, i32
  }
  func.func @transform_9(%arg0: i32) -> (i32, i32) {
    %c0_i32 = arith.constant 0 : i32
    %c0_i32_0 = arith.constant 0 : i32
    %c0_i32_1 = arith.constant 0 : i32
    return %c0_i32, %c0_i32_0 : i32, i32
  }
  func.func @transform_10(%arg0: i32) -> (i32, i32) {
    %c0_i32 = arith.constant 0 : i32
    %c0_i32_0 = arith.constant 0 : i32
    %c0_i32_1 = arith.constant 0 : i32
    return %c0_i32, %c0_i32_0 : i32, i32
  }
  func.func @transform_11(%arg0: i32) -> (i32, i32) {
    %c0_i32 = arith.constant 0 : i32
    %c0_i32_0 = arith.constant 0 : i32
    %c0_i32_1 = arith.constant 0 : i32
    return %c0_i32, %c0_i32_0 : i32, i32
  }
  func.func @transform_12(%arg0: i32) -> (i32, i32) {
    %c0_i32 = arith.constant 0 : i32
    %c0_i32_0 = arith.constant 0 : i32
    %c0_i32_1 = arith.constant 0 : i32
    return %c0_i32, %c0_i32_0 : i32, i32
  }
  func.func @transform_13(%arg0: i32) -> (i32, i32) {
    %c0_i32 = arith.constant 0 : i32
    %c0_i32_0 = arith.constant 0 : i32
    %c0_i32_1 = arith.constant 0 : i32
    return %c0_i32, %c0_i32_0 : i32, i32
  }
  func.func @transform_14(%arg0: i32) -> (i32, i32, i32) {
    %c0_i32 = arith.constant 0 : i32
    %c0_i32_0 = arith.constant 0 : i32
    %c0_i32_1 = arith.constant 0 : i32
    return %arg0, %c0_i32, %c0_i32_0 : i32, i32, i32
  }
}

</mosaic_0001>

<llo_original>
// kernel: attention_block_forward.1
$region0: #{attention_block_forward.1}
  #allocation0 [shape = 'u32[]', space=smem, size = 0x4, offset = 0x4, fixed_abs, tag = 'smem constant byte address 0x4 - core index']
  #allocation1 [shape = 'u32[144,128]{1,0:T(1,128)}', space=vmem, size = 0x12000, scoped, tag = 'internal scratch']
  #allocation2 [shape = 'f32[1,1]{1,0:T(1,128)S(1)}', space=vmem, size = 0x200, scoped, tag = 'scoped memory for attention_block_forward.1']
  %s0 = inlined_call_operand.vmem [shape: s32[2,256], index: 0, kind: input, shape index: {}]
  %s1 = inlined_call_operand.vmem [shape: f32[2,4,256], index: 1, kind: input, shape index: {}]
  %s2 = inlined_call_operand.vmem [shape: f32[2,4,256], index: 2, kind: input, shape index: {}]
  %s3 = inlined_call_operand.vmem [shape: f32[16,4], index: 3, kind: input, shape index: {}]
  %s4 = inlined_call_operand.vmem [shape: f32[16,4], index: 4, kind: input, shape index: {}]
  %s5 = inlined_call_operand.vmem [shape: f32[16,1], index: 5, kind: input, shape index: {}]
  %s6 = inlined_call_operand.vmem [shape: f32[4,1], index: 6, kind: input, shape index: {}]
  %s7 = inlined_call_operand.vmem [shape: f32[4,9], index: 7, kind: input, shape index: {}]
  %s8 = inlined_call_operand.vmem [shape: f32[4,25], index: 8, kind: input, shape index: {}]
  %s9 = inlined_call_operand.vmem [shape: f32[4,49], index: 9, kind: input, shape index: {}]
  %s10 = inlined_call_operand.vmem [shape: f32[8,16], index: 10, kind: input, shape index: {}]
  %s11 = inlined_call_operand.vmem [shape: f32[8,1], index: 11, kind: input, shape index: {}]
  %s12 = inlined_call_operand.vmem [shape: f32[8,1], index: 12, kind: input, shape index: {}]
  %s13 = inlined_call_operand.<no memory space> [shape: f32[1,1], index: 13, kind: input, shape index: {}]
  %s14 = inlined_call_operand.vmem [shape: f32[2,4,256], index: 14, kind: output, shape index: {}]
  %s15 = sld [smem:[#allocation0]]
  $region89: #{attention_block_forward.1} parent=0
    _
  %s17 = ssub.s32 1, %s15
  %s18 = scalar_select 0, %s17, %s15
  %v19 = vstv %s13
  %20 = vst [vmem:[#allocation2] sm:$0x1] %v19
  loop: start=0, step=1, limit=4
  $region2: #{attention_block_forward.1} parent=0 // loop_pre_header
    _
  $region3: #{attention_block_forward.1} parent=0 // loop_header
    %s22 = sphi 0, %s26
    %p23 = scmp.ge.s32.totalorder %s22, 4
    %s30 = sphi 0, %s30
    %s32 = sphi 0, %s30
    %s33 = sphi 0, %s32
    %s47 = sphi 0, %s33
    %s53 = sphi 0, %s55
    %s56 = sphi 0, %s53
    %s57 = sphi 0, %s56
    %s73 = sphi 0, %s57
    %s79 = sphi 0, %s81
    %s82 = sphi 0, %s79
    %s83 = sphi 0, %s82
    %s99 = sphi 0, %s83
    %s103 = sphi 0, %s103
    %s105 = sphi 0, %s103
    %s106 = sphi 0, %s105
    %s120 = sphi 0, %s106
    %s124 = sphi 0, %s124
    %s126 = sphi 0, %s124
    %s127 = sphi 0, %s126
    %s141 = sphi 0, %s127
    %s145 = sphi 0, %s145
    %s147 = sphi 0, %s145
    %s148 = sphi 0, %s147
    %s162 = sphi 0, %s148
    %s166 = sphi 0, %s166
    %s168 = sphi 0, %s166
    %s169 = sphi 0, %s168
    %s183 = sphi 0, %s169
    %s187 = sphi 0, %s187
    %s189 = sphi 0, %s187
    %s190 = sphi 0, %s189
    %s204 = sphi 0, %s190
    %s208 = sphi 0, %s208
    %s210 = sphi 0, %s208
    %s211 = sphi 0, %s210
    %s225 = sphi 0, %s211
    %s229 = sphi 0, %s229
    %s231 = sphi 0, %s229
    %s232 = sphi 0, %s231
    %s246 = sphi 0, %s232
    %s250 = sphi 0, %s250
    %s252 = sphi 0, %s250
    %s253 = sphi 0, %s252
    %s267 = sphi 0, %s253
    %s271 = sphi 0, %s271
    %s273 = sphi 0, %s271
    %s274 = sphi 0, %s273
    %s288 = sphi 0, %s274
    %s292 = sphi 0, %s292
    %s294 = sphi 0, %s292
    %s295 = sphi 0, %s294
    %s309 = sphi 0, %s295
    %s313 = sphi 0, %s313
    %s315 = sphi 0, %s313
    %s316 = sphi 0, %s315
    %s330 = sphi 0, %s316
    %s336 = sphi 0, %s338
    %s339 = sphi 0, %s336
    %s340 = sphi 0, %s339
    %s356 = sphi 0, %s340
  $region4: #{attention_block_forward.1} parent=0 // loop_header_branch
    %25 = sbr.rel (%p23) target = $region8
  $region5: #{attention_block_forward.1} parent=0 // loop_body
    %s27 = ssub.s32 %s22, 1
    %s28 = ssub.s32 %s22, 2
    %s29 = sadd.s32 %s22, 1
    %s31 = sadd.s32 %s30, 1
    %p34 = scmp.eq.s32.totalorder %s22, 1
    %p35 = scmp.ne.s32.totalorder %s30, %s32
    %p36 = scmp.eq.s32.totalorder %s22, 0
    %p37 = por %p35, %p36
    %p38 = scmp.ne.s32.totalorder %s30, %s32
    %p39 = scmp.eq.s32.totalorder %s27, 1
    %p40 = por %p38, %p39
    %p41 = scmp.ne.s32.totalorder %s32, %s33
    %p42 = scmp.eq.s32.totalorder %s27, 0
    %p43 = por %p41, %p42
    %p44 = scmp.ne.s32.totalorder %s32, %s33
    %p45 = scmp.eq.s32.totalorder %s28, 1
    %p46 = por %p44, %p45
    %p48 = scmp.ne.s32.totalorder %s33, %s47
    %p49 = scmp.eq.s32.totalorder %s28, 0
    %p50 = por %p48, %p49
    %s51 = ssub.s32 %s22, %s29
    %p52 = scmp.eq.s32.totalorder %s51, 0
    %s54 = sadd.s32 %s53, 1
    %s55 = scalar_select %p52, %s53, %s54
    %p58 = pneg %p52
    %p59 = scmp.eq.s32.totalorder %s22, 1
    %p60 = por %p58, %p59
    %p61 = scmp.ne.s32.totalorder %s53, %s56
    %p62 = scmp.eq.s32.totalorder %s22, 0
    %p63 = por %p61, %p62
    %p64 = scmp.ne.s32.totalorder %s53, %s56
    %p65 = scmp.eq.s32.totalorder %s27, 1
    %p66 = por %p64, %p65
    %p67 = scmp.ne.s32.totalorder %s56, %s57
    %p68 = scmp.eq.s32.totalorder %s27, 0
    %p69 = por %p67, %p68
    %p70 = scmp.ne.s32.totalorder %s56, %s57
    %p71 = scmp.eq.s32.totalorder %s28, 1
    %p72 = por %p70, %p71
    %p74 = scmp.ne.s32.totalorder %s57, %s73
    %p75 = scmp.eq.s32.totalorder %s28, 0
    %p76 = por %p74, %p75
    %s77 = ssub.s32 %s22, %s29
    %p78 = scmp.eq.s32.totalorder %s77, 0
    %s80 = sadd.s32 %s79, 1
    %s81 = scalar_select %p78, %s79, %s80
    %p84 = pneg %p78
    %p85 = scmp.eq.s32.totalorder %s22, 1
    %p86 = por %p84, %p85
    %p87 = scmp.ne.s32.totalorder %s79, %s82
    %p88 = scmp.eq.s32.totalorder %s22, 0
    %p89 = por %p87, %p88
    %p90 = scmp.ne.s32.totalorder %s79, %s82
    %p91 = scmp.eq.s32.totalorder %s27, 1
    %p92 = por %p90, %p91
    %p93 = scmp.ne.s32.totalorder %s82, %s83
    %p94 = scmp.eq.s32.totalorder %s27, 0
    %p95 = por %p93, %p94
    %p96 = scmp.ne.s32.totalorder %s82, %s83
    %p97 = scmp.eq.s32.totalorder %s28, 1
    %p98 = por %p96, %p97
    %p100 = scmp.ne.s32.totalorder %s83, %s99
    %p101 = scmp.eq.s32.totalorder %s28, 0
    %p102 = por %p100, %p101
    %s104 = sadd.s32 %s103, 1
    %p107 = scmp.eq.s32.totalorder %s22, 1
    %p108 = scmp.ne.s32.totalorder %s103, %s105
    %p109 = scmp.eq.s32.totalorder %s22, 0
    %p110 = por %p108, %p109
    %p111 = scmp.ne.s32.totalorder %s103, %s105
    %p112 = scmp.eq.s32.totalorder %s27, 1
    %p113 = por %p111, %p112
    %p114 = scmp.ne.s32.totalorder %s105, %s106
    %p115 = scmp.eq.s32.totalorder %s27, 0
    %p116 = por %p114, %p115
    %p117 = scmp.ne.s32.totalorder %s105, %s106
    %p118 = scmp.eq.s32.totalorder %s28, 1
    %p119 = por %p117, %p118
    %p121 = scmp.ne.s32.totalorder %s106, %s120
    %p122 = scmp.eq.s32.totalorder %s28, 0
    %p123 = por %p121, %p122
    %s125 = sadd.s32 %s124, 1
    %p128 = scmp.eq.s32.totalorder %s22, 1
    %p129 = scmp.ne.s32.totalorder %s124, %s126
    %p130 = scmp.eq.s32.totalorder %s22, 0
    %p131 = por %p129, %p130
    %p132 = scmp.ne.s32.totalorder %s124, %s126
    %p133 = scmp.eq.s32.totalorder %s27, 1
    %p134 = por %p132, %p133
    %p135 = scmp.ne.s32.totalorder %s126, %s127
    %p136 = scmp.eq.s32.totalorder %s27, 0
    %p137 = por %p135, %p136
    %p138 = scmp.ne.s32.totalorder %s126, %s127
    %p139 = scmp.eq.s32.totalorder %s28, 1
    %p140 = por %p138, %p139
    %p142 = scmp.ne.s32.totalorder %s127, %s141
    %p143 = scmp.eq.s32.totalorder %s28, 0
    %p144 = por %p142, %p143
    %s146 = sadd.s32 %s145, 1
    %p149 = scmp.eq.s32.totalorder %s22, 1
    %p150 = scmp.ne.s32.totalorder %s145, %s147
    %p151 = scmp.eq.s32.totalorder %s22, 0
    %p152 = por %p150, %p151
    %p153 = scmp.ne.s32.totalorder %s145, %s147
    %p154 = scmp.eq.s32.totalorder %s27, 1
    %p155 = por %p153, %p154
    %p156 = scmp.ne.s32.totalorder %s147, %s148
    %p157 = scmp.eq.s32.totalorder %s27, 0
    %p158 = por %p156, %p157
    %p159 = scmp.ne.s32.totalorder %s147, %s148
    %p160 = scmp.eq.s32.totalorder %s28, 1
    %p161 = por %p159, %p160
    %p163 = scmp.ne.s32.totalorder %s148, %s162
    %p164 = scmp.eq.s32.totalorder %s28, 0
    %p165 = por %p163, %p164
    %s167 = sadd.s32 %s166, 1
    %p170 = scmp.eq.s32.totalorder %s22, 1
    %p171 = scmp.ne.s32.totalorder %s166, %s168
    %p172 = scmp.eq.s32.totalorder %s22, 0
    %p173 = por %p171, %p172
    %p174 = scmp.ne.s32.totalorder %s166, %s168
    %p175 = scmp.eq.s32.totalorder %s27, 1
    %p176 = por %p174, %p175
    %p177 = scmp.ne.s32.totalorder %s168, %s169
    %p178 = scmp.eq.s32.totalorder %s27, 0
    %p179 = por %p177, %p178
    %p180 = scmp.ne.s32.totalorder %s168, %s169
    %p181 = scmp.eq.s32.totalorder %s28, 1
    %p182 = por %p180, %p181
    %p184 = scmp.ne.s32.totalorder %s169, %s183
    %p185 = scmp.eq.s32.totalorder %s28, 0
    %p186 = por %p184, %p185
    %s188 = sadd.s32 %s187, 1
    %p191 = scmp.eq.s32.totalorder %s22, 1
    %p192 = scmp.ne.s32.totalorder %s187, %s189
    %p193 = scmp.eq.s32.totalorder %s22, 0
    %p194 = por %p192, %p193
    %p195 = scmp.ne.s32.totalorder %s187, %s189
    %p196 = scmp.eq.s32.totalorder %s27, 1
    %p197 = por %p195, %p196
    %p198 = scmp.ne.s32.totalorder %s189, %s190
    %p199 = scmp.eq.s32.totalorder %s27, 0
    %p200 = por %p198, %p199
    %p201 = scmp.ne.s32.totalorder %s189, %s190
    %p202 = scmp.eq.s32.totalorder %s28, 1
    %p203 = por %p201, %p202
    %p205 = scmp.ne.s32.totalorder %s190, %s204
    %p206 = scmp.eq.s32.totalorder %s28, 0
    %p207 = por %p205, %p206
    %s209 = sadd.s32 %s208, 1
    %p212 = scmp.eq.s32.totalorder %s22, 1
    %p213 = scmp.ne.s32.totalorder %s208, %s210
    %p214 = scmp.eq.s32.totalorder %s22, 0
    %p215 = por %p213, %p214
    %p216 = scmp.ne.s32.totalorder %s208, %s210
    %p217 = scmp.eq.s32.totalorder %s27, 1
    %p218 = por %p216, %p217
    %p219 = scmp.ne.s32.totalorder %s210, %s211
    %p220 = scmp.eq.s32.totalorder %s27, 0
    %p221 = por %p219, %p220
    %p222 = scmp.ne.s32.totalorder %s210, %s211
    %p223 = scmp.eq.s32.totalorder %s28, 1
    %p224 = por %p222, %p223
    %p226 = scmp.ne.s32.totalorder %s211, %s225
    %p227 = scmp.eq.s32.totalorder %s28, 0
    %p228 = por %p226, %p227
    %s230 = sadd.s32 %s229, 1
    %p233 = scmp.eq.s32.totalorder %s22, 1
    %p234 = scmp.ne.s32.totalorder %s229, %s231
    %p235 = scmp.eq.s32.totalorder %s22, 0
    %p236 = por %p234, %p235
    %p237 = scmp.ne.s32.totalorder %s229, %s231
    %p238 = scmp.eq.s32.totalorder %s27, 1
    %p239 = por %p237, %p238
    %p240 = scmp.ne.s32.totalorder %s231, %s232
    %p241 = scmp.eq.s32.totalorder %s27, 0
    %p242 = por %p240, %p241
    %p243 = scmp.ne.s32.totalorder %s231, %s232
    %p244 = scmp.eq.s32.totalorder %s28, 1
    %p245 = por %p243, %p244
    %p247 = scmp.ne.s32.totalorder %s232, %s246
    %p248 = scmp.eq.s32.totalorder %s28, 0
    %p249 = por %p247, %p248
    %s251 = sadd.s32 %s250, 1
    %p254 = scmp.eq.s32.totalorder %s22, 1
    %p255 = scmp.ne.s32.totalorder %s250, %s252
    %p256 = scmp.eq.s32.totalorder %s22, 0
    %p257 = por %p255, %p256
    %p258 = scmp.ne.s32.totalorder %s250, %s252
    %p259 = scmp.eq.s32.totalorder %s27, 1
    %p260 = por %p258, %p259
    %p261 = scmp.ne.s32.totalorder %s252, %s253
    %p262 = scmp.eq.s32.totalorder %s27, 0
    %p263 = por %p261, %p262
    %p264 = scmp.ne.s32.totalorder %s252, %s253
    %p265 = scmp.eq.s32.totalorder %s28, 1
    %p266 = por %p264, %p265
    %p268 = scmp.ne.s32.totalorder %s253, %s267
    %p269 = scmp.eq.s32.totalorder %s28, 0
    %p270 = por %p268, %p269
    %s272 = sadd.s32 %s271, 1
    %p275 = scmp.eq.s32.totalorder %s22, 1
    %p276 = scmp.ne.s32.totalorder %s271, %s273
    %p277 = scmp.eq.s32.totalorder %s22, 0
    %p278 = por %p276, %p277
    %p279 = scmp.ne.s32.totalorder %s271, %s273
    %p280 = scmp.eq.s32.totalorder %s27, 1
    %p281 = por %p279, %p280
    %p282 = scmp.ne.s32.totalorder %s273, %s274
    %p283 = scmp.eq.s32.totalorder %s27, 0
    %p284 = por %p282, %p283
    %p285 = scmp.ne.s32.totalorder %s273, %s274
    %p286 = scmp.eq.s32.totalorder %s28, 1
    %p287 = por %p285, %p286
    %p289 = scmp.ne.s32.totalorder %s274, %s288
    %p290 = scmp.eq.s32.totalorder %s28, 0
    %p291 = por %p289, %p290
    %s293 = sadd.s32 %s292, 1
    %p296 = scmp.eq.s32.totalorder %s22, 1
    %p297 = scmp.ne.s32.totalorder %s292, %s294
    %p298 = scmp.eq.s32.totalorder %s22, 0
    %p299 = por %p297, %p298
    %p300 = scmp.ne.s32.totalorder %s292, %s294
    %p301 = scmp.eq.s32.totalorder %s27, 1
    %p302 = por %p300, %p301
    %p303 = scmp.ne.s32.totalorder %s294, %s295
    %p304 = scmp.eq.s32.totalorder %s27, 0
    %p305 = por %p303, %p304
    %p306 = scmp.ne.s32.totalorder %s294, %s295
    %p307 = scmp.eq.s32.totalorder %s28, 1
    %p308 = por %p306, %p307
    %p310 = scmp.ne.s32.totalorder %s295, %s309
    %p311 = scmp.eq.s32.totalorder %s28, 0
    %p312 = por %p310, %p311
    %s314 = sadd.s32 %s313, 1
    %p317 = scmp.eq.s32.totalorder %s22, 1
    %p318 = scmp.ne.s32.totalorder %s313, %s315
    %p319 = scmp.eq.s32.totalorder %s22, 0
    %p320 = por %p318, %p319
    %p321 = scmp.ne.s32.totalorder %s313, %s315
    %p322 = scmp.eq.s32.totalorder %s27, 1
    %p323 = por %p321, %p322
    %p324 = scmp.ne.s32.totalorder %s315, %s316
    %p325 = scmp.eq.s32.totalorder %s27, 0
    %p326 = por %p324, %p325
    %p327 = scmp.ne.s32.totalorder %s315, %s316
    %p328 = scmp.eq.s32.totalorder %s28, 1
    %p329 = por %p327, %p328
    %p331 = scmp.ne.s32.totalorder %s316, %s330
    %p332 = scmp.eq.s32.totalorder %s28, 0
    %p333 = por %p331, %p332
    %s334 = ssub.s32 %s22, %s29
    %p335 = scmp.eq.s32.totalorder %s334, 0
    %s337 = sadd.s32 %s336, 1
    %s338 = scalar_select %p335, %s336, %s337
    %p341 = pneg %p335
    %p342 = scmp.eq.s32.totalorder %s22, 1
    %p343 = por %p341, %p342
    %p344 = scmp.ne.s32.totalorder %s336, %s339
    %p345 = scmp.eq.s32.totalorder %s22, 0
    %p346 = por %p344, %p345
    %p347 = scmp.ne.s32.totalorder %s336, %s339
    %p348 = scmp.eq.s32.totalorder %s27, 1
    %p349 = por %p347, %p348
    %p350 = scmp.ne.s32.totalorder %s339, %s340
    %p351 = scmp.eq.s32.totalorder %s27, 0
    %p352 = por %p350, %p351
    %p353 = scmp.ne.s32.totalorder %s339, %s340
    %p354 = scmp.eq.s32.totalorder %s28, 1
    %p355 = por %p353, %p354
    %p357 = scmp.ne.s32.totalorder %s340, %s356
    %p358 = scmp.eq.s32.totalorder %s28, 0
    %p359 = por %p357, %p358
    %p360 = scmp.le.s32.totalorder 1, %s22
    %p361 = scmp.lt.s32.totalorder %s22, 3
    %p362 = pnand %p360, %p361
    %p363 = pneg %p362
    // Predicated region
    $region9: #{attention_block_forward.1} parent=5 // pred_check
      _
    $region10: #{attention_block_forward.1} parent=5 // pred_check_branch
      %365 = sbr.rel (%p362) target = $region12
    $region11: #{attention_block_forward.1} parent=5 // pred_region
      %s366 = ssub.s32 %s22, 1
      // Predicated region
      $region13: #{attention_block_forward.1} parent=11 // pred_check
        %p367 = pneg %p43
      $region14: #{attention_block_forward.1} parent=11 // pred_check_branch
        %369 = sbr.rel (%p367) target = $region16
      $region15: #{attention_block_forward.1} parent=11 // pred_region
        _
      $region16: #{attention_block_forward.1} parent=11 // pred_fallthru
        _
      // Predicated region
      $region17: #{attention_block_forward.1} parent=11 // pred_check
        %p370 = pneg %p116
      $region18: #{attention_block_forward.1} parent=11 // pred_check_branch
        %372 = sbr.rel (%p370) target = $region20
      $region19: #{attention_block_forward.1} parent=11 // pred_region
        _
      $region20: #{attention_block_forward.1} parent=11 // pred_fallthru
        _
      // Predicated region
      $region21: #{attention_block_forward.1} parent=11 // pred_check
        %p373 = pneg %p137
      $region22: #{attention_block_forward.1} parent=11 // pred_check_branch
        %375 = sbr.rel (%p373) target = $region24
      $region23: #{attention_block_forward.1} parent=11 // pred_region
        _
      $region24: #{attention_block_forward.1} parent=11 // pred_fallthru
        _
      // Predicated region
      $region25: #{attention_block_forward.1} parent=11 // pred_check
        %p376 = pneg %p158
      $region26: #{attention_block_forward.1} parent=11 // pred_check_branch
        %378 = sbr.rel (%p376) target = $region28
      $region27: #{attention_block_forward.1} parent=11 // pred_region
        _
      $region28: #{attention_block_forward.1} parent=11 // pred_fallthru
        _
      // Predicated region
      $region29: #{attention_block_forward.1} parent=11 // pred_check
        %p379 = pneg %p179
      $region30: #{attention_block_forward.1} parent=11 // pred_check_branch
        %381 = sbr.rel (%p379) target = $region32
      $region31: #{attention_block_forward.1} parent=11 // pred_region
        _
      $region32: #{attention_block_forward.1} parent=11 // pred_fallthru
        _
      // Predicated region
      $region33: #{attention_block_forward.1} parent=11 // pred_check
        %p382 = pneg %p200
      $region34: #{attention_block_forward.1} parent=11 // pred_check_branch
        %384 = sbr.rel (%p382) target = $region36
      $region35: #{attention_block_forward.1} parent=11 // pred_region
        _
      $region36: #{attention_block_forward.1} parent=11 // pred_fallthru
        _
      // Predicated region
      $region37: #{attention_block_forward.1} parent=11 // pred_check
        %p385 = pneg %p221
      $region38: #{attention_block_forward.1} parent=11 // pred_check_branch
        %387 = sbr.rel (%p385) target = $region40
      $region39: #{attention_block_forward.1} parent=11 // pred_region
        _
      $region40: #{attention_block_forward.1} parent=11 // pred_fallthru
        _
      // Predicated region
      $region41: #{attention_block_forward.1} parent=11 // pred_check
        %p388 = pneg %p242
      $region42: #{attention_block_forward.1} parent=11 // pred_check_branch
        %390 = sbr.rel (%p388) target = $region44
      $region43: #{attention_block_forward.1} parent=11 // pred_region
        _
      $region44: #{attention_block_forward.1} parent=11 // pred_fallthru
        _
      // Predicated region
      $region45: #{attention_block_forward.1} parent=11 // pred_check
        %p391 = pneg %p263
      $region46: #{attention_block_forward.1} parent=11 // pred_check_branch
        %393 = sbr.rel (%p391) target = $region48
      $region47: #{attention_block_forward.1} parent=11 // pred_region
        _
      $region48: #{attention_block_forward.1} parent=11 // pred_fallthru
        _
      // Predicated region
      $region49: #{attention_block_forward.1} parent=11 // pred_check
        %p394 = pneg %p284
      $region50: #{attention_block_forward.1} parent=11 // pred_check_branch
        %396 = sbr.rel (%p394) target = $region52
      $region51: #{attention_block_forward.1} parent=11 // pred_region
        _
      $region52: #{attention_block_forward.1} parent=11 // pred_fallthru
        _
      // Predicated region
      $region53: #{attention_block_forward.1} parent=11 // pred_check
        %p397 = pneg %p305
      $region54: #{attention_block_forward.1} parent=11 // pred_check_branch
        %399 = sbr.rel (%p397) target = $region56
      $region55: #{attention_block_forward.1} parent=11 // pred_region
        _
      $region56: #{attention_block_forward.1} parent=11 // pred_fallthru
        _
      // Predicated region
      $region57: #{attention_block_forward.1} parent=11 // pred_check
        %p400 = pneg %p326
      $region58: #{attention_block_forward.1} parent=11 // pred_check_branch
        %402 = sbr.rel (%p400) target = $region60
      $region59: #{attention_block_forward.1} parent=11 // pred_region
        _
      $region60: #{attention_block_forward.1} parent=11 // pred_fallthru
        _
    $region12: #{attention_block_forward.1} parent=5 // pred_fallthru
      _
    %p403 = scmp.lt.s32.totalorder %s22, 2
    // Predicated region
    $region61: #{attention_block_forward.1} parent=5 // pred_check
      %p404 = pneg %p403
    $region62: #{attention_block_forward.1} parent=5 // pred_check_branch
      %406 = sbr.rel (%p404) target = $region64
    $region63: #{attention_block_forward.1} parent=5 // pred_region
      // Predicated region
      $region65: #{attention_block_forward.1} parent=63 // pred_check
        %p407 = pneg %p63
      $region66: #{attention_block_forward.1} parent=63 // pred_check_branch
        %409 = sbr.rel (%p407) target = $region68
      $region67: #{attention_block_forward.1} parent=63 // pred_region
        %p410 = scmp.lt.s32.totalorder %s22, 1
        %s411 = scalar_select %p410, %s22, 1
        %s412 = smul.addr %s411, 2
        %s413 = smul.addr %s412, 4
        %s414 = scalar_lea.vmem %s1, %s413
      $region68: #{attention_block_forward.1} parent=63 // pred_fallthru
        _
      // Predicated region
      $region69: #{attention_block_forward.1} parent=63 // pred_check
        %p415 = pneg %p89
      $region70: #{attention_block_forward.1} parent=63 // pred_check_branch
        %417 = sbr.rel (%p415) target = $region72
      $region71: #{attention_block_forward.1} parent=63 // pred_region
        %p418 = scmp.lt.s32.totalorder %s22, 1
        %s419 = scalar_select %p418, %s22, 1
        %s420 = smul.addr %s419, 2
        %s421 = smul.addr %s420, 4
        %s422 = scalar_lea.vmem %s2, %s421
      $region72: #{attention_block_forward.1} parent=63 // pred_fallthru
        _
    $region64: #{attention_block_forward.1} parent=5 // pred_fallthru
      _
    %p423 = scmp.le.s32.totalorder 1, %s22
    %p424 = scmp.lt.s32.totalorder %s22, 3
    %p425 = pnand %p423, %p424
    %p426 = pneg %p425
    // Predicated region
    $region73: #{attention_block_forward.1} parent=5 // pred_check
      _
    $region74: #{attention_block_forward.1} parent=5 // pred_check_branch
      %428 = sbr.rel (%p425) target = $region76
    $region75: #{attention_block_forward.1} parent=5 // pred_region
      %s429 = ssub.s32 %s22, 1
      %p430 = pneg %p43
      %p431 = pneg %p40
      %p432 = scmp.lt.s32.totalorder %s27, 1
      %s433 = scalar_select %p432, %s27, 1
      %s434 = smul.addr %s433, 2
      %s435 = smul.addr %s434, 4
      %s436 = scalar_lea.vmem %s1, %s435
      %p437 = pneg %p69
      %p438 = pneg %p66
      %p439 = scmp.lt.s32.totalorder %s27, 1
      %s440 = scalar_select %p439, %s27, 1
      %s441 = smul.addr %s440, 2
      %s442 = smul.addr %s441, 4
      %s443 = scalar_lea.vmem %s2, %s442
      %p444 = pneg %p95
      %p445 = pneg %p92
      %p446 = pneg %p116
      %p447 = pneg %p113
      %p448 = pneg %p137
      %p449 = pneg %p134
      %p450 = pneg %p158
      %p451 = pneg %p155
      %p452 = pneg %p179
      %p453 = pneg %p176
      %p454 = pneg %p200
      %p455 = pneg %p197
      %p456 = pneg %p221
      %p457 = pneg %p218
      %p458 = pneg %p242
      %p459 = pneg %p239
      %p460 = pneg %p263
      %p461 = pneg %p260
      %p462 = pneg %p284
      %p463 = pneg %p281
      %p464 = pneg %p305
      %p465 = pneg %p302
      %p466 = pneg %p326
      %p467 = pneg %p323
      %p468 = pneg %p352
      %p469 = pneg %p349
      %p470 = scmp.lt.s32.totalorder %s27, 1
      %s471 = scalar_select %p470, %s27, 1
      %s472 = smul.addr %s471, 2
      %s473 = smul.addr %s472, 4
      %s474 = scalar_lea.vmem %s14, %s473
      %p475 = scmp.lt.s32.totalorder %s27, 1
      %s476 = scalar_select %p475, %s27, 1
      %s477 = smul.addr %s476, 2
      %s478 = smul.addr %s477, 4
      %s479 = scalar_lea.vmem %s1, %s478
      %p480 = scmp.lt.s32.totalorder %s27, 1
      %s481 = scalar_select %p480, %s27, 1
      %s482 = smul.addr %s481, 2
      %s483 = smul.addr %s482, 4
      %s484 = scalar_lea.vmem %s2, %s483
      %p485 = scmp.lt.s32.totalorder %s27, 1
      %s486 = scalar_select %p485, %s27, 1
      %s487 = smul.addr %s486, 2
      %s488 = smul.addr %s487, 4
      %s489 = scalar_lea.vmem %s14, %s488
      %v490 = vld [vmem:[%s0] ss:$2 sm:$0x3]
      %s491 = scalar_lea.vmem %s0, 1
      %v492 = vld [vmem:[%s491] ss:$2 sm:$0x3]
      %v493 = vld [vmem:[%s479] sm:$0xff]
      %v494 = vld [vmem:[%s484] sm:$0xff]
      %v495 = vld [vmem:[%s3] sm:$0xff]
      %v496 = vld [vmem:[%s3 + $0x8] sm:$0xff]
      %v497 = vld [vmem:[%s4] sm:$0xff]
      %v498 = vld [vmem:[%s4 + $0x8] sm:$0xff]
      %500 = vset.pattern.permute.xlu0 0
      %501 = vperm.xlu0 %500, %v495
      %v502 = vpop.permute.xlu0 %501
      %505 = vset.pattern.permute.xlu0 0
      %506 = vperm.xlu0 %505, %v496
      %v507 = vpop.permute.xlu0 %506
      %v510 = vlaneseq
      %v511 = vshrl.u32 %v510, 7
      %v512 = vsub.s32 0, %v511
      %v513 = vrot.slane %v493, %v512
      %v514 = vlaneseq
      %v515 = vshrl.u32 %v514, 7
      %v516 = vsub.s32 4, %v515
      %v517 = vrot.slane %v493, %v516
      %v520 = vlaneseq
      %v521 = vshrl.u32 %v520, 7
      %v522 = vsub.s32 0, %v521
      %v523 = vrot.slane %v513, %v522
      %v524 = vlaneseq
      %v525 = vshrl.u32 %v524, 7
      %v526 = vsub.s32 0, %v525
      %v527 = vrot.slane %v517, %v526
      %v528 = vmul.f32 %v502, %v523
      %v529 = vmul.f32 %v502, %v527
      %v530 = vmul.f32 %v507, %v523
      %v531 = vmul.f32 %v507, %v527
      %v532 = vadd.f32 %v528, 0.0
      %v533 = vadd.f32 %v529, 0.0
      %v534 = vadd.f32 %v530, 0.0
      %v535 = vadd.f32 %v531, 0.0
      %536 = vset.pattern.permute.xlu0 1
      %537 = vperm.xlu0 %536, %v495
      %v538 = vpop.permute.xlu0 %537
      %540 = vset.pattern.permute.xlu0 1
      %541 = vperm.xlu0 %540, %v496
      %v542 = vpop.permute.xlu0 %541
      %v544 = vlaneseq
      %v545 = vshrl.u32 %v544, 7
      %v546 = vsub.s32 1, %v545
      %v547 = vrot.slane %v493, %v546
      %v548 = vlaneseq
      %v549 = vshrl.u32 %v548, 7
      %v550 = vsub.s32 5, %v549
      %v551 = vrot.slane %v493, %v550
      %v554 = vlaneseq
      %v555 = vshrl.u32 %v554, 7
      %v556 = vsub.s32 1, %v555
      %v557 = vrot.slane %v547, %v556
      %v558 = vlaneseq
      %v559 = vshrl.u32 %v558, 7
      %v560 = vsub.s32 1, %v559
      %v561 = vrot.slane %v551, %v560
      %v562 = vmul.f32 %v538, %v557
      %v563 = vmul.f32 %v538, %v561
      %v564 = vmul.f32 %v542, %v557
      %v565 = vmul.f32 %v542, %v561
      %v566 = vadd.f32 %v532, %v562
      %v567 = vadd.f32 %v533, %v563
      %v568 = vadd.f32 %v534, %v564
      %v569 = vadd.f32 %v535, %v565
      %570 = vset.pattern.permute.xlu0 2
      %571 = vperm.xlu0 %570, %v495
      %v572 = vpop.permute.xlu0 %571
      %574 = vset.pattern.permute.xlu0 2
      %575 = vperm.xlu0 %574, %v496
      %v576 = vpop.permute.xlu0 %575
      %v578 = vlaneseq
      %v579 = vshrl.u32 %v578, 7
      %v580 = vsub.s32 2, %v579
      %v581 = vrot.slane %v493, %v580
      %v582 = vlaneseq
      %v583 = vshrl.u32 %v582, 7
      %v584 = vsub.s32 6, %v583
      %v585 = vrot.slane %v493, %v584
      %v588 = vlaneseq
      %v589 = vshrl.u32 %v588, 7
      %v590 = vsub.s32 2, %v589
      %v591 = vrot.slane %v581, %v590
      %v592 = vlaneseq
      %v593 = vshrl.u32 %v592, 7
      %v594 = vsub.s32 2, %v593
      %v595 = vrot.slane %v585, %v594
      %v596 = vmul.f32 %v572, %v591
      %v597 = vmul.f32 %v572, %v595
      %v598 = vmul.f32 %v576, %v591
      %v599 = vmul.f32 %v576, %v595
      %v600 = vadd.f32 %v566, %v596
      %v601 = vadd.f32 %v567, %v597
      %v602 = vadd.f32 %v568, %v598
      %v603 = vadd.f32 %v569, %v599
      %604 = vset.pattern.permute.xlu0 3
      %605 = vperm.xlu0 %604, %v495
      %v606 = vpop.permute.xlu0 %605
      %608 = vset.pattern.permute.xlu0 3
      %609 = vperm.xlu0 %608, %v496
      %v610 = vpop.permute.xlu0 %609
      %v612 = vlaneseq
      %v613 = vshrl.u32 %v612, 7
      %v614 = vsub.s32 3, %v613
      %v615 = vrot.slane %v493, %v614
      %v616 = vlaneseq
      %v617 = vshrl.u32 %v616, 7
      %v618 = vsub.s32 7, %v617
      %v619 = vrot.slane %v493, %v618
      %v622 = vlaneseq
      %v623 = vshrl.u32 %v622, 7
      %v624 = vsub.s32 3, %v623
      %v625 = vrot.slane %v615, %v624
      %v626 = vlaneseq
      %v627 = vshrl.u32 %v626, 7
      %v628 = vsub.s32 3, %v627
      %v629 = vrot.slane %v619, %v628
      %v630 = vmul.f32 %v606, %v625
      %v631 = vmul.f32 %v606, %v629
      %v632 = vmul.f32 %v610, %v625
      %v633 = vmul.f32 %v610, %v629
      %v634 = vadd.f32 %v600, %v630
      %v635 = vadd.f32 %v601, %v631
      %v636 = vadd.f32 %v602, %v632
      %v637 = vadd.f32 %v603, %v633
      %639 = vset.pattern.permute.xlu0 0
      %640 = vperm.xlu0 %639, %v497
      %v641 = vpop.permute.xlu0 %640
      %644 = vset.pattern.permute.xlu0 0
      %645 = vperm.xlu0 %644, %v498
      %v646 = vpop.permute.xlu0 %645
      %v649 = vlaneseq
      %v650 = vshrl.u32 %v649, 7
      %v651 = vsub.s32 0, %v650
      %v652 = vrot.slane %v494, %v651
      %v653 = vlaneseq
      %v654 = vshrl.u32 %v653, 7
      %v655 = vsub.s32 4, %v654
      %v656 = vrot.slane %v494, %v655
      %v659 = vlaneseq
      %v660 = vshrl.u32 %v659, 7
      %v661 = vsub.s32 0, %v660
      %v662 = vrot.slane %v652, %v661
      %v663 = vlaneseq
      %v664 = vshrl.u32 %v663, 7
      %v665 = vsub.s32 0, %v664
      %v666 = vrot.slane %v656, %v665
      %v667 = vmul.f32 %v641, %v662
      %v668 = vmul.f32 %v641, %v666
      %v669 = vmul.f32 %v646, %v662
      %v670 = vmul.f32 %v646, %v666
      %v671 = vadd.f32 %v634, %v667
      %v672 = vadd.f32 %v635, %v668
      %v673 = vadd.f32 %v636, %v669
      %v674 = vadd.f32 %v637, %v670
      %675 = vset.pattern.permute.xlu0 1
      %676 = vperm.xlu0 %675, %v497
      %v677 = vpop.permute.xlu0 %676
      %679 = vset.pattern.permute.xlu0 1
      %680 = vperm.xlu0 %679, %v498
      %v681 = vpop.permute.xlu0 %680
      %v683 = vlaneseq
      %v684 = vshrl.u32 %v683, 7
      %v685 = vsub.s32 1, %v684
      %v686 = vrot.slane %v494, %v685
      %v687 = vlaneseq
      %v688 = vshrl.u32 %v687, 7
      %v689 = vsub.s32 5, %v688
      %v690 = vrot.slane %v494, %v689
      %v693 = vlaneseq
      %v694 = vshrl.u32 %v693, 7
      %v695 = vsub.s32 1, %v694
      %v696 = vrot.slane %v686, %v695
      %v697 = vlaneseq
      %v698 = vshrl.u32 %v697, 7
      %v699 = vsub.s32 1, %v698
      %v700 = vrot.slane %v690, %v699
      %v701 = vmul.f32 %v677, %v696
      %v702 = vmul.f32 %v677, %v700
      %v703 = vmul.f32 %v681, %v696
      %v704 = vmul.f32 %v681, %v700
      %v705 = vadd.f32 %v671, %v701
      %v706 = vadd.f32 %v672, %v702
      %v707 = vadd.f32 %v673, %v703
      %v708 = vadd.f32 %v674, %v704
      %709 = vset.pattern.permute.xlu0 2
      %710 = vperm.xlu0 %709, %v497
      %v711 = vpop.permute.xlu0 %710
      %713 = vset.pattern.permute.xlu0 2
      %714 = vperm.xlu0 %713, %v498
      %v715 = vpop.permute.xlu0 %714
      %v717 = vlaneseq
      %v718 = vshrl.u32 %v717, 7
      %v719 = vsub.s32 2, %v718
      %v720 = vrot.slane %v494, %v719
      %v721 = vlaneseq
      %v722 = vshrl.u32 %v721, 7
      %v723 = vsub.s32 6, %v722
      %v724 = vrot.slane %v494, %v723
      %v727 = vlaneseq
      %v728 = vshrl.u32 %v727, 7
      %v729 = vsub.s32 2, %v728
      %v730 = vrot.slane %v720, %v729
      %v731 = vlaneseq
      %v732 = vshrl.u32 %v731, 7
      %v733 = vsub.s32 2, %v732
      %v734 = vrot.slane %v724, %v733
      %v735 = vmul.f32 %v711, %v730
      %v736 = vmul.f32 %v711, %v734
      %v737 = vmul.f32 %v715, %v730
      %v738 = vmul.f32 %v715, %v734
      %v739 = vadd.f32 %v705, %v735
      %v740 = vadd.f32 %v706, %v736
      %v741 = vadd.f32 %v707, %v737
      %v742 = vadd.f32 %v708, %v738
      %743 = vset.pattern.permute.xlu0 3
      %744 = vperm.xlu0 %743, %v497
      %v745 = vpop.permute.xlu0 %744
      %747 = vset.pattern.permute.xlu0 3
      %748 = vperm.xlu0 %747, %v498
      %v749 = vpop.permute.xlu0 %748
      %v751 = vlaneseq
      %v752 = vshrl.u32 %v751, 7
      %v753 = vsub.s32 3, %v752
      %v754 = vrot.slane %v494, %v753
      %v755 = vlaneseq
      %v756 = vshrl.u32 %v755, 7
      %v757 = vsub.s32 7, %v756
      %v758 = vrot.slane %v494, %v757
      %v761 = vlaneseq
      %v762 = vshrl.u32 %v761, 7
      %v763 = vsub.s32 3, %v762
      %v764 = vrot.slane %v754, %v763
      %v765 = vlaneseq
      %v766 = vshrl.u32 %v765, 7
      %v767 = vsub.s32 3, %v766
      %v768 = vrot.slane %v758, %v767
      %v769 = vmul.f32 %v745, %v764
      %v770 = vmul.f32 %v745, %v768
      %v771 = vmul.f32 %v749, %v764
      %v772 = vmul.f32 %v749, %v768
      %v773 = vadd.f32 %v739, %v769
      %v774 = vadd.f32 %v740, %v770
      %v775 = vadd.f32 %v741, %v771
      %v776 = vadd.f32 %v742, %v772
      %v777 = vld [vmem:[%s5] sm:$0xff]
      %v778 = vld [vmem:[%s5 + $0x8] sm:$0xff]
      %780 = vset.pattern.permute.xlu0 0
      %781 = vperm.xlu0 %780, %v777
      %v782 = vpop.permute.xlu0 %781
      %785 = vset.pattern.permute.xlu0 0
      %786 = vperm.xlu0 %785, %v778
      %v787 = vpop.permute.xlu0 %786
      %v789 = vadd.f32 %v773, %v782
      %v790 = vadd.f32 %v774, %v782
      %v791 = vadd.f32 %v775, %v787
      %v792 = vadd.f32 %v776, %v787
      %v793 = vmul.f32 %v789, %v789
      %v794 = vmul.f32 %v790, %v790
      %v795 = vmul.f32 %v791, %v791
      %v796 = vmul.f32 %v792, %v792
      %v797 = vmul.f32 %v789, %v793
      %v798 = vmul.f32 %v790, %v794
      %v799 = vmul.f32 %v791, %v795
      %v800 = vmul.f32 %v792, %v796
      %v801 = vmul.f32 %v797, 0.044715
      %v802 = vmul.f32 %v798, 0.044715
      %v803 = vmul.f32 %v799, 0.044715
      %v804 = vmul.f32 %v800, 0.044715
      %v805 = vadd.f32 %v789, %v801
      %v806 = vadd.f32 %v790, %v802
      %v807 = vadd.f32 %v791, %v803
      %v808 = vadd.f32 %v792, %v804
      %v809 = vmul.f32 %v805, 0.7978846
      %v810 = vmul.f32 %v806, 0.7978846
      %v811 = vmul.f32 %v807, 0.7978846
      %v812 = vmul.f32 %v808, 0.7978846
      %v813 = vtanh.pop %v809
      %v814 = vtanh.pop %v810
      %v815 = vtanh.pop %v811
      %v816 = vtanh.pop %v812
      %v817 = vadd.f32 %v813, 1.0
      %v818 = vadd.f32 %v814, 1.0
      %v819 = vadd.f32 %v815, 1.0
      %v820 = vadd.f32 %v816, 1.0
      %v821 = vmul.f32 %v817, 0.5
      %v822 = vmul.f32 %v818, 0.5
      %v823 = vmul.f32 %v819, 0.5
      %v824 = vmul.f32 %v820, 0.5
      %v825 = vmul.f32 %v789, %v821
      %v826 = vmul.f32 %v790, %v822
      %v827 = vmul.f32 %v791, %v823
      %v828 = vmul.f32 %v792, %v824
      %v829 = vld [vmem:[%s10] sm:$0xff]
      %v830 = vld [vmem:[%s6] sm:$0xf]
      %832 = vset.pattern.permute.xlu0 0
      %833 = vperm.xlu0 %832, %v830
      %v834 = vpop.permute.xlu0 %833
      %v836 = vmul.f32 %v825, %v834
      %v837 = vmul.f32 %v826, %v834
      %v838 = vadd.f32 %v836, 0.0
      %v839 = vadd.f32 %v837, 0.0
      %v840 = vmul.f32 %v838, %v838
      %v841 = vmul.f32 %v839, %v839
      %v842 = vmul.f32 %v838, %v840
      %v843 = vmul.f32 %v839, %v841
      %v844 = vmul.f32 %v842, 0.044715
      %v845 = vmul.f32 %v843, 0.044715
      %v846 = vadd.f32 %v838, %v844
      %v847 = vadd.f32 %v839, %v845
      %v848 = vmul.f32 %v846, 0.7978846
      %v849 = vmul.f32 %v847, 0.7978846
      %v850 = vtanh.pop %v848
      %v851 = vtanh.pop %v849
      %v852 = vadd.f32 %v850, 1.0
      %v853 = vadd.f32 %v851, 1.0
      %v854 = vmul.f32 %v852, 0.5
      %v855 = vmul.f32 %v853, 0.5
      %v856 = vmul.f32 %v838, %v854
      %v857 = vmul.f32 %v839, %v855
      %859 = vset.pattern.permute.xlu0 0
      %860 = vperm.xlu0 %859, %v829
      %v861 = vpop.permute.xlu0 %860
      %v863 = vlaneseq
      %v864 = vshrl.u32 %v863, 7
      %v865 = vsub.s32 0, %v864
      %v866 = vrot.slane %v856, %v865
      %v867 = vlaneseq
      %v868 = vshrl.u32 %v867, 7
      %v869 = vsub.s32 0, %v868
      %v870 = vrot.slane %v857, %v869
      %v871 = vmul.f32 %v861, %v866
      %v872 = vmul.f32 %v861, %v870
      %v873 = vadd.f32 %v871, 0.0
      %v874 = vadd.f32 %v872, 0.0
      %875 = vset.pattern.permute.xlu0 1
      %876 = vperm.xlu0 %875, %v829
      %v877 = vpop.permute.xlu0 %876
      %v879 = vlaneseq
      %v880 = vshrl.u32 %v879, 7
      %v881 = vsub.s32 1, %v880
      %v882 = vrot.slane %v856, %v881
      %v883 = vlaneseq
      %v884 = vshrl.u32 %v883, 7
      %v885 = vsub.s32 1, %v884
      %v886 = vrot.slane %v857, %v885
      %v887 = vmul.f32 %v877, %v882
      %v888 = vmul.f32 %v877, %v886
      %v889 = vadd.f32 %v873, %v887
      %v890 = vadd.f32 %v874, %v888
      %891 = vset.pattern.permute.xlu0 2
      %892 = vperm.xlu0 %891, %v829
      %v893 = vpop.permute.xlu0 %892
      %v895 = vlaneseq
      %v896 = vshrl.u32 %v895, 7
      %v897 = vsub.s32 2, %v896
      %v898 = vrot.slane %v856, %v897
      %v899 = vlaneseq
      %v900 = vshrl.u32 %v899, 7
      %v901 = vsub.s32 2, %v900
      %v902 = vrot.slane %v857, %v901
      %v903 = vmul.f32 %v893, %v898
      %v904 = vmul.f32 %v893, %v902
      %v905 = vadd.f32 %v889, %v903
      %v906 = vadd.f32 %v890, %v904
      %907 = vset.pattern.permute.xlu0 3
      %908 = vperm.xlu0 %907, %v829
      %v909 = vpop.permute.xlu0 %908
      %v911 = vlaneseq
      %v912 = vshrl.u32 %v911, 7
      %v913 = vsub.s32 3, %v912
      %v914 = vrot.slane %v856, %v913
      %v915 = vlaneseq
      %v916 = vshrl.u32 %v915, 7
      %v917 = vsub.s32 3, %v916
      %v918 = vrot.slane %v857, %v917
      %v919 = vmul.f32 %v909, %v914
      %v920 = vmul.f32 %v909, %v918
      %v921 = vadd.f32 %v905, %v919
      %v922 = vadd.f32 %v906, %v920
      %v923 = vld [vmem:[%s7] sm:$0xf]
      %v926 = vrot.slane %v825, 4
      %v927 = vrot.slane %v826, 4
      %930 = vrot.lane.b32.xlu0 %v926, 17
      %v931 = vpop.permute.xlu0 %930
      %932 = vrot.lane.b32.xlu0 %v927, 17
      %v933 = vpop.permute.xlu0 %932
      %v934 = vlaneseq
      %v935 = vand.u32 %v934, 127
      %vm936 = vcmp.lt.s32.totalorder %v935, 17
      %v937 = vsel %vm936, %v931, %v933
      %v938 = vsel %vm936, %v933, %v931
      %vm939 = vcmp.ge.s32.totalorder %v490, 1
      %vm940 = vcmp.lt.s32.totalorder %v490, 17
      %vm941 = vmand %vm939, %vm940
      %vm942 = vcmp.ge.s32.totalorder %v492, 1
      %vm943 = vcmp.lt.s32.totalorder %v492, 17
      %vm944 = vmand %vm942, %vm943
      %vm945 = vmand %vm941, %vm944
      %v946 = vsel %vm945, 1, 0
      %v947 = vcvt.s32.f32 %v946
      %v949 = vlaneseq
      %v950 = vshrl.u32 %v949, 7
      %v951 = vsub.s32 0, %v950
      %v952 = vrot.slane %v947, %v951
      %v953 = vlaneseq
      %v954 = vshrl.u32 %v953, 7
      %v955 = vsub.s32 1, %v954
      %v956 = vrot.slane %v947, %v955
      %v959 = vmul.f32 %v938, %v952
      %v960 = vmul.f32 %v937, %v956
      %962 = vset.pattern.permute.xlu0 0
      %963 = vperm.xlu0 %962, %v923
      %v964 = vpop.permute.xlu0 %963
      %v966 = vmul.f32 %v959, %v964
      %v967 = vmul.f32 %v960, %v964
      %v968 = vadd.f32 %v966, 0.0
      %v969 = vadd.f32 %v967, 0.0
      %970 = vrot.lane.b32.xlu0 %v926, 16
      %v971 = vpop.permute.xlu0 %970
      %972 = vrot.lane.b32.xlu0 %v927, 16
      %v973 = vpop.permute.xlu0 %972
      %vm974 = vcmp.lt.s32.totalorder %v935, 16
      %v975 = vsel %vm974, %v971, %v973
      %v976 = vsel %vm974, %v973, %v971
      %v977 = vsel %vm941, 1, 0
      %v978 = vcvt.s32.f32 %v977
      %v980 = vlaneseq
      %v981 = vshrl.u32 %v980, 7
      %v982 = vsub.s32 0, %v981
      %v983 = vrot.slane %v978, %v982
      %v984 = vlaneseq
      %v985 = vshrl.u32 %v984, 7
      %v986 = vsub.s32 1, %v985
      %v987 = vrot.slane %v978, %v986
      %v990 = vmul.f32 %v976, %v983
      %v991 = vmul.f32 %v975, %v987
      %992 = vset.pattern.permute.xlu0 1
      %993 = vperm.xlu0 %992, %v923
      %v994 = vpop.permute.xlu0 %993
      %v996 = vmul.f32 %v990, %v994
      %v997 = vmul.f32 %v991, %v994
      %v998 = vadd.f32 %v968, %v996
      %v999 = vadd.f32 %v969, %v997
      %1000 = vrot.lane.b32.xlu0 %v926, 15
      %v1001 = vpop.permute.xlu0 %1000
      %1002 = vrot.lane.b32.xlu0 %v927, 15
      %v1003 = vpop.permute.xlu0 %1002
      %vm1004 = vcmp.lt.s32.totalorder %v935, 15
      %v1005 = vsel %vm1004, %v1001, %v1003
      %v1006 = vsel %vm1004, %v1003, %v1001
      %vm1007 = vcmp.ge.s32.totalorder %v492, 4294967295
      %vm1008 = vcmp.lt.s32.totalorder %v492, 15
      %vm1009 = vmand %vm1007, %vm1008
      %vm1010 = vmand %vm941, %vm1009
      %v1011 = vsel %vm1010, 1, 0
      %v1012 = vcvt.s32.f32 %v1011
      %v1014 = vlaneseq
      %v1015 = vshrl.u32 %v1014, 7
      %v1016 = vsub.s32 0, %v1015
      %v1017 = vrot.slane %v1012, %v1016
      %v1018 = vlaneseq
      %v1019 = vshrl.u32 %v1018, 7
      %v1020 = vsub.s32 1, %v1019
      %v1021 = vrot.slane %v1012, %v1020
      %v1024 = vmul.f32 %v1006, %v1017
      %v1025 = vmul.f32 %v1005, %v1021
      %1026 = vset.pattern.permute.xlu0 2
      %1027 = vperm.xlu0 %1026, %v923
      %v1028 = vpop.permute.xlu0 %1027
      %v1030 = vmul.f32 %v1024, %v1028
      %v1031 = vmul.f32 %v1025, %v1028
      %v1032 = vadd.f32 %v998, %v1030
      %v1033 = vadd.f32 %v999, %v1031
      %1034 = vrot.lane.b32.xlu0 %v926, 1
      %v1035 = vpop.permute.xlu0 %1034
      %1036 = vrot.lane.b32.xlu0 %v927, 1
      %v1037 = vpop.permute.xlu0 %1036
      %vm1038 = vcmp.lt.s32.totalorder %v935, 1
      %v1039 = vsel %vm1038, %v1035, %v1037
      %v1040 = vsel %vm1038, %v1037, %v1035
      %v1041 = vsel %vm944, 1, 0
      %v1042 = vcvt.s32.f32 %v1041
      %v1044 = vlaneseq
      %v1045 = vshrl.u32 %v1044, 7
      %v1046 = vsub.s32 0, %v1045
      %v1047 = vrot.slane %v1042, %v1046
      %v1048 = vlaneseq
      %v1049 = vshrl.u32 %v1048, 7
      %v1050 = vsub.s32 1, %v1049
      %v1051 = vrot.slane %v1042, %v1050
      %v1054 = vmul.f32 %v1040, %v1047
      %v1055 = vmul.f32 %v1039, %v1051
      %1056 = vset.pattern.permute.xlu0 3
      %1057 = vperm.xlu0 %1056, %v923
      %v1058 = vpop.permute.xlu0 %1057
      %v1060 = vmul.f32 %v1054, %v1058
      %v1061 = vmul.f32 %v1055, %v1058
      %v1062 = vadd.f32 %v1032, %v1060
      %v1063 = vadd.f32 %v1033, %v1061
      %1064 = vset.pattern.permute.xlu0 4
      %1065 = vperm.xlu0 %1064, %v923
      %v1066 = vpop.permute.xlu0 %1065
      %v1067 = vrot.slane %v1066, 4
      %v1069 = vmul.f32 %v825, %v1067
      %v1070 = vmul.f32 %v826, %v1067
      %v1073 = vrot.slane %v1069, 4
      %v1074 = vrot.slane %v1070, 4
      %v1077 = vadd.f32 %v1062, %v1073
      %v1078 = vadd.f32 %v1063, %v1074
      %1079 = vrot.lane.b32.xlu0 %v926, 127
      %v1080 = vpop.permute.xlu0 %1079
      %1081 = vrot.lane.b32.xlu0 %v927, 127
      %v1082 = vpop.permute.xlu0 %1081
      %vm1083 = vcmp.lt.s32.totalorder %v935, 127
      %v1084 = vsel %vm1083, %v1080, %v1082
      %v1085 = vsel %vm1083, %v1082, %v1080
      %v1086 = vsel %vm1009, 1, 0
      %v1087 = vcvt.s32.f32 %v1086
      %v1089 = vlaneseq
      %v1090 = vshrl.u32 %v1089, 7
      %v1091 = vsub.s32 0, %v1090
      %v1092 = vrot.slane %v1087, %v1091
      %v1093 = vlaneseq
      %v1094 = vshrl.u32 %v1093, 7
      %v1095 = vsub.s32 1, %v1094
      %v1096 = vrot.slane %v1087, %v1095
      %v1099 = vmul.f32 %v1084, %v1092
      %v1100 = vmul.f32 %v1085, %v1096
      %1101 = vset.pattern.permute.xlu0 5
      %1102 = vperm.xlu0 %1101, %v923
      %v1103 = vpop.permute.xlu0 %1102
      %v1105 = vmul.f32 %v1099, %v1103
      %v1106 = vmul.f32 %v1100, %v1103
      %v1107 = vadd.f32 %v1077, %v1105
      %v1108 = vadd.f32 %v1078, %v1106
      %1109 = vrot.lane.b32.xlu0 %v926, 113
      %v1110 = vpop.permute.xlu0 %1109
      %1111 = vrot.lane.b32.xlu0 %v927, 113
      %v1112 = vpop.permute.xlu0 %1111
      %vm1113 = vcmp.lt.s32.totalorder %v935, 113
      %v1114 = vsel %vm1113, %v1110, %v1112
      %v1115 = vsel %vm1113, %v1112, %v1110
      %vm1116 = vcmp.ge.s32.totalorder %v490, 4294967295
      %vm1117 = vcmp.lt.s32.totalorder %v490, 15
      %vm1118 = vmand %vm1116, %vm1117
      %vm1119 = vmand %vm1118, %vm944
      %v1120 = vsel %vm1119, 1, 0
      %v1121 = vcvt.s32.f32 %v1120
      %v1123 = vlaneseq
      %v1124 = vshrl.u32 %v1123, 7
      %v1125 = vsub.s32 0, %v1124
      %v1126 = vrot.slane %v1121, %v1125
      %v1127 = vlaneseq
      %v1128 = vshrl.u32 %v1127, 7
      %v1129 = vsub.s32 1, %v1128
      %v1130 = vrot.slane %v1121, %v1129
      %v1133 = vmul.f32 %v1114, %v1126
      %v1134 = vmul.f32 %v1115, %v1130
      %1135 = vset.pattern.permute.xlu0 6
      %1136 = vperm.xlu0 %1135, %v923
      %v1137 = vpop.permute.xlu0 %1136
      %v1139 = vmul.f32 %v1133, %v1137
      %v1140 = vmul.f32 %v1134, %v1137
      %v1141 = vadd.f32 %v1107, %v1139
      %v1142 = vadd.f32 %v1108, %v1140
      %1143 = vrot.lane.b32.xlu0 %v926, 112
      %v1144 = vpop.permute.xlu0 %1143
      %1145 = vrot.lane.b32.xlu0 %v927, 112
      %v1146 = vpop.permute.xlu0 %1145
      %vm1147 = vcmp.lt.s32.totalorder %v935, 112
      %v1148 = vsel %vm1147, %v1144, %v1146
      %v1149 = vsel %vm1147, %v1146, %v1144
      %v1150 = vsel %vm1118, 1, 0
      %v1151 = vcvt.s32.f32 %v1150
      %v1153 = vlaneseq
      %v1154 = vshrl.u32 %v1153, 7
      %v1155 = vsub.s32 0, %v1154
      %v1156 = vrot.slane %v1151, %v1155
      %v1157 = vlaneseq
      %v1158 = vshrl.u32 %v1157, 7
      %v1159 = vsub.s32 1, %v1158
      %v1160 = vrot.slane %v1151, %v1159
      %v1163 = vmul.f32 %v1148, %v1156
      %v1164 = vmul.f32 %v1149, %v1160
      %1165 = vset.pattern.permute.xlu0 7
      %1166 = vperm.xlu0 %1165, %v923
      %v1167 = vpop.permute.xlu0 %1166
      %v1169 = vmul.f32 %v1163, %v1167
      %v1170 = vmul.f32 %v1164, %v1167
      %v1171 = vadd.f32 %v1141, %v1169
      %v1172 = vadd.f32 %v1142, %v1170
      %1173 = vrot.lane.b32.xlu0 %v926, 111
      %v1174 = vpop.permute.xlu0 %1173
      %1175 = vrot.lane.b32.xlu0 %v927, 111
      %v1176 = vpop.permute.xlu0 %1175
      %vm1177 = vcmp.lt.s32.totalorder %v935, 111
      %v1178 = vsel %vm1177, %v1174, %v1176
      %v1179 = vsel %vm1177, %v1176, %v1174
      %vm1180 = vmand %vm1118, %vm1009
      %v1181 = vsel %vm1180, 1, 0
      %v1182 = vcvt.s32.f32 %v1181
      %v1184 = vlaneseq
      %v1185 = vshrl.u32 %v1184, 7
      %v1186 = vsub.s32 0, %v1185
      %v1187 = vrot.slane %v1182, %v1186
      %v1188 = vlaneseq
      %v1189 = vshrl.u32 %v1188, 7
      %v1190 = vsub.s32 1, %v1189
      %v1191 = vrot.slane %v1182, %v1190
      %v1194 = vmul.f32 %v1178, %v1187
      %v1195 = vmul.f32 %v1179, %v1191
      %1196 = vset.pattern.permute.xlu0 8
      %1197 = vperm.xlu0 %1196, %v923
      %v1198 = vpop.permute.xlu0 %1197
      %v1200 = vmul.f32 %v1194, %v1198
      %v1201 = vmul.f32 %v1195, %v1198
      %v1202 = vadd.f32 %v1171, %v1200
      %v1203 = vadd.f32 %v1172, %v1201
      %v1204 = vmul.f32 %v1202, %v1202
      %v1205 = vmul.f32 %v1203, %v1203
      %v1206 = vmul.f32 %v1202, %v1204
      %v1207 = vmul.f32 %v1203, %v1205
      %v1208 = vmul.f32 %v1206, 0.044715
      %v1209 = vmul.f32 %v1207, 0.044715
      %v1210 = vadd.f32 %v1202, %v1208
      %v1211 = vadd.f32 %v1203, %v1209
      %v1212 = vmul.f32 %v1210, 0.7978846
      %v1213 = vmul.f32 %v1211, 0.7978846
      %v1214 = vtanh.pop %v1212
      %v1215 = vtanh.pop %v1213
      %v1216 = vadd.f32 %v1214, 1.0
      %v1217 = vadd.f32 %v1215, 1.0
      %v1218 = vmul.f32 %v1216, 0.5
      %v1219 = vmul.f32 %v1217, 0.5
      %v1220 = vmul.f32 %v1202, %v1218
      %v1221 = vmul.f32 %v1203, %v1219
      %1222 = vset.pattern.permute.xlu0 4
      %1223 = vperm.xlu0 %1222, %v829
      %v1224 = vpop.permute.xlu0 %1223
      %v1226 = vlaneseq
      %v1227 = vshrl.u32 %v1226, 7
      %v1228 = vsub.s32 0, %v1227
      %v1229 = vrot.slane %v1220, %v1228
      %v1230 = vlaneseq
      %v1231 = vshrl.u32 %v1230, 7
      %v1232 = vsub.s32 0, %v1231
      %v1233 = vrot.slane %v1221, %v1232
      %v1234 = vmul.f32 %v1224, %v1229
      %v1235 = vmul.f32 %v1224, %v1233
      %v1236 = vadd.f32 %v921, %v1234
      %v1237 = vadd.f32 %v922, %v1235
      %1238 = vset.pattern.permute.xlu0 5
      %1239 = vperm.xlu0 %1238, %v829
      %v1240 = vpop.permute.xlu0 %1239
      %v1242 = vlaneseq
      %v1243 = vshrl.u32 %v1242, 7
      %v1244 = vsub.s32 1, %v1243
      %v1245 = vrot.slane %v1220, %v1244
      %v1246 = vlaneseq
      %v1247 = vshrl.u32 %v1246, 7
      %v1248 = vsub.s32 1, %v1247
      %v1249 = vrot.slane %v1221, %v1248
      %v1250 = vmul.f32 %v1240, %v1245
      %v1251 = vmul.f32 %v1240, %v1249
      %v1252 = vadd.f32 %v1236, %v1250
      %v1253 = vadd.f32 %v1237, %v1251
      %1254 = vset.pattern.permute.xlu0 6
      %1255 = vperm.xlu0 %1254, %v829
      %v1256 = vpop.permute.xlu0 %1255
      %v1258 = vlaneseq
      %v1259 = vshrl.u32 %v1258, 7
      %v1260 = vsub.s32 2, %v1259
      %v1261 = vrot.slane %v1220, %v1260
      %v1262 = vlaneseq
      %v1263 = vshrl.u32 %v1262, 7
      %v1264 = vsub.s32 2, %v1263
      %v1265 = vrot.slane %v1221, %v1264
      %v1266 = vmul.f32 %v1256, %v1261
      %v1267 = vmul.f32 %v1256, %v1265
      %v1268 = vadd.f32 %v1252, %v1266
      %v1269 = vadd.f32 %v1253, %v1267
      %1270 = vset.pattern.permute.xlu0 7
      %1271 = vperm.xlu0 %1270, %v829
      %v1272 = vpop.permute.xlu0 %1271
      %v1274 = vlaneseq
      %v1275 = vshrl.u32 %v1274, 7
      %v1276 = vsub.s32 3, %v1275
      %v1277 = vrot.slane %v1220, %v1276
      %v1278 = vlaneseq
      %v1279 = vshrl.u32 %v1278, 7
      %v1280 = vsub.s32 3, %v1279
      %v1281 = vrot.slane %v1221, %v1280
      %v1282 = vmul.f32 %v1272, %v1277
      %v1283 = vmul.f32 %v1272, %v1281
      %v1284 = vadd.f32 %v1268, %v1282
      %v1285 = vadd.f32 %v1269, %v1283
      %v1286 = vld [vmem:[%s8] sm:$0xf]
      %1287 = vrot.lane.b32.xlu0 %v827, 34
      %v1288 = vpop.permute.xlu0 %1287
      %1289 = vrot.lane.b32.xlu0 %v828, 34
      %v1290 = vpop.permute.xlu0 %1289
      %vm1291 = vcmp.lt.s32.totalorder %v935, 34
      %v1292 = vsel %vm1291, %v1288, %v1290
      %v1293 = vsel %vm1291, %v1290, %v1288
      %vm1294 = vcmp.ge.s32.totalorder %v490, 2
      %vm1295 = vcmp.lt.s32.totalorder %v490, 18
      %vm1296 = vmand %vm1294, %vm1295
      %vm1297 = vcmp.ge.s32.totalorder %v492, 2
      %vm1298 = vcmp.lt.s32.totalorder %v492, 18
      %vm1299 = vmand %vm1297, %vm1298
      %vm1300 = vmand %vm1296, %vm1299
      %v1301 = vsel %vm1300, 1, 0
      %v1302 = vcvt.s32.f32 %v1301
      %v1304 = vlaneseq
      %v1305 = vshrl.u32 %v1304, 7
      %v1306 = vsub.s32 0, %v1305
      %v1307 = vrot.slane %v1302, %v1306
      %v1308 = vlaneseq
      %v1309 = vshrl.u32 %v1308, 7
      %v1310 = vsub.s32 1, %v1309
      %v1311 = vrot.slane %v1302, %v1310
      %v1314 = vmul.f32 %v1293, %v1307
      %v1315 = vmul.f32 %v1292, %v1311
      %1317 = vset.pattern.permute.xlu0 0
      %1318 = vperm.xlu0 %1317, %v1286
      %v1319 = vpop.permute.xlu0 %1318
      %v1321 = vmul.f32 %v1314, %v1319
      %v1322 = vmul.f32 %v1315, %v1319
      %v1323 = vadd.f32 %v1321, 0.0
      %v1324 = vadd.f32 %v1322, 0.0
      %1325 = vrot.lane.b32.xlu0 %v827, 33
      %v1326 = vpop.permute.xlu0 %1325
      %1327 = vrot.lane.b32.xlu0 %v828, 33
      %v1328 = vpop.permute.xlu0 %1327
      %vm1329 = vcmp.lt.s32.totalorder %v935, 33
      %v1330 = vsel %vm1329, %v1326, %v1328
      %v1331 = vsel %vm1329, %v1328, %v1326
      %vm1332 = vmand %vm1296, %vm944
      %v1333 = vsel %vm1332, 1, 0
      %v1334 = vcvt.s32.f32 %v1333
      %v1336 = vlaneseq
      %v1337 = vshrl.u32 %v1336, 7
      %v1338 = vsub.s32 0, %v1337
      %v1339 = vrot.slane %v1334, %v1338
      %v1340 = vlaneseq
      %v1341 = vshrl.u32 %v1340, 7
      %v1342 = vsub.s32 1, %v1341
      %v1343 = vrot.slane %v1334, %v1342
      %v1346 = vmul.f32 %v1331, %v1339
      %v1347 = vmul.f32 %v1330, %v1343
      %1348 = vset.pattern.permute.xlu0 1
      %1349 = vperm.xlu0 %1348, %v1286
      %v1350 = vpop.permute.xlu0 %1349
      %v1352 = vmul.f32 %v1346, %v1350
      %v1353 = vmul.f32 %v1347, %v1350
      %v1354 = vadd.f32 %v1323, %v1352
      %v1355 = vadd.f32 %v1324, %v1353
      %1356 = vrot.lane.b32.xlu0 %v827, 32
      %v1357 = vpop.permute.xlu0 %1356
      %1358 = vrot.lane.b32.xlu0 %v828, 32
      %v1359 = vpop.permute.xlu0 %1358
      %vm1360 = vcmp.lt.s32.totalorder %v935, 32
      %v1361 = vsel %vm1360, %v1357, %v1359
      %v1362 = vsel %vm1360, %v1359, %v1357
      %v1363 = vsel %vm1296, 1, 0
      %v1364 = vcvt.s32.f32 %v1363
      %v1366 = vlaneseq
      %v1367 = vshrl.u32 %v1366, 7
      %v1368 = vsub.s32 0, %v1367
      %v1369 = vrot.slane %v1364, %v1368
      %v1370 = vlaneseq
      %v1371 = vshrl.u32 %v1370, 7
      %v1372 = vsub.s32 1, %v1371
      %v1373 = vrot.slane %v1364, %v1372
      %v1376 = vmul.f32 %v1362, %v1369
      %v1377 = vmul.f32 %v1361, %v1373
      %1378 = vset.pattern.permute.xlu0 2
      %1379 = vperm.xlu0 %1378, %v1286
      %v1380 = vpop.permute.xlu0 %1379
      %v1382 = vmul.f32 %v1376, %v1380
      %v1383 = vmul.f32 %v1377, %v1380
      %v1384 = vadd.f32 %v1354, %v1382
      %v1385 = vadd.f32 %v1355, %v1383
      %1386 = vrot.lane.b32.xlu0 %v827, 31
      %v1387 = vpop.permute.xlu0 %1386
      %1388 = vrot.lane.b32.xlu0 %v828, 31
      %v1389 = vpop.permute.xlu0 %1388
      %vm1390 = vcmp.lt.s32.totalorder %v935, 31
      %v1391 = vsel %vm1390, %v1387, %v1389
      %v1392 = vsel %vm1390, %v1389, %v1387
      %vm1393 = vmand %vm1296, %vm1009
      %v1394 = vsel %vm1393, 1, 0
      %v1395 = vcvt.s32.f32 %v1394
      %v1397 = vlaneseq
      %v1398 = vshrl.u32 %v1397, 7
      %v1399 = vsub.s32 0, %v1398
      %v1400 = vrot.slane %v1395, %v1399
      %v1401 = vlaneseq
      %v1402 = vshrl.u32 %v1401, 7
      %v1403 = vsub.s32 1, %v1402
      %v1404 = vrot.slane %v1395, %v1403
      %v1407 = vmul.f32 %v1392, %v1400
      %v1408 = vmul.f32 %v1391, %v1404
      %1409 = vset.pattern.permute.xlu0 3
      %1410 = vperm.xlu0 %1409, %v1286
      %v1411 = vpop.permute.xlu0 %1410
      %v1413 = vmul.f32 %v1407, %v1411
      %v1414 = vmul.f32 %v1408, %v1411
      %v1415 = vadd.f32 %v1384, %v1413
      %v1416 = vadd.f32 %v1385, %v1414
      %1417 = vrot.lane.b32.xlu0 %v827, 30
      %v1418 = vpop.permute.xlu0 %1417
      %1419 = vrot.lane.b32.xlu0 %v828, 30
      %v1420 = vpop.permute.xlu0 %1419
      %vm1421 = vcmp.lt.s32.totalorder %v935, 30
      %v1422 = vsel %vm1421, %v1418, %v1420
      %v1423 = vsel %vm1421, %v1420, %v1418
      %vm1424 = vcmp.ge.s32.totalorder %v492, 4294967294
      %vm1425 = vcmp.lt.s32.totalorder %v492, 14
      %vm1426 = vmand %vm1424, %vm1425
      %vm1427 = vmand %vm1296, %vm1426
      %v1428 = vsel %vm1427, 1, 0
      %v1429 = vcvt.s32.f32 %v1428
      %v1431 = vlaneseq
      %v1432 = vshrl.u32 %v1431, 7
      %v1433 = vsub.s32 0, %v1432
      %v1434 = vrot.slane %v1429, %v1433
      %v1435 = vlaneseq
      %v1436 = vshrl.u32 %v1435, 7
      %v1437 = vsub.s32 1, %v1436
      %v1438 = vrot.slane %v1429, %v1437
      %v1441 = vmul.f32 %v1423, %v1434
      %v1442 = vmul.f32 %v1422, %v1438
      %1443 = vset.pattern.permute.xlu0 4
      %1444 = vperm.xlu0 %1443, %v1286
      %v1445 = vpop.permute.xlu0 %1444
      %v1447 = vmul.f32 %v1441, %v1445
      %v1448 = vmul.f32 %v1442, %v1445
      %v1449 = vadd.f32 %v1415, %v1447
      %v1450 = vadd.f32 %v1416, %v1448
      %1451 = vrot.lane.b32.xlu0 %v827, 18
      %v1452 = vpop.permute.xlu0 %1451
      %1453 = vrot.lane.b32.xlu0 %v828, 18
      %v1454 = vpop.permute.xlu0 %1453
      %vm1455 = vcmp.lt.s32.totalorder %v935, 18
      %v1456 = vsel %vm1455, %v1452, %v1454
      %v1457 = vsel %vm1455, %v1454, %v1452
      %vm1458 = vmand %vm941, %vm1299
      %v1459 = vsel %vm1458, 1, 0
      %v1460 = vcvt.s32.f32 %v1459
      %v1462 = vlaneseq
      %v1463 = vshrl.u32 %v1462, 7
      %v1464 = vsub.s32 0, %v1463
      %v1465 = vrot.slane %v1460, %v1464
      %v1466 = vlaneseq
      %v1467 = vshrl.u32 %v1466, 7
      %v1468 = vsub.s32 1, %v1467
      %v1469 = vrot.slane %v1460, %v1468
      %v1472 = vmul.f32 %v1457, %v1465
      %v1473 = vmul.f32 %v1456, %v1469
      %1474 = vset.pattern.permute.xlu0 5
      %1475 = vperm.xlu0 %1474, %v1286
      %v1476 = vpop.permute.xlu0 %1475
      %v1478 = vmul.f32 %v1472, %v1476
      %v1479 = vmul.f32 %v1473, %v1476
      %v1480 = vadd.f32 %v1449, %v1478
      %v1481 = vadd.f32 %v1450, %v1479
      %1482 = vrot.lane.b32.xlu0 %v827, 17
      %v1483 = vpop.permute.xlu0 %1482
      %1484 = vrot.lane.b32.xlu0 %v828, 17
      %v1485 = vpop.permute.xlu0 %1484
      %v1486 = vsel %vm936, %v1483, %v1485
      %v1487 = vsel %vm936, %v1485, %v1483
      %v1488 = vmul.f32 %v1487, %v952
      %v1489 = vmul.f32 %v1486, %v956
      %1490 = vset.pattern.permute.xlu0 6
      %1491 = vperm.xlu0 %1490, %v1286
      %v1492 = vpop.permute.xlu0 %1491
      %v1494 = vmul.f32 %v1488, %v1492
      %v1495 = vmul.f32 %v1489, %v1492
      %v1496 = vadd.f32 %v1480, %v1494
      %v1497 = vadd.f32 %v1481, %v1495
      %1498 = vrot.lane.b32.xlu0 %v827, 16
      %v1499 = vpop.permute.xlu0 %1498
      %1500 = vrot.lane.b32.xlu0 %v828, 16
      %v1501 = vpop.permute.xlu0 %1500
      %v1502 = vsel %vm974, %v1499, %v1501
      %v1503 = vsel %vm974, %v1501, %v1499
      %v1504 = vmul.f32 %v1503, %v983
      %v1505 = vmul.f32 %v1502, %v987
      %1506 = vset.pattern.permute.xlu0 7
      %1507 = vperm.xlu0 %1506, %v1286
      %v1508 = vpop.permute.xlu0 %1507
      %v1510 = vmul.f32 %v1504, %v1508
      %v1511 = vmul.f32 %v1505, %v1508
      %v1512 = vadd.f32 %v1496, %v1510
      %v1513 = vadd.f32 %v1497, %v1511
      %1514 = vrot.lane.b32.xlu0 %v827, 15
      %v1515 = vpop.permute.xlu0 %1514
      %1516 = vrot.lane.b32.xlu0 %v828, 15
      %v1517 = vpop.permute.xlu0 %1516
      %v1518 = vsel %vm1004, %v1515, %v1517
      %v1519 = vsel %vm1004, %v1517, %v1515
      %v1520 = vmul.f32 %v1519, %v1017
      %v1521 = vmul.f32 %v1518, %v1021
      %1522 = vset.pattern.permute.xlu0 8
      %1523 = vperm.xlu0 %1522, %v1286
      %v1524 = vpop.permute.xlu0 %1523
      %v1526 = vmul.f32 %v1520, %v1524
      %v1527 = vmul.f32 %v1521, %v1524
      %v1528 = vadd.f32 %v1512, %v1526
      %v1529 = vadd.f32 %v1513, %v1527
      %1530 = vrot.lane.b32.xlu0 %v827, 14
      %v1531 = vpop.permute.xlu0 %1530
      %1532 = vrot.lane.b32.xlu0 %v828, 14
      %v1533 = vpop.permute.xlu0 %1532
      %vm1534 = vcmp.lt.s32.totalorder %v935, 14
      %v1535 = vsel %vm1534, %v1531, %v1533
      %v1536 = vsel %vm1534, %v1533, %v1531
      %vm1537 = vmand %vm941, %vm1426
      %v1538 = vsel %vm1537, 1, 0
      %v1539 = vcvt.s32.f32 %v1538
      %v1541 = vlaneseq
      %v1542 = vshrl.u32 %v1541, 7
      %v1543 = vsub.s32 0, %v1542
      %v1544 = vrot.slane %v1539, %v1543
      %v1545 = vlaneseq
      %v1546 = vshrl.u32 %v1545, 7
      %v1547 = vsub.s32 1, %v1546
      %v1548 = vrot.slane %v1539, %v1547
      %v1551 = vmul.f32 %v1536, %v1544
      %v1552 = vmul.f32 %v1535, %v1548
      %1553 = vset.pattern.permute.xlu0 9
      %1554 = vperm.xlu0 %1553, %v1286
      %v1555 = vpop.permute.xlu0 %1554
      %v1557 = vmul.f32 %v1551, %v1555
      %v1558 = vmul.f32 %v1552, %v1555
      %v1559 = vadd.f32 %v1528, %v1557
      %v1560 = vadd.f32 %v1529, %v1558
      %1561 = vrot.lane.b32.xlu0 %v827, 2
      %v1562 = vpop.permute.xlu0 %1561
      %1563 = vrot.lane.b32.xlu0 %v828, 2
      %v1564 = vpop.permute.xlu0 %1563
      %vm1565 = vcmp.lt.s32.totalorder %v935, 2
      %v1566 = vsel %vm1565, %v1562, %v1564
      %v1567 = vsel %vm1565, %v1564, %v1562
      %v1568 = vsel %vm1299, 1, 0
      %v1569 = vcvt.s32.f32 %v1568
      %v1571 = vlaneseq
      %v1572 = vshrl.u32 %v1571, 7
      %v1573 = vsub.s32 0, %v1572
      %v1574 = vrot.slane %v1569, %v1573
      %v1575 = vlaneseq
      %v1576 = vshrl.u32 %v1575, 7
      %v1577 = vsub.s32 1, %v1576
      %v1578 = vrot.slane %v1569, %v1577
      %v1581 = vmul.f32 %v1567, %v1574
      %v1582 = vmul.f32 %v1566, %v1578
      %1583 = vset.pattern.permute.xlu0 10
      %1584 = vperm.xlu0 %1583, %v1286
      %v1585 = vpop.permute.xlu0 %1584
      %v1587 = vmul.f32 %v1581, %v1585
      %v1588 = vmul.f32 %v1582, %v1585
      %v1589 = vadd.f32 %v1559, %v1587
      %v1590 = vadd.f32 %v1560, %v1588
      %1591 = vrot.lane.b32.xlu0 %v827, 1
      %v1592 = vpop.permute.xlu0 %1591
      %1593 = vrot.lane.b32.xlu0 %v828, 1
      %v1594 = vpop.permute.xlu0 %1593
      %v1595 = vsel %vm1038, %v1592, %v1594
      %v1596 = vsel %vm1038, %v1594, %v1592
      %v1597 = vmul.f32 %v1596, %v1047
      %v1598 = vmul.f32 %v1595, %v1051
      %1599 = vset.pattern.permute.xlu0 11
      %1600 = vperm.xlu0 %1599, %v1286
      %v1601 = vpop.permute.xlu0 %1600
      %v1603 = vmul.f32 %v1597, %v1601
      %v1604 = vmul.f32 %v1598, %v1601
      %v1605 = vadd.f32 %v1589, %v1603
      %v1606 = vadd.f32 %v1590, %v1604
      %1607 = vset.pattern.permute.xlu0 12
      %1608 = vperm.xlu0 %1607, %v1286
      %v1609 = vpop.permute.xlu0 %1608
      %v1611 = vmul.f32 %v827, %v1609
      %v1612 = vmul.f32 %v828, %v1609
      %v1613 = vadd.f32 %v1605, %v1611
      %v1614 = vadd.f32 %v1606, %v1612
      %1615 = vrot.lane.b32.xlu0 %v827, 127
      %v1616 = vpop.permute.xlu0 %1615
      %1617 = vrot.lane.b32.xlu0 %v828, 127
      %v1618 = vpop.permute.xlu0 %1617
      %v1619 = vsel %vm1083, %v1616, %v1618
      %v1620 = vsel %vm1083, %v1618, %v1616
      %v1621 = vmul.f32 %v1619, %v1092
      %v1622 = vmul.f32 %v1620, %v1096
      %1623 = vset.pattern.permute.xlu0 13
      %1624 = vperm.xlu0 %1623, %v1286
      %v1625 = vpop.permute.xlu0 %1624
      %v1627 = vmul.f32 %v1621, %v1625
      %v1628 = vmul.f32 %v1622, %v1625
      %v1629 = vadd.f32 %v1613, %v1627
      %v1630 = vadd.f32 %v1614, %v1628
      %1631 = vrot.lane.b32.xlu0 %v827, 126
      %v1632 = vpop.permute.xlu0 %1631
      %1633 = vrot.lane.b32.xlu0 %v828, 126
      %v1634 = vpop.permute.xlu0 %1633
      %vm1635 = vcmp.lt.s32.totalorder %v935, 126
      %v1636 = vsel %vm1635, %v1632, %v1634
      %v1637 = vsel %vm1635, %v1634, %v1632
      %v1638 = vsel %vm1426, 1, 0
      %v1639 = vcvt.s32.f32 %v1638
      %v1641 = vlaneseq
      %v1642 = vshrl.u32 %v1641, 7
      %v1643 = vsub.s32 0, %v1642
      %v1644 = vrot.slane %v1639, %v1643
      %v1645 = vlaneseq
      %v1646 = vshrl.u32 %v1645, 7
      %v1647 = vsub.s32 1, %v1646
      %v1648 = vrot.slane %v1639, %v1647
      %v1651 = vmul.f32 %v1636, %v1644
      %v1652 = vmul.f32 %v1637, %v1648
      %1653 = vset.pattern.permute.xlu0 14
      %1654 = vperm.xlu0 %1653, %v1286
      %v1655 = vpop.permute.xlu0 %1654
      %v1657 = vmul.f32 %v1651, %v1655
      %v1658 = vmul.f32 %v1652, %v1655
      %v1659 = vadd.f32 %v1629, %v1657
      %v1660 = vadd.f32 %v1630, %v1658
      %1661 = vrot.lane.b32.xlu0 %v827, 114
      %v1662 = vpop.permute.xlu0 %1661
      %1663 = vrot.lane.b32.xlu0 %v828, 114
      %v1664 = vpop.permute.xlu0 %1663
      %vm1665 = vcmp.lt.s32.totalorder %v935, 114
      %v1666 = vsel %vm1665, %v1662, %v1664
      %v1667 = vsel %vm1665, %v1664, %v1662
      %vm1668 = vmand %vm1118, %vm1299
      %v1669 = vsel %vm1668, 1, 0
      %v1670 = vcvt.s32.f32 %v1669
      %v1672 = vlaneseq
      %v1673 = vshrl.u32 %v1672, 7
      %v1674 = vsub.s32 0, %v1673
      %v1675 = vrot.slane %v1670, %v1674
      %v1676 = vlaneseq
      %v1677 = vshrl.u32 %v1676, 7
      %v1678 = vsub.s32 1, %v1677
      %v1679 = vrot.slane %v1670, %v1678
      %v1682 = vmul.f32 %v1666, %v1675
      %v1683 = vmul.f32 %v1667, %v1679
      %1684 = vset.pattern.permute.xlu0 15
      %1685 = vperm.xlu0 %1684, %v1286
      %v1686 = vpop.permute.xlu0 %1685
      %v1688 = vmul.f32 %v1682, %v1686
      %v1689 = vmul.f32 %v1683, %v1686
      %v1690 = vadd.f32 %v1659, %v1688
      %v1691 = vadd.f32 %v1660, %v1689
      %1692 = vrot.lane.b32.xlu0 %v827, 113
      %v1693 = vpop.permute.xlu0 %1692
      %1694 = vrot.lane.b32.xlu0 %v828, 113
      %v1695 = vpop.permute.xlu0 %1694
      %v1696 = vsel %vm1113, %v1693, %v1695
      %v1697 = vsel %vm1113, %v1695, %v1693
      %v1698 = vmul.f32 %v1696, %v1126
      %v1699 = vmul.f32 %v1697, %v1130
      %1700 = vset.pattern.permute.xlu0 16
      %1701 = vperm.xlu0 %1700, %v1286
      %v1702 = vpop.permute.xlu0 %1701
      %v1704 = vmul.f32 %v1698, %v1702
      %v1705 = vmul.f32 %v1699, %v1702
      %v1706 = vadd.f32 %v1690, %v1704
      %v1707 = vadd.f32 %v1691, %v1705
      %1708 = vrot.lane.b32.xlu0 %v827, 112
      %v1709 = vpop.permute.xlu0 %1708
      %1710 = vrot.lane.b32.xlu0 %v828, 112
      %v1711 = vpop.permute.xlu0 %1710
      %v1712 = vsel %vm1147, %v1709, %v1711
      %v1713 = vsel %vm1147, %v1711, %v1709
      %v1714 = vmul.f32 %v1712, %v1156
      %v1715 = vmul.f32 %v1713, %v1160
      %1716 = vset.pattern.permute.xlu0 17
      %1717 = vperm.xlu0 %1716, %v1286
      %v1718 = vpop.permute.xlu0 %1717
      %v1720 = vmul.f32 %v1714, %v1718
      %v1721 = vmul.f32 %v1715, %v1718
      %v1722 = vadd.f32 %v1706, %v1720
      %v1723 = vadd.f32 %v1707, %v1721
      %1724 = vrot.lane.b32.xlu0 %v827, 111
      %v1725 = vpop.permute.xlu0 %1724
      %1726 = vrot.lane.b32.xlu0 %v828, 111
      %v1727 = vpop.permute.xlu0 %1726
      %v1728 = vsel %vm1177, %v1725, %v1727
      %v1729 = vsel %vm1177, %v1727, %v1725
      %v1730 = vmul.f32 %v1728, %v1187
      %v1731 = vmul.f32 %v1729, %v1191
      %1732 = vset.pattern.permute.xlu0 18
      %1733 = vperm.xlu0 %1732, %v1286
      %v1734 = vpop.permute.xlu0 %1733
      %v1736 = vmul.f32 %v1730, %v1734
      %v1737 = vmul.f32 %v1731, %v1734
      %v1738 = vadd.f32 %v1722, %v1736
      %v1739 = vadd.f32 %v1723, %v1737
      %1740 = vrot.lane.b32.xlu0 %v827, 110
      %v1741 = vpop.permute.xlu0 %1740
      %1742 = vrot.lane.b32.xlu0 %v828, 110
      %v1743 = vpop.permute.xlu0 %1742
      %vm1744 = vcmp.lt.s32.totalorder %v935, 110
      %v1745 = vsel %vm1744, %v1741, %v1743
      %v1746 = vsel %vm1744, %v1743, %v1741
      %vm1747 = vmand %vm1118, %vm1426
      %v1748 = vsel %vm1747, 1, 0
      %v1749 = vcvt.s32.f32 %v1748
      %v1751 = vlaneseq
      %v1752 = vshrl.u32 %v1751, 7
      %v1753 = vsub.s32 0, %v1752
      %v1754 = vrot.slane %v1749, %v1753
      %v1755 = vlaneseq
      %v1756 = vshrl.u32 %v1755, 7
      %v1757 = vsub.s32 1, %v1756
      %v1758 = vrot.slane %v1749, %v1757
      %v1761 = vmul.f32 %v1745, %v1754
      %v1762 = vmul.f32 %v1746, %v1758
      %1763 = vset.pattern.permute.xlu0 19
      %1764 = vperm.xlu0 %1763, %v1286
      %v1765 = vpop.permute.xlu0 %1764
      %v1767 = vmul.f32 %v1761, %v1765
      %v1768 = vmul.f32 %v1762, %v1765
      %v1769 = vadd.f32 %v1738, %v1767
      %v1770 = vadd.f32 %v1739, %v1768
      %1771 = vrot.lane.b32.xlu0 %v827, 98
      %v1772 = vpop.permute.xlu0 %1771
      %1773 = vrot.lane.b32.xlu0 %v828, 98
      %v1774 = vpop.permute.xlu0 %1773
      %vm1775 = vcmp.lt.s32.totalorder %v935, 98
      %v1776 = vsel %vm1775, %v1772, %v1774
      %v1777 = vsel %vm1775, %v1774, %v1772
      %vm1778 = vcmp.ge.s32.totalorder %v490, 4294967294
      %vm1779 = vcmp.lt.s32.totalorder %v490, 14
      %vm1780 = vmand %vm1778, %vm1779
      %vm1781 = vmand %vm1780, %vm1299
      %v1782 = vsel %vm1781, 1, 0
      %v1783 = vcvt.s32.f32 %v1782
      %v1785 = vlaneseq
      %v1786 = vshrl.u32 %v1785, 7
      %v1787 = vsub.s32 0, %v1786
      %v1788 = vrot.slane %v1783, %v1787
      %v1789 = vlaneseq
      %v1790 = vshrl.u32 %v1789, 7
      %v1791 = vsub.s32 1, %v1790
      %v1792 = vrot.slane %v1783, %v1791
      %v1795 = vmul.f32 %v1776, %v1788
      %v1796 = vmul.f32 %v1777, %v1792
      %1797 = vset.pattern.permute.xlu0 20
      %1798 = vperm.xlu0 %1797, %v1286
      %v1799 = vpop.permute.xlu0 %1798
      %v1801 = vmul.f32 %v1795, %v1799
      %v1802 = vmul.f32 %v1796, %v1799
      %v1803 = vadd.f32 %v1769, %v1801
      %v1804 = vadd.f32 %v1770, %v1802
      %1805 = vrot.lane.b32.xlu0 %v827, 97
      %v1806 = vpop.permute.xlu0 %1805
      %1807 = vrot.lane.b32.xlu0 %v828, 97
      %v1808 = vpop.permute.xlu0 %1807
      %vm1809 = vcmp.lt.s32.totalorder %v935, 97
      %v1810 = vsel %vm1809, %v1806, %v1808
      %v1811 = vsel %vm1809, %v1808, %v1806
      %vm1812 = vmand %vm1780, %vm944
      %v1813 = vsel %vm1812, 1, 0
      %v1814 = vcvt.s32.f32 %v1813
      %v1816 = vlaneseq
      %v1817 = vshrl.u32 %v1816, 7
      %v1818 = vsub.s32 0, %v1817
      %v1819 = vrot.slane %v1814, %v1818
      %v1820 = vlaneseq
      %v1821 = vshrl.u32 %v1820, 7
      %v1822 = vsub.s32 1, %v1821
      %v1823 = vrot.slane %v1814, %v1822
      %v1826 = vmul.f32 %v1810, %v1819
      %v1827 = vmul.f32 %v1811, %v1823
      %1828 = vset.pattern.permute.xlu0 21
      %1829 = vperm.xlu0 %1828, %v1286
      %v1830 = vpop.permute.xlu0 %1829
      %v1832 = vmul.f32 %v1826, %v1830
      %v1833 = vmul.f32 %v1827, %v1830
      %v1834 = vadd.f32 %v1803, %v1832
      %v1835 = vadd.f32 %v1804, %v1833
      %1836 = vrot.lane.b32.xlu0 %v827, 96
      %v1837 = vpop.permute.xlu0 %1836
      %1838 = vrot.lane.b32.xlu0 %v828, 96
      %v1839 = vpop.permute.xlu0 %1838
      %vm1840 = vcmp.lt.s32.totalorder %v935, 96
      %v1841 = vsel %vm1840, %v1837, %v1839
      %v1842 = vsel %vm1840, %v1839, %v1837
      %v1843 = vsel %vm1780, 1, 0
      %v1844 = vcvt.s32.f32 %v1843
      %v1846 = vlaneseq
      %v1847 = vshrl.u32 %v1846, 7
      %v1848 = vsub.s32 0, %v1847
      %v1849 = vrot.slane %v1844, %v1848
      %v1850 = vlaneseq
      %v1851 = vshrl.u32 %v1850, 7
      %v1852 = vsub.s32 1, %v1851
      %v1853 = vrot.slane %v1844, %v1852
      %v1856 = vmul.f32 %v1841, %v1849
      %v1857 = vmul.f32 %v1842, %v1853
      %1858 = vset.pattern.permute.xlu0 22
      %1859 = vperm.xlu0 %1858, %v1286
      %v1860 = vpop.permute.xlu0 %1859
      %v1862 = vmul.f32 %v1856, %v1860
      %v1863 = vmul.f32 %v1857, %v1860
      %v1864 = vadd.f32 %v1834, %v1862
      %v1865 = vadd.f32 %v1835, %v1863
      %1866 = vrot.lane.b32.xlu0 %v827, 95
      %v1867 = vpop.permute.xlu0 %1866
      %1868 = vrot.lane.b32.xlu0 %v828, 95
      %v1869 = vpop.permute.xlu0 %1868
      %vm1870 = vcmp.lt.s32.totalorder %v935, 95
      %v1871 = vsel %vm1870, %v1867, %v1869
      %v1872 = vsel %vm1870, %v1869, %v1867
      %vm1873 = vmand %vm1780, %vm1009
      %v1874 = vsel %vm1873, 1, 0
      %v1875 = vcvt.s32.f32 %v1874
      %v1877 = vlaneseq
      %v1878 = vshrl.u32 %v1877, 7
      %v1879 = vsub.s32 0, %v1878
      %v1880 = vrot.slane %v1875, %v1879
      %v1881 = vlaneseq
      %v1882 = vshrl.u32 %v1881, 7
      %v1883 = vsub.s32 1, %v1882
      %v1884 = vrot.slane %v1875, %v1883
      %v1887 = vmul.f32 %v1871, %v1880
      %v1888 = vmul.f32 %v1872, %v1884
      %1889 = vset.pattern.permute.xlu0 23
      %1890 = vperm.xlu0 %1889, %v1286
      %v1891 = vpop.permute.xlu0 %1890
      %v1893 = vmul.f32 %v1887, %v1891
      %v1894 = vmul.f32 %v1888, %v1891
      %v1895 = vadd.f32 %v1864, %v1893
      %v1896 = vadd.f32 %v1865, %v1894
      %1897 = vrot.lane.b32.xlu0 %v827, 94
      %v1898 = vpop.permute.xlu0 %1897
      %1899 = vrot.lane.b32.xlu0 %v828, 94
      %v1900 = vpop.permute.xlu0 %1899
      %vm1901 = vcmp.lt.s32.totalorder %v935, 94
      %v1902 = vsel %vm1901, %v1898, %v1900
      %v1903 = vsel %vm1901, %v1900, %v1898
      %vm1904 = vmand %vm1780, %vm1426
      %v1905 = vsel %vm1904, 1, 0
      %v1906 = vcvt.s32.f32 %v1905
      %v1908 = vlaneseq
      %v1909 = vshrl.u32 %v1908, 7
      %v1910 = vsub.s32 0, %v1909
      %v1911 = vrot.slane %v1906, %v1910
      %v1912 = vlaneseq
      %v1913 = vshrl.u32 %v1912, 7
      %v1914 = vsub.s32 1, %v1913
      %v1915 = vrot.slane %v1906, %v1914
      %v1918 = vmul.f32 %v1902, %v1911
      %v1919 = vmul.f32 %v1903, %v1915
      %1920 = vset.pattern.permute.xlu0 24
      %1921 = vperm.xlu0 %1920, %v1286
      %v1922 = vpop.permute.xlu0 %1921
      %v1924 = vmul.f32 %v1918, %v1922
      %v1925 = vmul.f32 %v1919, %v1922
      %v1926 = vadd.f32 %v1895, %v1924
      %v1927 = vadd.f32 %v1896, %v1925
      %v1928 = vmul.f32 %v1926, %v1926
      %v1929 = vmul.f32 %v1927, %v1927
      %v1930 = vmul.f32 %v1926, %v1928
      %v1931 = vmul.f32 %v1927, %v1929
      %v1932 = vmul.f32 %v1930, 0.044715
      %v1933 = vmul.f32 %v1931, 0.044715
      %v1934 = vadd.f32 %v1926, %v1932
      %v1935 = vadd.f32 %v1927, %v1933
      %v1936 = vmul.f32 %v1934, 0.7978846
      %v1937 = vmul.f32 %v1935, 0.7978846
      %v1938 = vtanh.pop %v1936
      %v1939 = vtanh.pop %v1937
      %v1940 = vadd.f32 %v1938, 1.0
      %v1941 = vadd.f32 %v1939, 1.0
      %v1942 = vmul.f32 %v1940, 0.5
      %v1943 = vmul.f32 %v1941, 0.5
      %v1944 = vmul.f32 %v1926, %v1942
      %v1945 = vmul.f32 %v1927, %v1943
      %1946 = vset.pattern.permute.xlu0 8
      %1947 = vperm.xlu0 %1946, %v829
      %v1948 = vpop.permute.xlu0 %1947
      %v1950 = vlaneseq
      %v1951 = vshrl.u32 %v1950, 7
      %v1952 = vsub.s32 0, %v1951
      %v1953 = vrot.slane %v1944, %v1952
      %v1954 = vlaneseq
      %v1955 = vshrl.u32 %v1954, 7
      %v1956 = vsub.s32 0, %v1955
      %v1957 = vrot.slane %v1945, %v1956
      %v1958 = vmul.f32 %v1948, %v1953
      %v1959 = vmul.f32 %v1948, %v1957
      %v1960 = vadd.f32 %v1284, %v1958
      %v1961 = vadd.f32 %v1285, %v1959
      %1962 = vset.pattern.permute.xlu0 9
      %1963 = vperm.xlu0 %1962, %v829
      %v1964 = vpop.permute.xlu0 %1963
      %v1966 = vlaneseq
      %v1967 = vshrl.u32 %v1966, 7
      %v1968 = vsub.s32 1, %v1967
      %v1969 = vrot.slane %v1944, %v1968
      %v1970 = vlaneseq
      %v1971 = vshrl.u32 %v1970, 7
      %v1972 = vsub.s32 1, %v1971
      %v1973 = vrot.slane %v1945, %v1972
      %v1974 = vmul.f32 %v1964, %v1969
      %v1975 = vmul.f32 %v1964, %v1973
      %v1976 = vadd.f32 %v1960, %v1974
      %v1977 = vadd.f32 %v1961, %v1975
      %1978 = vset.pattern.permute.xlu0 10
      %1979 = vperm.xlu0 %1978, %v829
      %v1980 = vpop.permute.xlu0 %1979
      %v1982 = vlaneseq
      %v1983 = vshrl.u32 %v1982, 7
      %v1984 = vsub.s32 2, %v1983
      %v1985 = vrot.slane %v1944, %v1984
      %v1986 = vlaneseq
      %v1987 = vshrl.u32 %v1986, 7
      %v1988 = vsub.s32 2, %v1987
      %v1989 = vrot.slane %v1945, %v1988
      %v1990 = vmul.f32 %v1980, %v1985
      %v1991 = vmul.f32 %v1980, %v1989
      %v1992 = vadd.f32 %v1976, %v1990
      %v1993 = vadd.f32 %v1977, %v1991
      %1994 = vset.pattern.permute.xlu0 11
      %1995 = vperm.xlu0 %1994, %v829
      %v1996 = vpop.permute.xlu0 %1995
      %v1998 = vlaneseq
      %v1999 = vshrl.u32 %v1998, 7
      %v2000 = vsub.s32 3, %v1999
      %v2001 = vrot.slane %v1944, %v2000
      %v2002 = vlaneseq
      %v2003 = vshrl.u32 %v2002, 7
      %v2004 = vsub.s32 3, %v2003
      %v2005 = vrot.slane %v1945, %v2004
      %v2006 = vmul.f32 %v1996, %v2001
      %v2007 = vmul.f32 %v1996, %v2005
      %v2008 = vadd.f32 %v1992, %v2006
      %v2009 = vadd.f32 %v1993, %v2007
      %v2010 = vld [vmem:[%s9] sm:$0xf]
      %v2013 = vrot.slane %v827, 4
      %v2014 = vrot.slane %v828, 4
      %2017 = vrot.lane.b32.xlu0 %v2013, 51
      %v2018 = vpop.permute.xlu0 %2017
      %2019 = vrot.lane.b32.xlu0 %v2014, 51
      %v2020 = vpop.permute.xlu0 %2019
      %vm2021 = vcmp.lt.s32.totalorder %v935, 51
      %v2022 = vsel %vm2021, %v2018, %v2020
      %v2023 = vsel %vm2021, %v2020, %v2018
      %vm2024 = vcmp.ge.s32.totalorder %v490, 3
      %vm2025 = vcmp.lt.s32.totalorder %v490, 19
      %vm2026 = vmand %vm2024, %vm2025
      %vm2027 = vcmp.ge.s32.totalorder %v492, 3
      %vm2028 = vcmp.lt.s32.totalorder %v492, 19
      %vm2029 = vmand %vm2027, %vm2028
      %vm2030 = vmand %vm2026, %vm2029
      %v2031 = vsel %vm2030, 1, 0
      %v2032 = vcvt.s32.f32 %v2031
      %v2034 = vlaneseq
      %v2035 = vshrl.u32 %v2034, 7
      %v2036 = vsub.s32 0, %v2035
      %v2037 = vrot.slane %v2032, %v2036
      %v2038 = vlaneseq
      %v2039 = vshrl.u32 %v2038, 7
      %v2040 = vsub.s32 1, %v2039
      %v2041 = vrot.slane %v2032, %v2040
      %v2044 = vmul.f32 %v2023, %v2037
      %v2045 = vmul.f32 %v2022, %v2041
      %2047 = vset.pattern.permute.xlu0 0
      %2048 = vperm.xlu0 %2047, %v2010
      %v2049 = vpop.permute.xlu0 %2048
      %v2051 = vmul.f32 %v2044, %v2049
      %v2052 = vmul.f32 %v2045, %v2049
      %v2053 = vadd.f32 %v2051, 0.0
      %v2054 = vadd.f32 %v2052, 0.0
      %2055 = vrot.lane.b32.xlu0 %v2013, 50
      %v2056 = vpop.permute.xlu0 %2055
      %2057 = vrot.lane.b32.xlu0 %v2014, 50
      %v2058 = vpop.permute.xlu0 %2057
      %vm2059 = vcmp.lt.s32.totalorder %v935, 50
      %v2060 = vsel %vm2059, %v2056, %v2058
      %v2061 = vsel %vm2059, %v2058, %v2056
      %vm2062 = vmand %vm2026, %vm1299
      %v2063 = vsel %vm2062, 1, 0
      %v2064 = vcvt.s32.f32 %v2063
      %v2066 = vlaneseq
      %v2067 = vshrl.u32 %v2066, 7
      %v2068 = vsub.s32 0, %v2067
      %v2069 = vrot.slane %v2064, %v2068
      %v2070 = vlaneseq
      %v2071 = vshrl.u32 %v2070, 7
      %v2072 = vsub.s32 1, %v2071
      %v2073 = vrot.slane %v2064, %v2072
      %v2076 = vmul.f32 %v2061, %v2069
      %v2077 = vmul.f32 %v2060, %v2073
      %2078 = vset.pattern.permute.xlu0 1
      %2079 = vperm.xlu0 %2078, %v2010
      %v2080 = vpop.permute.xlu0 %2079
      %v2082 = vmul.f32 %v2076, %v2080
      %v2083 = vmul.f32 %v2077, %v2080
      %v2084 = vadd.f32 %v2053, %v2082
      %v2085 = vadd.f32 %v2054, %v2083
      %2086 = vrot.lane.b32.xlu0 %v2013, 49
      %v2087 = vpop.permute.xlu0 %2086
      %2088 = vrot.lane.b32.xlu0 %v2014, 49
      %v2089 = vpop.permute.xlu0 %2088
      %vm2090 = vcmp.lt.s32.totalorder %v935, 49
      %v2091 = vsel %vm2090, %v2087, %v2089
      %v2092 = vsel %vm2090, %v2089, %v2087
      %vm2093 = vmand %vm2026, %vm944
      %v2094 = vsel %vm2093, 1, 0
      %v2095 = vcvt.s32.f32 %v2094
      %v2097 = vlaneseq
      %v2098 = vshrl.u32 %v2097, 7
      %v2099 = vsub.s32 0, %v2098
      %v2100 = vrot.slane %v2095, %v2099
      %v2101 = vlaneseq
      %v2102 = vshrl.u32 %v2101, 7
      %v2103 = vsub.s32 1, %v2102
      %v2104 = vrot.slane %v2095, %v2103
      %v2107 = vmul.f32 %v2092, %v2100
      %v2108 = vmul.f32 %v2091, %v2104
      %2109 = vset.pattern.permute.xlu0 2
      %2110 = vperm.xlu0 %2109, %v2010
      %v2111 = vpop.permute.xlu0 %2110
      %v2113 = vmul.f32 %v2107, %v2111
      %v2114 = vmul.f32 %v2108, %v2111
      %v2115 = vadd.f32 %v2084, %v2113
      %v2116 = vadd.f32 %v2085, %v2114
      %2117 = vrot.lane.b32.xlu0 %v2013, 48
      %v2118 = vpop.permute.xlu0 %2117
      %2119 = vrot.lane.b32.xlu0 %v2014, 48
      %v2120 = vpop.permute.xlu0 %2119
      %vm2121 = vcmp.lt.s32.totalorder %v935, 48
      %v2122 = vsel %vm2121, %v2118, %v2120
      %v2123 = vsel %vm2121, %v2120, %v2118
      %v2124 = vsel %vm2026, 1, 0
      %v2125 = vcvt.s32.f32 %v2124
      %v2127 = vlaneseq
      %v2128 = vshrl.u32 %v2127, 7
      %v2129 = vsub.s32 0, %v2128
      %v2130 = vrot.slane %v2125, %v2129
      %v2131 = vlaneseq
      %v2132 = vshrl.u32 %v2131, 7
      %v2133 = vsub.s32 1, %v2132
      %v2134 = vrot.slane %v2125, %v2133
      %v2137 = vmul.f32 %v2123, %v2130
      %v2138 = vmul.f32 %v2122, %v2134
      %2139 = vset.pattern.permute.xlu0 3
      %2140 = vperm.xlu0 %2139, %v2010
      %v2141 = vpop.permute.xlu0 %2140
      %v2143 = vmul.f32 %v2137, %v2141
      %v2144 = vmul.f32 %v2138, %v2141
      %v2145 = vadd.f32 %v2115, %v2143
      %v2146 = vadd.f32 %v2116, %v2144
      %2147 = vrot.lane.b32.xlu0 %v2013, 47
      %v2148 = vpop.permute.xlu0 %2147
      %2149 = vrot.lane.b32.xlu0 %v2014, 47
      %v2150 = vpop.permute.xlu0 %2149
      %vm2151 = vcmp.lt.s32.totalorder %v935, 47
      %v2152 = vsel %vm2151, %v2148, %v2150
      %v2153 = vsel %vm2151, %v2150, %v2148
      %vm2154 = vmand %vm2026, %vm1009
      %v2155 = vsel %vm2154, 1, 0
      %v2156 = vcvt.s32.f32 %v2155
      %v2158 = vlaneseq
      %v2159 = vshrl.u32 %v2158, 7
      %v2160 = vsub.s32 0, %v2159
      %v2161 = vrot.slane %v2156, %v2160
      %v2162 = vlaneseq
      %v2163 = vshrl.u32 %v2162, 7
      %v2164 = vsub.s32 1, %v2163
      %v2165 = vrot.slane %v2156, %v2164
      %v2168 = vmul.f32 %v2153, %v2161
      %v2169 = vmul.f32 %v2152, %v2165
      %2170 = vset.pattern.permute.xlu0 4
      %2171 = vperm.xlu0 %2170, %v2010
      %v2172 = vpop.permute.xlu0 %2171
      %v2174 = vmul.f32 %v2168, %v2172
      %v2175 = vmul.f32 %v2169, %v2172
      %v2176 = vadd.f32 %v2145, %v2174
      %v2177 = vadd.f32 %v2146, %v2175
      %2178 = vrot.lane.b32.xlu0 %v2013, 46
      %v2179 = vpop.permute.xlu0 %2178
      %2180 = vrot.lane.b32.xlu0 %v2014, 46
      %v2181 = vpop.permute.xlu0 %2180
      %vm2182 = vcmp.lt.s32.totalorder %v935, 46
      %v2183 = vsel %vm2182, %v2179, %v2181
      %v2184 = vsel %vm2182, %v2181, %v2179
      %vm2185 = vmand %vm2026, %vm1426
      %v2186 = vsel %vm2185, 1, 0
      %v2187 = vcvt.s32.f32 %v2186
      %v2189 = vlaneseq
      %v2190 = vshrl.u32 %v2189, 7
      %v2191 = vsub.s32 0, %v2190
      %v2192 = vrot.slane %v2187, %v2191
      %v2193 = vlaneseq
      %v2194 = vshrl.u32 %v2193, 7
      %v2195 = vsub.s32 1, %v2194
      %v2196 = vrot.slane %v2187, %v2195
      %v2199 = vmul.f32 %v2184, %v2192
      %v2200 = vmul.f32 %v2183, %v2196
      %2201 = vset.pattern.permute.xlu0 5
      %2202 = vperm.xlu0 %2201, %v2010
      %v2203 = vpop.permute.xlu0 %2202
      %v2205 = vmul.f32 %v2199, %v2203
      %v2206 = vmul.f32 %v2200, %v2203
      %v2207 = vadd.f32 %v2176, %v2205
      %v2208 = vadd.f32 %v2177, %v2206
      %2209 = vrot.lane.b32.xlu0 %v2013, 45
      %v2210 = vpop.permute.xlu0 %2209
      %2211 = vrot.lane.b32.xlu0 %v2014, 45
      %v2212 = vpop.permute.xlu0 %2211
      %vm2213 = vcmp.lt.s32.totalorder %v935, 45
      %v2214 = vsel %vm2213, %v2210, %v2212
      %v2215 = vsel %vm2213, %v2212, %v2210
      %vm2216 = vcmp.ge.s32.totalorder %v492, 4294967293
      %vm2217 = vcmp.lt.s32.totalorder %v492, 13
      %vm2218 = vmand %vm2216, %vm2217
      %vm2219 = vmand %vm2026, %vm2218
      %v2220 = vsel %vm2219, 1, 0
      %v2221 = vcvt.s32.f32 %v2220
      %v2223 = vlaneseq
      %v2224 = vshrl.u32 %v2223, 7
      %v2225 = vsub.s32 0, %v2224
      %v2226 = vrot.slane %v2221, %v2225
      %v2227 = vlaneseq
      %v2228 = vshrl.u32 %v2227, 7
      %v2229 = vsub.s32 1, %v2228
      %v2230 = vrot.slane %v2221, %v2229
      %v2233 = vmul.f32 %v2215, %v2226
      %v2234 = vmul.f32 %v2214, %v2230
      %2235 = vset.pattern.permute.xlu0 6
      %2236 = vperm.xlu0 %2235, %v2010
      %v2237 = vpop.permute.xlu0 %2236
      %v2239 = vmul.f32 %v2233, %v2237
      %v2240 = vmul.f32 %v2234, %v2237
      %v2241 = vadd.f32 %v2207, %v2239
      %v2242 = vadd.f32 %v2208, %v2240
      %2243 = vrot.lane.b32.xlu0 %v2013, 35
      %v2244 = vpop.permute.xlu0 %2243
      %2245 = vrot.lane.b32.xlu0 %v2014, 35
      %v2246 = vpop.permute.xlu0 %2245
      %vm2247 = vcmp.lt.s32.totalorder %v935, 35
      %v2248 = vsel %vm2247, %v2244, %v2246
      %v2249 = vsel %vm2247, %v2246, %v2244
      %vm2250 = vmand %vm1296, %vm2029
      %v2251 = vsel %vm2250, 1, 0
      %v2252 = vcvt.s32.f32 %v2251
      %v2254 = vlaneseq
      %v2255 = vshrl.u32 %v2254, 7
      %v2256 = vsub.s32 0, %v2255
      %v2257 = vrot.slane %v2252, %v2256
      %v2258 = vlaneseq
      %v2259 = vshrl.u32 %v2258, 7
      %v2260 = vsub.s32 1, %v2259
      %v2261 = vrot.slane %v2252, %v2260
      %v2264 = vmul.f32 %v2249, %v2257
      %v2265 = vmul.f32 %v2248, %v2261
      %2266 = vset.pattern.permute.xlu0 7
      %2267 = vperm.xlu0 %2266, %v2010
      %v2268 = vpop.permute.xlu0 %2267
      %v2270 = vmul.f32 %v2264, %v2268
      %v2271 = vmul.f32 %v2265, %v2268
      %v2272 = vadd.f32 %v2241, %v2270
      %v2273 = vadd.f32 %v2242, %v2271
      %2274 = vrot.lane.b32.xlu0 %v2013, 34
      %v2275 = vpop.permute.xlu0 %2274
      %2276 = vrot.lane.b32.xlu0 %v2014, 34
      %v2277 = vpop.permute.xlu0 %2276
      %v2278 = vsel %vm1291, %v2275, %v2277
      %v2279 = vsel %vm1291, %v2277, %v2275
      %v2280 = vmul.f32 %v2279, %v1307
      %v2281 = vmul.f32 %v2278, %v1311
      %2282 = vset.pattern.permute.xlu0 8
      %2283 = vperm.xlu0 %2282, %v2010
      %v2284 = vpop.permute.xlu0 %2283
      %v2286 = vmul.f32 %v2280, %v2284
      %v2287 = vmul.f32 %v2281, %v2284
      %v2288 = vadd.f32 %v2272, %v2286
      %v2289 = vadd.f32 %v2273, %v2287
      %2290 = vrot.lane.b32.xlu0 %v2013, 33
      %v2291 = vpop.permute.xlu0 %2290
      %2292 = vrot.lane.b32.xlu0 %v2014, 33
      %v2293 = vpop.permute.xlu0 %2292
      %v2294 = vsel %vm1329, %v2291, %v2293
      %v2295 = vsel %vm1329, %v2293, %v2291
      %v2296 = vmul.f32 %v2295, %v1339
      %v2297 = vmul.f32 %v2294, %v1343
      %2298 = vset.pattern.permute.xlu0 9
      %2299 = vperm.xlu0 %2298, %v2010
      %v2300 = vpop.permute.xlu0 %2299
      %v2302 = vmul.f32 %v2296, %v2300
      %v2303 = vmul.f32 %v2297, %v2300
      %v2304 = vadd.f32 %v2288, %v2302
      %v2305 = vadd.f32 %v2289, %v2303
      %2306 = vrot.lane.b32.xlu0 %v2013, 32
      %v2307 = vpop.permute.xlu0 %2306
      %2308 = vrot.lane.b32.xlu0 %v2014, 32
      %v2309 = vpop.permute.xlu0 %2308
      %v2310 = vsel %vm1360, %v2307, %v2309
      %v2311 = vsel %vm1360, %v2309, %v2307
      %v2312 = vmul.f32 %v2311, %v1369
      %v2313 = vmul.f32 %v2310, %v1373
      %2314 = vset.pattern.permute.xlu0 10
      %2315 = vperm.xlu0 %2314, %v2010
      %v2316 = vpop.permute.xlu0 %2315
      %v2318 = vmul.f32 %v2312, %v2316
      %v2319 = vmul.f32 %v2313, %v2316
      %v2320 = vadd.f32 %v2304, %v2318
      %v2321 = vadd.f32 %v2305, %v2319
      %2322 = vrot.lane.b32.xlu0 %v2013, 31
      %v2323 = vpop.permute.xlu0 %2322
      %2324 = vrot.lane.b32.xlu0 %v2014, 31
      %v2325 = vpop.permute.xlu0 %2324
      %v2326 = vsel %vm1390, %v2323, %v2325
      %v2327 = vsel %vm1390, %v2325, %v2323
      %v2328 = vmul.f32 %v2327, %v1400
      %v2329 = vmul.f32 %v2326, %v1404
      %2330 = vset.pattern.permute.xlu0 11
      %2331 = vperm.xlu0 %2330, %v2010
      %v2332 = vpop.permute.xlu0 %2331
      %v2334 = vmul.f32 %v2328, %v2332
      %v2335 = vmul.f32 %v2329, %v2332
      %v2336 = vadd.f32 %v2320, %v2334
      %v2337 = vadd.f32 %v2321, %v2335
      %2338 = vrot.lane.b32.xlu0 %v2013, 30
      %v2339 = vpop.permute.xlu0 %2338
      %2340 = vrot.lane.b32.xlu0 %v2014, 30
      %v2341 = vpop.permute.xlu0 %2340
      %v2342 = vsel %vm1421, %v2339, %v2341
      %v2343 = vsel %vm1421, %v2341, %v2339
      %v2344 = vmul.f32 %v2343, %v1434
      %v2345 = vmul.f32 %v2342, %v1438
      %2346 = vset.pattern.permute.xlu0 12
      %2347 = vperm.xlu0 %2346, %v2010
      %v2348 = vpop.permute.xlu0 %2347
      %v2350 = vmul.f32 %v2344, %v2348
      %v2351 = vmul.f32 %v2345, %v2348
      %v2352 = vadd.f32 %v2336, %v2350
      %v2353 = vadd.f32 %v2337, %v2351
      %2354 = vrot.lane.b32.xlu0 %v2013, 29
      %v2355 = vpop.permute.xlu0 %2354
      %2356 = vrot.lane.b32.xlu0 %v2014, 29
      %v2357 = vpop.permute.xlu0 %2356
      %vm2358 = vcmp.lt.s32.totalorder %v935, 29
      %v2359 = vsel %vm2358, %v2355, %v2357
      %v2360 = vsel %vm2358, %v2357, %v2355
      %vm2361 = vmand %vm1296, %vm2218
      %v2362 = vsel %vm2361, 1, 0
      %v2363 = vcvt.s32.f32 %v2362
      %v2365 = vlaneseq
      %v2366 = vshrl.u32 %v2365, 7
      %v2367 = vsub.s32 0, %v2366
      %v2368 = vrot.slane %v2363, %v2367
      %v2369 = vlaneseq
      %v2370 = vshrl.u32 %v2369, 7
      %v2371 = vsub.s32 1, %v2370
      %v2372 = vrot.slane %v2363, %v2371
      %v2375 = vmul.f32 %v2360, %v2368
      %v2376 = vmul.f32 %v2359, %v2372
      %2377 = vset.pattern.permute.xlu0 13
      %2378 = vperm.xlu0 %2377, %v2010
      %v2379 = vpop.permute.xlu0 %2378
      %v2381 = vmul.f32 %v2375, %v2379
      %v2382 = vmul.f32 %v2376, %v2379
      %v2383 = vadd.f32 %v2352, %v2381
      %v2384 = vadd.f32 %v2353, %v2382
      %2385 = vrot.lane.b32.xlu0 %v2013, 19
      %v2386 = vpop.permute.xlu0 %2385
      %2387 = vrot.lane.b32.xlu0 %v2014, 19
      %v2388 = vpop.permute.xlu0 %2387
      %vm2389 = vcmp.lt.s32.totalorder %v935, 19
      %v2390 = vsel %vm2389, %v2386, %v2388
      %v2391 = vsel %vm2389, %v2388, %v2386
      %vm2392 = vmand %vm941, %vm2029
      %v2393 = vsel %vm2392, 1, 0
      %v2394 = vcvt.s32.f32 %v2393
      %v2396 = vlaneseq
      %v2397 = vshrl.u32 %v2396, 7
      %v2398 = vsub.s32 0, %v2397
      %v2399 = vrot.slane %v2394, %v2398
      %v2400 = vlaneseq
      %v2401 = vshrl.u32 %v2400, 7
      %v2402 = vsub.s32 1, %v2401
      %v2403 = vrot.slane %v2394, %v2402
      %v2406 = vmul.f32 %v2391, %v2399
      %v2407 = vmul.f32 %v2390, %v2403
      %2408 = vset.pattern.permute.xlu0 14
      %2409 = vperm.xlu0 %2408, %v2010
      %v2410 = vpop.permute.xlu0 %2409
      %v2412 = vmul.f32 %v2406, %v2410
      %v2413 = vmul.f32 %v2407, %v2410
      %v2414 = vadd.f32 %v2383, %v2412
      %v2415 = vadd.f32 %v2384, %v2413
      %2416 = vrot.lane.b32.xlu0 %v2013, 18
      %v2417 = vpop.permute.xlu0 %2416
      %2418 = vrot.lane.b32.xlu0 %v2014, 18
      %v2419 = vpop.permute.xlu0 %2418
      %v2420 = vsel %vm1455, %v2417, %v2419
      %v2421 = vsel %vm1455, %v2419, %v2417
      %v2422 = vmul.f32 %v2421, %v1465
      %v2423 = vmul.f32 %v2420, %v1469
      %2424 = vset.pattern.permute.xlu0 15
      %2425 = vperm.xlu0 %2424, %v2010
      %v2426 = vpop.permute.xlu0 %2425
      %v2428 = vmul.f32 %v2422, %v2426
      %v2429 = vmul.f32 %v2423, %v2426
      %v2430 = vadd.f32 %v2414, %v2428
      %v2431 = vadd.f32 %v2415, %v2429
      %2432 = vrot.lane.b32.xlu0 %v2013, 17
      %v2433 = vpop.permute.xlu0 %2432
      %2434 = vrot.lane.b32.xlu0 %v2014, 17
      %v2435 = vpop.permute.xlu0 %2434
      %v2436 = vsel %vm936, %v2433, %v2435
      %v2437 = vsel %vm936, %v2435, %v2433
      %v2438 = vmul.f32 %v2437, %v952
      %v2439 = vmul.f32 %v2436, %v956
      %2440 = vset.pattern.permute.xlu0 16
      %2441 = vperm.xlu0 %2440, %v2010
      %v2442 = vpop.permute.xlu0 %2441
      %v2444 = vmul.f32 %v2438, %v2442
      %v2445 = vmul.f32 %v2439, %v2442
      %v2446 = vadd.f32 %v2430, %v2444
      %v2447 = vadd.f32 %v2431, %v2445
      %2448 = vrot.lane.b32.xlu0 %v2013, 16
      %v2449 = vpop.permute.xlu0 %2448
      %2450 = vrot.lane.b32.xlu0 %v2014, 16
      %v2451 = vpop.permute.xlu0 %2450
      %v2452 = vsel %vm974, %v2449, %v2451
      %v2453 = vsel %vm974, %v2451, %v2449
      %v2454 = vmul.f32 %v2453, %v983
      %v2455 = vmul.f32 %v2452, %v987
      %2456 = vset.pattern.permute.xlu0 17
      %2457 = vperm.xlu0 %2456, %v2010
      %v2458 = vpop.permute.xlu0 %2457
      %v2460 = vmul.f32 %v2454, %v2458
      %v2461 = vmul.f32 %v2455, %v2458
      %v2462 = vadd.f32 %v2446, %v2460
      %v2463 = vadd.f32 %v2447, %v2461
      %2464 = vrot.lane.b32.xlu0 %v2013, 15
      %v2465 = vpop.permute.xlu0 %2464
      %2466 = vrot.lane.b32.xlu0 %v2014, 15
      %v2467 = vpop.permute.xlu0 %2466
      %v2468 = vsel %vm1004, %v2465, %v2467
      %v2469 = vsel %vm1004, %v2467, %v2465
      %v2470 = vmul.f32 %v2469, %v1017
      %v2471 = vmul.f32 %v2468, %v1021
      %2472 = vset.pattern.permute.xlu0 18
      %2473 = vperm.xlu0 %2472, %v2010
      %v2474 = vpop.permute.xlu0 %2473
      %v2476 = vmul.f32 %v2470, %v2474
      %v2477 = vmul.f32 %v2471, %v2474
      %v2478 = vadd.f32 %v2462, %v2476
      %v2479 = vadd.f32 %v2463, %v2477
      %2480 = vrot.lane.b32.xlu0 %v2013, 14
      %v2481 = vpop.permute.xlu0 %2480
      %2482 = vrot.lane.b32.xlu0 %v2014, 14
      %v2483 = vpop.permute.xlu0 %2482
      %v2484 = vsel %vm1534, %v2481, %v2483
      %v2485 = vsel %vm1534, %v2483, %v2481
      %v2486 = vmul.f32 %v2485, %v1544
      %v2487 = vmul.f32 %v2484, %v1548
      %2488 = vset.pattern.permute.xlu0 19
      %2489 = vperm.xlu0 %2488, %v2010
      %v2490 = vpop.permute.xlu0 %2489
      %v2492 = vmul.f32 %v2486, %v2490
      %v2493 = vmul.f32 %v2487, %v2490
      %v2494 = vadd.f32 %v2478, %v2492
      %v2495 = vadd.f32 %v2479, %v2493
      %2496 = vrot.lane.b32.xlu0 %v2013, 13
      %v2497 = vpop.permute.xlu0 %2496
      %2498 = vrot.lane.b32.xlu0 %v2014, 13
      %v2499 = vpop.permute.xlu0 %2498
      %vm2500 = vcmp.lt.s32.totalorder %v935, 13
      %v2501 = vsel %vm2500, %v2497, %v2499
      %v2502 = vsel %vm2500, %v2499, %v2497
      %vm2503 = vmand %vm941, %vm2218
      %v2504 = vsel %vm2503, 1, 0
      %v2505 = vcvt.s32.f32 %v2504
      %v2507 = vlaneseq
      %v2508 = vshrl.u32 %v2507, 7
      %v2509 = vsub.s32 0, %v2508
      %v2510 = vrot.slane %v2505, %v2509
      %v2511 = vlaneseq
      %v2512 = vshrl.u32 %v2511, 7
      %v2513 = vsub.s32 1, %v2512
      %v2514 = vrot.slane %v2505, %v2513
      %v2517 = vmul.f32 %v2502, %v2510
      %v2518 = vmul.f32 %v2501, %v2514
      %2519 = vset.pattern.permute.xlu0 20
      %2520 = vperm.xlu0 %2519, %v2010
      %v2521 = vpop.permute.xlu0 %2520
      %v2523 = vmul.f32 %v2517, %v2521
      %v2524 = vmul.f32 %v2518, %v2521
      %v2525 = vadd.f32 %v2494, %v2523
      %v2526 = vadd.f32 %v2495, %v2524
      %2527 = vrot.lane.b32.xlu0 %v2013, 3
      %v2528 = vpop.permute.xlu0 %2527
      %2529 = vrot.lane.b32.xlu0 %v2014, 3
      %v2530 = vpop.permute.xlu0 %2529
      %vm2531 = vcmp.lt.s32.totalorder %v935, 3
      %v2532 = vsel %vm2531, %v2528, %v2530
      %v2533 = vsel %vm2531, %v2530, %v2528
      %v2534 = vsel %vm2029, 1, 0
      %v2535 = vcvt.s32.f32 %v2534
      %v2537 = vlaneseq
      %v2538 = vshrl.u32 %v2537, 7
      %v2539 = vsub.s32 0, %v2538
      %v2540 = vrot.slane %v2535, %v2539
      %v2541 = vlaneseq
      %v2542 = vshrl.u32 %v2541, 7
      %v2543 = vsub.s32 1, %v2542
      %v2544 = vrot.slane %v2535, %v2543
      %v2547 = vmul.f32 %v2533, %v2540
      %v2548 = vmul.f32 %v2532, %v2544
      %2549 = vset.pattern.permute.xlu0 21
      %2550 = vperm.xlu0 %2549, %v2010
      %v2551 = vpop.permute.xlu0 %2550
      %v2553 = vmul.f32 %v2547, %v2551
      %v2554 = vmul.f32 %v2548, %v2551
      %v2555 = vadd.f32 %v2525, %v2553
      %v2556 = vadd.f32 %v2526, %v2554
      %2557 = vrot.lane.b32.xlu0 %v2013, 2
      %v2558 = vpop.permute.xlu0 %2557
      %2559 = vrot.lane.b32.xlu0 %v2014, 2
      %v2560 = vpop.permute.xlu0 %2559
      %v2561 = vsel %vm1565, %v2558, %v2560
      %v2562 = vsel %vm1565, %v2560, %v2558
      %v2563 = vmul.f32 %v2562, %v1574
      %v2564 = vmul.f32 %v2561, %v1578
      %2565 = vset.pattern.permute.xlu0 22
      %2566 = vperm.xlu0 %2565, %v2010
      %v2567 = vpop.permute.xlu0 %2566
      %v2569 = vmul.f32 %v2563, %v2567
      %v2570 = vmul.f32 %v2564, %v2567
      %v2571 = vadd.f32 %v2555, %v2569
      %v2572 = vadd.f32 %v2556, %v2570
      %2573 = vrot.lane.b32.xlu0 %v2013, 1
      %v2574 = vpop.permute.xlu0 %2573
      %2575 = vrot.lane.b32.xlu0 %v2014, 1
      %v2576 = vpop.permute.xlu0 %2575
      %v2577 = vsel %vm1038, %v2574, %v2576
      %v2578 = vsel %vm1038, %v2576, %v2574
      %v2579 = vmul.f32 %v2578, %v1047
      %v2580 = vmul.f32 %v2577, %v1051
      %2581 = vset.pattern.permute.xlu0 23
      %2582 = vperm.xlu0 %2581, %v2010
      %v2583 = vpop.permute.xlu0 %2582
      %v2585 = vmul.f32 %v2579, %v2583
      %v2586 = vmul.f32 %v2580, %v2583
      %v2587 = vadd.f32 %v2571, %v2585
      %v2588 = vadd.f32 %v2572, %v2586
      %2589 = vset.pattern.permute.xlu0 24
      %2590 = vperm.xlu0 %2589, %v2010
      %v2591 = vpop.permute.xlu0 %2590
      %v2592 = vrot.slane %v2591, 4
      %v2594 = vmul.f32 %v827, %v2592
      %v2595 = vmul.f32 %v828, %v2592
      %v2598 = vrot.slane %v2594, 4
      %v2599 = vrot.slane %v2595, 4
      %v2602 = vadd.f32 %v2587, %v2598
      %v2603 = vadd.f32 %v2588, %v2599
      %2604 = vrot.lane.b32.xlu0 %v2013, 127
      %v2605 = vpop.permute.xlu0 %2604
      %2606 = vrot.lane.b32.xlu0 %v2014, 127
      %v2607 = vpop.permute.xlu0 %2606
      %v2608 = vsel %vm1083, %v2605, %v2607
      %v2609 = vsel %vm1083, %v2607, %v2605
      %v2610 = vmul.f32 %v2608, %v1092
      %v2611 = vmul.f32 %v2609, %v1096
      %2612 = vset.pattern.permute.xlu0 25
      %2613 = vperm.xlu0 %2612, %v2010
      %v2614 = vpop.permute.xlu0 %2613
      %v2616 = vmul.f32 %v2610, %v2614
      %v2617 = vmul.f32 %v2611, %v2614
      %v2618 = vadd.f32 %v2602, %v2616
      %v2619 = vadd.f32 %v2603, %v2617
      %2620 = vrot.lane.b32.xlu0 %v2013, 126
      %v2621 = vpop.permute.xlu0 %2620
      %2622 = vrot.lane.b32.xlu0 %v2014, 126
      %v2623 = vpop.permute.xlu0 %2622
      %v2624 = vsel %vm1635, %v2621, %v2623
      %v2625 = vsel %vm1635, %v2623, %v2621
      %v2626 = vmul.f32 %v2624, %v1644
      %v2627 = vmul.f32 %v2625, %v1648
      %2628 = vset.pattern.permute.xlu0 26
      %2629 = vperm.xlu0 %2628, %v2010
      %v2630 = vpop.permute.xlu0 %2629
      %v2632 = vmul.f32 %v2626, %v2630
      %v2633 = vmul.f32 %v2627, %v2630
      %v2634 = vadd.f32 %v2618, %v2632
      %v2635 = vadd.f32 %v2619, %v2633
      %2636 = vrot.lane.b32.xlu0 %v2013, 125
      %v2637 = vpop.permute.xlu0 %2636
      %2638 = vrot.lane.b32.xlu0 %v2014, 125
      %v2639 = vpop.permute.xlu0 %2638
      %vm2640 = vcmp.lt.s32.totalorder %v935, 125
      %v2641 = vsel %vm2640, %v2637, %v2639
      %v2642 = vsel %vm2640, %v2639, %v2637
      %v2643 = vsel %vm2218, 1, 0
      %v2644 = vcvt.s32.f32 %v2643
      %v2646 = vlaneseq
      %v2647 = vshrl.u32 %v2646, 7
      %v2648 = vsub.s32 0, %v2647
      %v2649 = vrot.slane %v2644, %v2648
      %v2650 = vlaneseq
      %v2651 = vshrl.u32 %v2650, 7
      %v2652 = vsub.s32 1, %v2651
      %v2653 = vrot.slane %v2644, %v2652
      %v2656 = vmul.f32 %v2641, %v2649
      %v2657 = vmul.f32 %v2642, %v2653
      %2658 = vset.pattern.permute.xlu0 27
      %2659 = vperm.xlu0 %2658, %v2010
      %v2660 = vpop.permute.xlu0 %2659
      %v2662 = vmul.f32 %v2656, %v2660
      %v2663 = vmul.f32 %v2657, %v2660
      %v2664 = vadd.f32 %v2634, %v2662
      %v2665 = vadd.f32 %v2635, %v2663
      %2666 = vrot.lane.b32.xlu0 %v2013, 115
      %v2667 = vpop.permute.xlu0 %2666
      %2668 = vrot.lane.b32.xlu0 %v2014, 115
      %v2669 = vpop.permute.xlu0 %2668
      %vm2670 = vcmp.lt.s32.totalorder %v935, 115
      %v2671 = vsel %vm2670, %v2667, %v2669
      %v2672 = vsel %vm2670, %v2669, %v2667
      %vm2673 = vmand %vm1118, %vm2029
      %v2674 = vsel %vm2673, 1, 0
      %v2675 = vcvt.s32.f32 %v2674
      %v2677 = vlaneseq
      %v2678 = vshrl.u32 %v2677, 7
      %v2679 = vsub.s32 0, %v2678
      %v2680 = vrot.slane %v2675, %v2679
      %v2681 = vlaneseq
      %v2682 = vshrl.u32 %v2681, 7
      %v2683 = vsub.s32 1, %v2682
      %v2684 = vrot.slane %v2675, %v2683
      %v2687 = vmul.f32 %v2671, %v2680
      %v2688 = vmul.f32 %v2672, %v2684
      %2689 = vset.pattern.permute.xlu0 28
      %2690 = vperm.xlu0 %2689, %v2010
      %v2691 = vpop.permute.xlu0 %2690
      %v2693 = vmul.f32 %v2687, %v2691
      %v2694 = vmul.f32 %v2688, %v2691
      %v2695 = vadd.f32 %v2664, %v2693
      %v2696 = vadd.f32 %v2665, %v2694
      %2697 = vrot.lane.b32.xlu0 %v2013, 114
      %v2698 = vpop.permute.xlu0 %2697
      %2699 = vrot.lane.b32.xlu0 %v2014, 114
      %v2700 = vpop.permute.xlu0 %2699
      %v2701 = vsel %vm1665, %v2698, %v2700
      %v2702 = vsel %vm1665, %v2700, %v2698
      %v2703 = vmul.f32 %v2701, %v1675
      %v2704 = vmul.f32 %v2702, %v1679
      %2705 = vset.pattern.permute.xlu0 29
      %2706 = vperm.xlu0 %2705, %v2010
      %v2707 = vpop.permute.xlu0 %2706
      %v2709 = vmul.f32 %v2703, %v2707
      %v2710 = vmul.f32 %v2704, %v2707
      %v2711 = vadd.f32 %v2695, %v2709
      %v2712 = vadd.f32 %v2696, %v2710
      %2713 = vrot.lane.b32.xlu0 %v2013, 113
      %v2714 = vpop.permute.xlu0 %2713
      %2715 = vrot.lane.b32.xlu0 %v2014, 113
      %v2716 = vpop.permute.xlu0 %2715
      %v2717 = vsel %vm1113, %v2714, %v2716
      %v2718 = vsel %vm1113, %v2716, %v2714
      %v2719 = vmul.f32 %v2717, %v1126
      %v2720 = vmul.f32 %v2718, %v1130
      %2721 = vset.pattern.permute.xlu0 30
      %2722 = vperm.xlu0 %2721, %v2010
      %v2723 = vpop.permute.xlu0 %2722
      %v2725 = vmul.f32 %v2719, %v2723
      %v2726 = vmul.f32 %v2720, %v2723
      %v2727 = vadd.f32 %v2711, %v2725
      %v2728 = vadd.f32 %v2712, %v2726
      %2729 = vrot.lane.b32.xlu0 %v2013, 112
      %v2730 = vpop.permute.xlu0 %2729
      %2731 = vrot.lane.b32.xlu0 %v2014, 112
      %v2732 = vpop.permute.xlu0 %2731
      %v2733 = vsel %vm1147, %v2730, %v2732
      %v2734 = vsel %vm1147, %v2732, %v2730
      %v2735 = vmul.f32 %v2733, %v1156
      %v2736 = vmul.f32 %v2734, %v1160
      %2737 = vset.pattern.permute.xlu0 31
      %2738 = vperm.xlu0 %2737, %v2010
      %v2739 = vpop.permute.xlu0 %2738
      %v2741 = vmul.f32 %v2735, %v2739
      %v2742 = vmul.f32 %v2736, %v2739
      %v2743 = vadd.f32 %v2727, %v2741
      %v2744 = vadd.f32 %v2728, %v2742
      %2745 = vrot.lane.b32.xlu0 %v2013, 111
      %v2746 = vpop.permute.xlu0 %2745
      %2747 = vrot.lane.b32.xlu0 %v2014, 111
      %v2748 = vpop.permute.xlu0 %2747
      %v2749 = vsel %vm1177, %v2746, %v2748
      %v2750 = vsel %vm1177, %v2748, %v2746
      %v2751 = vmul.f32 %v2749, %v1187
      %v2752 = vmul.f32 %v2750, %v1191
      %2753 = vset.pattern.permute.xlu0 32
      %2754 = vperm.xlu0 %2753, %v2010
      %v2755 = vpop.permute.xlu0 %2754
      %v2757 = vmul.f32 %v2751, %v2755
      %v2758 = vmul.f32 %v2752, %v2755
      %v2759 = vadd.f32 %v2743, %v2757
      %v2760 = vadd.f32 %v2744, %v2758
      %2761 = vrot.lane.b32.xlu0 %v2013, 110
      %v2762 = vpop.permute.xlu0 %2761
      %2763 = vrot.lane.b32.xlu0 %v2014, 110
      %v2764 = vpop.permute.xlu0 %2763
      %v2765 = vsel %vm1744, %v2762, %v2764
      %v2766 = vsel %vm1744, %v2764, %v2762
      %v2767 = vmul.f32 %v2765, %v1754
      %v2768 = vmul.f32 %v2766, %v1758
      %2769 = vset.pattern.permute.xlu0 33
      %2770 = vperm.xlu0 %2769, %v2010
      %v2771 = vpop.permute.xlu0 %2770
      %v2773 = vmul.f32 %v2767, %v2771
      %v2774 = vmul.f32 %v2768, %v2771
      %v2775 = vadd.f32 %v2759, %v2773
      %v2776 = vadd.f32 %v2760, %v2774
      %2777 = vrot.lane.b32.xlu0 %v2013, 109
      %v2778 = vpop.permute.xlu0 %2777
      %2779 = vrot.lane.b32.xlu0 %v2014, 109
      %v2780 = vpop.permute.xlu0 %2779
      %vm2781 = vcmp.lt.s32.totalorder %v935, 109
      %v2782 = vsel %vm2781, %v2778, %v2780
      %v2783 = vsel %vm2781, %v2780, %v2778
      %vm2784 = vmand %vm1118, %vm2218
      %v2785 = vsel %vm2784, 1, 0
      %v2786 = vcvt.s32.f32 %v2785
      %v2788 = vlaneseq
      %v2789 = vshrl.u32 %v2788, 7
      %v2790 = vsub.s32 0, %v2789
      %v2791 = vrot.slane %v2786, %v2790
      %v2792 = vlaneseq
      %v2793 = vshrl.u32 %v2792, 7
      %v2794 = vsub.s32 1, %v2793
      %v2795 = vrot.slane %v2786, %v2794
      %v2798 = vmul.f32 %v2782, %v2791
      %v2799 = vmul.f32 %v2783, %v2795
      %2800 = vset.pattern.permute.xlu0 34
      %2801 = vperm.xlu0 %2800, %v2010
      %v2802 = vpop.permute.xlu0 %2801
      %v2804 = vmul.f32 %v2798, %v2802
      %v2805 = vmul.f32 %v2799, %v2802
      %v2806 = vadd.f32 %v2775, %v2804
      %v2807 = vadd.f32 %v2776, %v2805
      %2808 = vrot.lane.b32.xlu0 %v2013, 99
      %v2809 = vpop.permute.xlu0 %2808
      %2810 = vrot.lane.b32.xlu0 %v2014, 99
      %v2811 = vpop.permute.xlu0 %2810
      %vm2812 = vcmp.lt.s32.totalorder %v935, 99
      %v2813 = vsel %vm2812, %v2809, %v2811
      %v2814 = vsel %vm2812, %v2811, %v2809
      %vm2815 = vmand %vm1780, %vm2029
      %v2816 = vsel %vm2815, 1, 0
      %v2817 = vcvt.s32.f32 %v2816
      %v2819 = vlaneseq
      %v2820 = vshrl.u32 %v2819, 7
      %v2821 = vsub.s32 0, %v2820
      %v2822 = vrot.slane %v2817, %v2821
      %v2823 = vlaneseq
      %v2824 = vshrl.u32 %v2823, 7
      %v2825 = vsub.s32 1, %v2824
      %v2826 = vrot.slane %v2817, %v2825
      %v2829 = vmul.f32 %v2813, %v2822
      %v2830 = vmul.f32 %v2814, %v2826
      %2831 = vset.pattern.permute.xlu0 35
      %2832 = vperm.xlu0 %2831, %v2010
      %v2833 = vpop.permute.xlu0 %2832
      %v2835 = vmul.f32 %v2829, %v2833
      %v2836 = vmul.f32 %v2830, %v2833
      %v2837 = vadd.f32 %v2806, %v2835
      %v2838 = vadd.f32 %v2807, %v2836
      %2839 = vrot.lane.b32.xlu0 %v2013, 98
      %v2840 = vpop.permute.xlu0 %2839
      %2841 = vrot.lane.b32.xlu0 %v2014, 98
      %v2842 = vpop.permute.xlu0 %2841
      %v2843 = vsel %vm1775, %v2840, %v2842
      %v2844 = vsel %vm1775, %v2842, %v2840
      %v2845 = vmul.f32 %v2843, %v1788
      %v2846 = vmul.f32 %v2844, %v1792
      %2847 = vset.pattern.permute.xlu0 36
      %2848 = vperm.xlu0 %2847, %v2010
      %v2849 = vpop.permute.xlu0 %2848
      %v2851 = vmul.f32 %v2845, %v2849
      %v2852 = vmul.f32 %v2846, %v2849
      %v2853 = vadd.f32 %v2837, %v2851
      %v2854 = vadd.f32 %v2838, %v2852
      %2855 = vrot.lane.b32.xlu0 %v2013, 97
      %v2856 = vpop.permute.xlu0 %2855
      %2857 = vrot.lane.b32.xlu0 %v2014, 97
      %v2858 = vpop.permute.xlu0 %2857
      %v2859 = vsel %vm1809, %v2856, %v2858
      %v2860 = vsel %vm1809, %v2858, %v2856
      %v2861 = vmul.f32 %v2859, %v1819
      %v2862 = vmul.f32 %v2860, %v1823
      %2863 = vset.pattern.permute.xlu0 37
      %2864 = vperm.xlu0 %2863, %v2010
      %v2865 = vpop.permute.xlu0 %2864
      %v2867 = vmul.f32 %v2861, %v2865
      %v2868 = vmul.f32 %v2862, %v2865
      %v2869 = vadd.f32 %v2853, %v2867
      %v2870 = vadd.f32 %v2854, %v2868
      %2871 = vrot.lane.b32.xlu0 %v2013, 96
      %v2872 = vpop.permute.xlu0 %2871
      %2873 = vrot.lane.b32.xlu0 %v2014, 96
      %v2874 = vpop.permute.xlu0 %2873
      %v2875 = vsel %vm1840, %v2872, %v2874
      %v2876 = vsel %vm1840, %v2874, %v2872
      %v2877 = vmul.f32 %v2875, %v1849
      %v2878 = vmul.f32 %v2876, %v1853
      %2879 = vset.pattern.permute.xlu0 38
      %2880 = vperm.xlu0 %2879, %v2010
      %v2881 = vpop.permute.xlu0 %2880
      %v2883 = vmul.f32 %v2877, %v2881
      %v2884 = vmul.f32 %v2878, %v2881
      %v2885 = vadd.f32 %v2869, %v2883
      %v2886 = vadd.f32 %v2870, %v2884
      %2887 = vrot.lane.b32.xlu0 %v2013, 95
      %v2888 = vpop.permute.xlu0 %2887
      %2889 = vrot.lane.b32.xlu0 %v2014, 95
      %v2890 = vpop.permute.xlu0 %2889
      %v2891 = vsel %vm1870, %v2888, %v2890
      %v2892 = vsel %vm1870, %v2890, %v2888
      %v2893 = vmul.f32 %v2891, %v1880
      %v2894 = vmul.f32 %v2892, %v1884
      %2895 = vset.pattern.permute.xlu0 39
      %2896 = vperm.xlu0 %2895, %v2010
      %v2897 = vpop.permute.xlu0 %2896
      %v2899 = vmul.f32 %v2893, %v2897
      %v2900 = vmul.f32 %v2894, %v2897
      %v2901 = vadd.f32 %v2885, %v2899
      %v2902 = vadd.f32 %v2886, %v2900
      %2903 = vrot.lane.b32.xlu0 %v2013, 94
      %v2904 = vpop.permute.xlu0 %2903
      %2905 = vrot.lane.b32.xlu0 %v2014, 94
      %v2906 = vpop.permute.xlu0 %2905
      %v2907 = vsel %vm1901, %v2904, %v2906
      %v2908 = vsel %vm1901, %v2906, %v2904
      %v2909 = vmul.f32 %v2907, %v1911
      %v2910 = vmul.f32 %v2908, %v1915
      %2911 = vset.pattern.permute.xlu0 40
      %2912 = vperm.xlu0 %2911, %v2010
      %v2913 = vpop.permute.xlu0 %2912
      %v2915 = vmul.f32 %v2909, %v2913
      %v2916 = vmul.f32 %v2910, %v2913
      %v2917 = vadd.f32 %v2901, %v2915
      %v2918 = vadd.f32 %v2902, %v2916
      %2919 = vrot.lane.b32.xlu0 %v2013, 93
      %v2920 = vpop.permute.xlu0 %2919
      %2921 = vrot.lane.b32.xlu0 %v2014, 93
      %v2922 = vpop.permute.xlu0 %2921
      %vm2923 = vcmp.lt.s32.totalorder %v935, 93
      %v2924 = vsel %vm2923, %v2920, %v2922
      %v2925 = vsel %vm2923, %v2922, %v2920
      %vm2926 = vmand %vm1780, %vm2218
      %v2927 = vsel %vm2926, 1, 0
      %v2928 = vcvt.s32.f32 %v2927
      %v2930 = vlaneseq
      %v2931 = vshrl.u32 %v2930, 7
      %v2932 = vsub.s32 0, %v2931
      %v2933 = vrot.slane %v2928, %v2932
      %v2934 = vlaneseq
      %v2935 = vshrl.u32 %v2934, 7
      %v2936 = vsub.s32 1, %v2935
      %v2937 = vrot.slane %v2928, %v2936
      %v2940 = vmul.f32 %v2924, %v2933
      %v2941 = vmul.f32 %v2925, %v2937
      %2942 = vset.pattern.permute.xlu0 41
      %2943 = vperm.xlu0 %2942, %v2010
      %v2944 = vpop.permute.xlu0 %2943
      %v2946 = vmul.f32 %v2940, %v2944
      %v2947 = vmul.f32 %v2941, %v2944
      %v2948 = vadd.f32 %v2917, %v2946
      %v2949 = vadd.f32 %v2918, %v2947
      %2950 = vrot.lane.b32.xlu0 %v2013, 83
      %v2951 = vpop.permute.xlu0 %2950
      %2952 = vrot.lane.b32.xlu0 %v2014, 83
      %v2953 = vpop.permute.xlu0 %2952
      %vm2954 = vcmp.lt.s32.totalorder %v935, 83
      %v2955 = vsel %vm2954, %v2951, %v2953
      %v2956 = vsel %vm2954, %v2953, %v2951
      %vm2957 = vcmp.ge.s32.totalorder %v490, 4294967293
      %vm2958 = vcmp.lt.s32.totalorder %v490, 13
      %vm2959 = vmand %vm2957, %vm2958
      %vm2960 = vmand %vm2959, %vm2029
      %v2961 = vsel %vm2960, 1, 0
      %v2962 = vcvt.s32.f32 %v2961
      %v2964 = vlaneseq
      %v2965 = vshrl.u32 %v2964, 7
      %v2966 = vsub.s32 0, %v2965
      %v2967 = vrot.slane %v2962, %v2966
      %v2968 = vlaneseq
      %v2969 = vshrl.u32 %v2968, 7
      %v2970 = vsub.s32 1, %v2969
      %v2971 = vrot.slane %v2962, %v2970
      %v2974 = vmul.f32 %v2955, %v2967
      %v2975 = vmul.f32 %v2956, %v2971
      %2976 = vset.pattern.permute.xlu0 42
      %2977 = vperm.xlu0 %2976, %v2010
      %v2978 = vpop.permute.xlu0 %2977
      %v2980 = vmul.f32 %v2974, %v2978
      %v2981 = vmul.f32 %v2975, %v2978
      %v2982 = vadd.f32 %v2948, %v2980
      %v2983 = vadd.f32 %v2949, %v2981
      %2984 = vrot.lane.b32.xlu0 %v2013, 82
      %v2985 = vpop.permute.xlu0 %2984
      %2986 = vrot.lane.b32.xlu0 %v2014, 82
      %v2987 = vpop.permute.xlu0 %2986
      %vm2988 = vcmp.lt.s32.totalorder %v935, 82
      %v2989 = vsel %vm2988, %v2985, %v2987
      %v2990 = vsel %vm2988, %v2987, %v2985
      %vm2991 = vmand %vm2959, %vm1299
      %v2992 = vsel %vm2991, 1, 0
      %v2993 = vcvt.s32.f32 %v2992
      %v2995 = vlaneseq
      %v2996 = vshrl.u32 %v2995, 7
      %v2997 = vsub.s32 0, %v2996
      %v2998 = vrot.slane %v2993, %v2997
      %v2999 = vlaneseq
      %v3000 = vshrl.u32 %v2999, 7
      %v3001 = vsub.s32 1, %v3000
      %v3002 = vrot.slane %v2993, %v3001
      %v3005 = vmul.f32 %v2989, %v2998
      %v3006 = vmul.f32 %v2990, %v3002
      %3007 = vset.pattern.permute.xlu0 43
      %3008 = vperm.xlu0 %3007, %v2010
      %v3009 = vpop.permute.xlu0 %3008
      %v3011 = vmul.f32 %v3005, %v3009
      %v3012 = vmul.f32 %v3006, %v3009
      %v3013 = vadd.f32 %v2982, %v3011
      %v3014 = vadd.f32 %v2983, %v3012
      %3015 = vrot.lane.b32.xlu0 %v2013, 81
      %v3016 = vpop.permute.xlu0 %3015
      %3017 = vrot.lane.b32.xlu0 %v2014, 81
      %v3018 = vpop.permute.xlu0 %3017
      %vm3019 = vcmp.lt.s32.totalorder %v935, 81
      %v3020 = vsel %vm3019, %v3016, %v3018
      %v3021 = vsel %vm3019, %v3018, %v3016
      %vm3022 = vmand %vm2959, %vm944
      %v3023 = vsel %vm3022, 1, 0
      %v3024 = vcvt.s32.f32 %v3023
      %v3026 = vlaneseq
      %v3027 = vshrl.u32 %v3026, 7
      %v3028 = vsub.s32 0, %v3027
      %v3029 = vrot.slane %v3024, %v3028
      %v3030 = vlaneseq
      %v3031 = vshrl.u32 %v3030, 7
      %v3032 = vsub.s32 1, %v3031
      %v3033 = vrot.slane %v3024, %v3032
      %v3036 = vmul.f32 %v3020, %v3029
      %v3037 = vmul.f32 %v3021, %v3033
      %3038 = vset.pattern.permute.xlu0 44
      %3039 = vperm.xlu0 %3038, %v2010
      %v3040 = vpop.permute.xlu0 %3039
      %v3042 = vmul.f32 %v3036, %v3040
      %v3043 = vmul.f32 %v3037, %v3040
      %v3044 = vadd.f32 %v3013, %v3042
      %v3045 = vadd.f32 %v3014, %v3043
      %3046 = vrot.lane.b32.xlu0 %v2013, 80
      %v3047 = vpop.permute.xlu0 %3046
      %3048 = vrot.lane.b32.xlu0 %v2014, 80
      %v3049 = vpop.permute.xlu0 %3048
      %vm3050 = vcmp.lt.s32.totalorder %v935, 80
      %v3051 = vsel %vm3050, %v3047, %v3049
      %v3052 = vsel %vm3050, %v3049, %v3047
      %v3053 = vsel %vm2959, 1, 0
      %v3054 = vcvt.s32.f32 %v3053
      %v3056 = vlaneseq
      %v3057 = vshrl.u32 %v3056, 7
      %v3058 = vsub.s32 0, %v3057
      %v3059 = vrot.slane %v3054, %v3058
      %v3060 = vlaneseq
      %v3061 = vshrl.u32 %v3060, 7
      %v3062 = vsub.s32 1, %v3061
      %v3063 = vrot.slane %v3054, %v3062
      %v3066 = vmul.f32 %v3051, %v3059
      %v3067 = vmul.f32 %v3052, %v3063
      %3068 = vset.pattern.permute.xlu0 45
      %3069 = vperm.xlu0 %3068, %v2010
      %v3070 = vpop.permute.xlu0 %3069
      %v3072 = vmul.f32 %v3066, %v3070
      %v3073 = vmul.f32 %v3067, %v3070
      %v3074 = vadd.f32 %v3044, %v3072
      %v3075 = vadd.f32 %v3045, %v3073
      %3076 = vrot.lane.b32.xlu0 %v2013, 79
      %v3077 = vpop.permute.xlu0 %3076
      %3078 = vrot.lane.b32.xlu0 %v2014, 79
      %v3079 = vpop.permute.xlu0 %3078
      %vm3080 = vcmp.lt.s32.totalorder %v935, 79
      %v3081 = vsel %vm3080, %v3077, %v3079
      %v3082 = vsel %vm3080, %v3079, %v3077
      %vm3083 = vmand %vm2959, %vm1009
      %v3084 = vsel %vm3083, 1, 0
      %v3085 = vcvt.s32.f32 %v3084
      %v3087 = vlaneseq
      %v3088 = vshrl.u32 %v3087, 7
      %v3089 = vsub.s32 0, %v3088
      %v3090 = vrot.slane %v3085, %v3089
      %v3091 = vlaneseq
      %v3092 = vshrl.u32 %v3091, 7
      %v3093 = vsub.s32 1, %v3092
      %v3094 = vrot.slane %v3085, %v3093
      %v3097 = vmul.f32 %v3081, %v3090
      %v3098 = vmul.f32 %v3082, %v3094
      %3099 = vset.pattern.permute.xlu0 46
      %3100 = vperm.xlu0 %3099, %v2010
      %v3101 = vpop.permute.xlu0 %3100
      %v3103 = vmul.f32 %v3097, %v3101
      %v3104 = vmul.f32 %v3098, %v3101
      %v3105 = vadd.f32 %v3074, %v3103
      %v3106 = vadd.f32 %v3075, %v3104
      %3107 = vrot.lane.b32.xlu0 %v2013, 78
      %v3108 = vpop.permute.xlu0 %3107
      %3109 = vrot.lane.b32.xlu0 %v2014, 78
      %v3110 = vpop.permute.xlu0 %3109
      %vm3111 = vcmp.lt.s32.totalorder %v935, 78
      %v3112 = vsel %vm3111, %v3108, %v3110
      %v3113 = vsel %vm3111, %v3110, %v3108
      %vm3114 = vmand %vm2959, %vm1426
      %v3115 = vsel %vm3114, 1, 0
      %v3116 = vcvt.s32.f32 %v3115
      %v3118 = vlaneseq
      %v3119 = vshrl.u32 %v3118, 7
      %v3120 = vsub.s32 0, %v3119
      %v3121 = vrot.slane %v3116, %v3120
      %v3122 = vlaneseq
      %v3123 = vshrl.u32 %v3122, 7
      %v3124 = vsub.s32 1, %v3123
      %v3125 = vrot.slane %v3116, %v3124
      %v3128 = vmul.f32 %v3112, %v3121
      %v3129 = vmul.f32 %v3113, %v3125
      %3130 = vset.pattern.permute.xlu0 47
      %3131 = vperm.xlu0 %3130, %v2010
      %v3132 = vpop.permute.xlu0 %3131
      %v3134 = vmul.f32 %v3128, %v3132
      %v3135 = vmul.f32 %v3129, %v3132
      %v3136 = vadd.f32 %v3105, %v3134
      %v3137 = vadd.f32 %v3106, %v3135
      %3138 = vrot.lane.b32.xlu0 %v2013, 77
      %v3139 = vpop.permute.xlu0 %3138
      %3140 = vrot.lane.b32.xlu0 %v2014, 77
      %v3141 = vpop.permute.xlu0 %3140
      %vm3142 = vcmp.lt.s32.totalorder %v935, 77
      %v3143 = vsel %vm3142, %v3139, %v3141
      %v3144 = vsel %vm3142, %v3141, %v3139
      %vm3145 = vmand %vm2959, %vm2218
      %v3146 = vsel %vm3145, 1, 0
      %v3147 = vcvt.s32.f32 %v3146
      %v3149 = vlaneseq
      %v3150 = vshrl.u32 %v3149, 7
      %v3151 = vsub.s32 0, %v3150
      %v3152 = vrot.slane %v3147, %v3151
      %v3153 = vlaneseq
      %v3154 = vshrl.u32 %v3153, 7
      %v3155 = vsub.s32 1, %v3154
      %v3156 = vrot.slane %v3147, %v3155
      %v3159 = vmul.f32 %v3143, %v3152
      %v3160 = vmul.f32 %v3144, %v3156
      %3161 = vset.pattern.permute.xlu0 48
      %3162 = vperm.xlu0 %3161, %v2010
      %v3163 = vpop.permute.xlu0 %3162
      %v3165 = vmul.f32 %v3159, %v3163
      %v3166 = vmul.f32 %v3160, %v3163
      %v3167 = vadd.f32 %v3136, %v3165
      %v3168 = vadd.f32 %v3137, %v3166
      %v3169 = vmul.f32 %v3167, %v3167
      %v3170 = vmul.f32 %v3168, %v3168
      %v3171 = vmul.f32 %v3167, %v3169
      %v3172 = vmul.f32 %v3168, %v3170
      %v3173 = vmul.f32 %v3171, 0.044715
      %v3174 = vmul.f32 %v3172, 0.044715
      %v3175 = vadd.f32 %v3167, %v3173
      %v3176 = vadd.f32 %v3168, %v3174
      %v3177 = vmul.f32 %v3175, 0.7978846
      %v3178 = vmul.f32 %v3176, 0.7978846
      %v3179 = vtanh.pop %v3177
      %v3180 = vtanh.pop %v3178
      %v3181 = vadd.f32 %v3179, 1.0
      %v3182 = vadd.f32 %v3180, 1.0
      %v3183 = vmul.f32 %v3181, 0.5
      %v3184 = vmul.f32 %v3182, 0.5
      %v3185 = vmul.f32 %v3167, %v3183
      %v3186 = vmul.f32 %v3168, %v3184
      %3187 = vset.pattern.permute.xlu0 12
      %3188 = vperm.xlu0 %3187, %v829
      %v3189 = vpop.permute.xlu0 %3188
      %v3191 = vlaneseq
      %v3192 = vshrl.u32 %v3191, 7
      %v3193 = vsub.s32 0, %v3192
      %v3194 = vrot.slane %v3185, %v3193
      %v3195 = vlaneseq
      %v3196 = vshrl.u32 %v3195, 7
      %v3197 = vsub.s32 0, %v3196
      %v3198 = vrot.slane %v3186, %v3197
      %v3199 = vmul.f32 %v3189, %v3194
      %v3200 = vmul.f32 %v3189, %v3198
      %v3201 = vadd.f32 %v2008, %v3199
      %v3202 = vadd.f32 %v2009, %v3200
      %3203 = vset.pattern.permute.xlu0 13
      %3204 = vperm.xlu0 %3203, %v829
      %v3205 = vpop.permute.xlu0 %3204
      %v3207 = vlaneseq
      %v3208 = vshrl.u32 %v3207, 7
      %v3209 = vsub.s32 1, %v3208
      %v3210 = vrot.slane %v3185, %v3209
      %v3211 = vlaneseq
      %v3212 = vshrl.u32 %v3211, 7
      %v3213 = vsub.s32 1, %v3212
      %v3214 = vrot.slane %v3186, %v3213
      %v3215 = vmul.f32 %v3205, %v3210
      %v3216 = vmul.f32 %v3205, %v3214
      %v3217 = vadd.f32 %v3201, %v3215
      %v3218 = vadd.f32 %v3202, %v3216
      %3219 = vset.pattern.permute.xlu0 14
      %3220 = vperm.xlu0 %3219, %v829
      %v3221 = vpop.permute.xlu0 %3220
      %v3223 = vlaneseq
      %v3224 = vshrl.u32 %v3223, 7
      %v3225 = vsub.s32 2, %v3224
      %v3226 = vrot.slane %v3185, %v3225
      %v3227 = vlaneseq
      %v3228 = vshrl.u32 %v3227, 7
      %v3229 = vsub.s32 2, %v3228
      %v3230 = vrot.slane %v3186, %v3229
      %v3231 = vmul.f32 %v3221, %v3226
      %v3232 = vmul.f32 %v3221, %v3230
      %v3233 = vadd.f32 %v3217, %v3231
      %v3234 = vadd.f32 %v3218, %v3232
      %3235 = vset.pattern.permute.xlu0 15
      %3236 = vperm.xlu0 %3235, %v829
      %v3237 = vpop.permute.xlu0 %3236
      %v3239 = vlaneseq
      %v3240 = vshrl.u32 %v3239, 7
      %v3241 = vsub.s32 3, %v3240
      %v3242 = vrot.slane %v3185, %v3241
      %v3243 = vlaneseq
      %v3244 = vshrl.u32 %v3243, 7
      %v3245 = vsub.s32 3, %v3244
      %v3246 = vrot.slane %v3186, %v3245
      %v3247 = vmul.f32 %v3237, %v3242
      %v3248 = vmul.f32 %v3237, %v3246
      %v3249 = vadd.f32 %v3233, %v3247
      %v3250 = vadd.f32 %v3234, %v3248
      %v3251 = vld [vmem:[%s11] sm:$0xff]
      %3253 = vset.pattern.permute.xlu0 0
      %3254 = vperm.xlu0 %3253, %v3251
      %v3255 = vpop.permute.xlu0 %3254
      %v3257 = vadd.f32 %v3249, %v3255
      %v3258 = vadd.f32 %v3250, %v3255
      %v3259 = vmax.f32 %v3257, 0.0
      %v3260 = vmax.f32 %v3258, 0.0
      %v3261 = vld [vmem:[%s12] sm:$0xff]
      %3263 = vset.pattern.permute.xlu0 0
      %3264 = vperm.xlu0 %3263, %v3261
      %v3265 = vpop.permute.xlu0 %3264
      %v3267 = vmul.f32 %v3259, %v3265
      %v3268 = vmul.f32 %v3260, %v3265
      %v3269 = vrot.slane %v3267, 4
      %v3270 = vadd.f32 %v3267, %v3269
      %v3271 = vrot.slane %v3270, 2
      %v3272 = vadd.f32 %v3270, %v3271
      %v3273 = vrot.slane %v3272, 1
      %v3274 = vadd.f32 %v3272, %v3273
      %v3275 = vrot.slane %v3268, 4
      %v3276 = vadd.f32 %v3268, %v3275
      %v3277 = vrot.slane %v3276, 2
      %v3278 = vadd.f32 %v3276, %v3277
      %v3279 = vrot.slane %v3278, 1
      %v3280 = vadd.f32 %v3278, %v3279
      %v3281 = vld [vmem:[#allocation2] sm:$0x1]
      %3283 = vset.pattern.permute.xlu0 0
      %3284 = vperm.xlu0 %3283, %v3281
      %v3285 = vpop.permute.xlu0 %3284
      %v3287 = vlaneseq
      %v3288 = vshrl.u32 %v3287, 7
      %v3289 = vsub.s32 0, %v3288
      %v3290 = vrot.slane %v3285, %v3289
      %v3291 = vadd.f32 %v3274, %v3290
      %v3292 = vadd.f32 %v3280, %v3290
      %v3293 = vxor.u32 %v3291, 2147483648
      %v3294 = vxor.u32 %v3292, 2147483648
      %v3295 = vmul.f32 %v3293, 1.442695
      %v3296 = vpow.pop %v3295
      %v3297 = vmul.f32 %v3294, 1.442695
      %v3298 = vpow.pop %v3297
      %v3299 = vadd.f32 %v3296, 1.0
      %v3300 = vadd.f32 %v3298, 1.0
      %v3301 = vrcp.pop %v3299
      %v3302 = vmul.f32 1.0, %v3301
      %v3303 = vrcp.pop %v3300
      %v3304 = vmul.f32 1.0, %v3303
      %v3307 = vcombine.low %v3302, %v3304
      %v3309 = vmul.f32 %v494, %v3307
      %3310 = vst [vmem:[%s489] sm:$0xff] %v3309
      %p3311 = scmp.lt.s32.totalorder %s27, 1
      %s3312 = scalar_select %p3311, %s27, 1
      %s3313 = smul.addr %s3312, 2
      %s3314 = smul.addr %s3313, 4
      %s3315 = scalar_lea.vmem %s14, %s3314
      // Predicated region
      $region77: #{attention_block_forward.1} parent=75 // pred_check
        %p3316 = pneg %p349
      $region78: #{attention_block_forward.1} parent=75 // pred_check_branch
        %3318 = sbr.rel (%p3316) target = $region80
      $region79: #{attention_block_forward.1} parent=75 // pred_region
        _
      $region80: #{attention_block_forward.1} parent=75 // pred_fallthru
        _
    $region76: #{attention_block_forward.1} parent=5 // pred_fallthru
      _
    %p3319 = scmp.le.s32.totalorder 2, %s22
    // Predicated region
    $region81: #{attention_block_forward.1} parent=5 // pred_check
      %p3320 = pneg %p3319
    $region82: #{attention_block_forward.1} parent=5 // pred_check_branch
      %3322 = sbr.rel (%p3320) target = $region84
    $region83: #{attention_block_forward.1} parent=5 // pred_region
      %s3323 = ssub.s32 %s22, 2
      // Predicated region
      $region85: #{attention_block_forward.1} parent=83 // pred_check
        %p3324 = pneg %p355
      $region86: #{attention_block_forward.1} parent=83 // pred_check_branch
        %3326 = sbr.rel (%p3324) target = $region88
      $region87: #{attention_block_forward.1} parent=83 // pred_region
        %p3327 = scmp.lt.s32.totalorder %s28, 1
        %s3328 = scalar_select %p3327, %s28, 1
        %s3329 = smul.addr %s3328, 2
        %s3330 = smul.addr %s3329, 4
        %s3331 = scalar_lea.vmem %s14, %s3330
      $region88: #{attention_block_forward.1} parent=83 // pred_fallthru
        _
    $region84: #{attention_block_forward.1} parent=5 // pred_fallthru
      _
  $region6: #{attention_block_forward.1} parent=0 // loop_footer
    %s26 = sadd.s32 1, %s22
  $region7: #{attention_block_forward.1} parent=0 // loop_footer_branch
    %21 = sbr.rel target = $region3
  $region8: #{attention_block_forward.1} parent=0 // loop_exit
    _

</llo_original>
